<compile_context>
chip_gen: v7x
topology: tpu7x:2x2x1
jax: 0.10.0
libtpu: 0.0.40
codegen_flags: <defaults>
</compile_context>

<pallas_src>
import functools

import jax
import jax.numpy as jnp
from jax import lax
from jax.experimental import pallas as pl
from jax.experimental.pallas import tpu as pltpu

LEAK = 0.2
BN_EPS = 1e-5


# ------------------------------ fused Pallas kernel ------------------------------

def _make_fused_kernel(batch, taps, c1, m_head):
    """conv1(im2col matmul)+BN+LReLU -> conv2(16 tap matmuls)+BN+LReLU -> packed heads."""

    def kernel(p1_ref, w1_ref, b1_ref, g1_ref, bt1_ref,
               w2_ref, b2_ref, g2_ref, bt2_ref,
               wh_ref, bh_ref, out_ref):
        # ---- conv1 as one big matmul (bf16 operands, f32 accumulate) + bias ----
        acc1 = jnp.dot(p1_ref[...], w1_ref[...],
                       preferred_element_type=jnp.float32)          # [taps*B, 128]
        acc1 = acc1 + b1_ref[...]

        # BatchNorm (training stats over all batch*spatial rows), folded into one FMA.
        mu1 = jnp.mean(acc1, axis=0, keepdims=True)
        var1 = jnp.mean((acc1 - mu1) ** 2, axis=0, keepdims=True)    # biased variance
        sc1 = g1_ref[...] * lax.rsqrt(var1 + BN_EPS)
        sh1 = bt1_ref[...] - mu1 * sc1
        h1 = acc1 * sc1 + sh1
        h1 = jnp.where(h1 > 0, h1, LEAK * h1)                        # stays resident in VMEM/vregs

        # ---- conv2: valid 4x4 on a 4x4 map -> 1x1, i.e. sum of 16 tap matmuls ----
        c2 = w2_ref.shape[1]
        acc2 = jnp.zeros((batch, c2), jnp.float32)
        for s in range(taps):                                        # static unroll: 16 MXU pushes
            hs = h1[s * batch:(s + 1) * batch, :].astype(jnp.bfloat16)
            acc2 = acc2 + jnp.dot(hs, w2_ref[s * c1:(s + 1) * c1, :],
                                  preferred_element_type=jnp.float32)
        acc2 = acc2 + b2_ref[...]

        mu2 = jnp.mean(acc2, axis=0, keepdims=True)
        var2 = jnp.mean((acc2 - mu2) ** 2, axis=0, keepdims=True)
        sc2 = g2_ref[...] * lax.rsqrt(var2 + BN_EPS)
        sh2 = bt2_ref[...] - mu2 * sc2
        h2 = acc2 * sc2 + sh2
        h2 = jnp.where(h2 > 0, h2, LEAK * h2)                        # [B, 64] flattened features

        # ---- heads: one lane-dense matmul; columns are [mean | var-logits | disc | pad] ----
        if m_head > batch:                                           # pad rows to a full sublane tile
            h2 = jnp.concatenate(
                [h2, jnp.zeros((m_head - batch, c2), jnp.float32)], axis=0)
        out_ref[...] = (jnp.dot(h2.astype(jnp.bfloat16), wh_ref[...],
                                preferred_element_type=jnp.float32) + bh_ref[...])

    return kernel


# --------------------------------- glue helpers ----------------------------------

def _full_spec(shape):
    nd = len(shape)
    return pl.BlockSpec(shape, lambda *_: (0,) * nd)


def _im2col_nhwc(x, kh, kw):
    """x: [B,H,W,C] -> patches [B, oh, ow, kh*kw*C] (row-major over (kh, kw, c))."""
    b, h, w, c = x.shape
    oh, ow = h - kh + 1, w - kw + 1
    cols = []
    for i in range(kh):
        for j in range(kw):
            cols.append(x[:, i:i + oh, j:j + ow, :])
    p = jnp.stack(cols, axis=3)                                      # [B, oh, ow, kh*kw, C]
    return p.reshape(b, oh, ow, kh * kw * c), (oh, ow)


def prepare_params(raw):
    """One-time layout prep (hoisted out of the forward): flatten convs, concat+pad heads, cast bf16."""
    wh = jnp.concatenate([raw["wm"], raw["wv"], raw["wd"]], axis=1)  # [64, 2+2+8]
    bh = jnp.concatenate([raw["bm"], raw["bv"], raw["bd"]], axis=1)
    total = wh.shape[1]
    head_n = -(-total // 128) * 128                                  # lane-dense output width
    wh = jnp.pad(wh, ((0, 0), (0, head_n - total)))
    bh = jnp.pad(bh, ((0, 0), (0, head_n - total)))
    return {
        "w1": raw["w1"].reshape(-1, raw["w1"].shape[-1]).astype(jnp.bfloat16),  # [4096, 128]
        "b1": raw["b1"], "g1": raw["g1"], "bt1": raw["beta1"],
        "w2": raw["w2"].reshape(-1, raw["w2"].shape[-1]).astype(jnp.bfloat16),  # [2048, 64]
        "b2": raw["b2"], "g2": raw["g2"], "bt2": raw["beta2"],
        "wh": wh.astype(jnp.bfloat16),                                           # [64, 128]
        "bh": bh,                                                                # [1, 128] f32
    }


def auxiliary_network_forward(x_nchw, prep, *, cont_dim, disc_total):
    b = x_nchw.shape[0]
    m_head = max(8, ((b + 7) // 8) * 8)

    # NCHW -> NHWC, im2col for conv1, rows laid out TAP-MAJOR: row = (oh*4+ow)*B + b,
    # so conv2's 16 taps are contiguous row-blocks of h1 inside the kernel.
    x = jnp.transpose(x_nchw, (0, 2, 3, 1))
    p1, (oh, ow) = _im2col_nhwc(x, 4, 4)                             # [B, 4, 4, 4096]
    taps = oh * ow                                                   # 16 (== conv2 taps, 1x1 output)
    p1 = jnp.transpose(p1, (1, 2, 0, 3)).reshape(taps * b, -1).astype(jnp.bfloat16)

    k1 = p1.shape[1]
    c1 = prep["w1"].shape[1]
    k2, c2 = prep["w2"].shape
    head_n = prep["wh"].shape[1]
    assert k2 == taps * c1

    flops = 2 * (taps * b * k1 * c1 + taps * b * c1 * c2 + m_head * c2 * head_n)
    bytes_accessed = sum(int(a.size * a.dtype.itemsize) for a in
                         (p1, prep["w1"], prep["w2"], prep["wh"], prep["b1"], prep["g1"],
                          prep["bt1"], prep["b2"], prep["g2"], prep["bt2"], prep["bh"]))
    bytes_accessed += m_head * head_n * 4

    out = pl.pallas_call(
        _make_fused_kernel(b, taps, c1, m_head),
        out_shape=jax.ShapeDtypeStruct((m_head, head_n), jnp.float32),
        grid=(1,),
        in_specs=[_full_spec((taps * b, k1)), _full_spec((k1, c1)),
                  _full_spec((1, c1)), _full_spec((1, c1)), _full_spec((1, c1)),
                  _full_spec((k2, c2)),
                  _full_spec((1, c2)), _full_spec((1, c2)), _full_spec((1, c2)),
                  _full_spec((c2, head_n)), _full_spec((1, head_n))],
        out_specs=_full_spec((m_head, head_n)),
        compiler_params=pltpu.CompilerParams(dimension_semantics=("arbitrary",)),
        cost_estimate=pl.CostEstimate(flops=flops, transcendentals=c1 + c2,
                                      bytes_accessed=bytes_accessed),
    )(p1, prep["w1"], prep["b1"], prep["g1"], prep["bt1"],
      prep["w2"], prep["b2"], prep["g2"], prep["bt2"],
      prep["wh"], prep["bh"])

    sl = out[:b]                                                     # drop row padding
    mean = sl[:, :cont_dim]
    var = jnp.exp(sl[:, cont_dim:2 * cont_dim])                      # exp only on the var columns
    disc = sl[:, 2 * cont_dim:2 * cont_dim + disc_total]
    return mean, var, disc


# --------------------------- deterministic raw parameters -------------------------

def init_params(key, cont_dim, disc_dim, n_disc):
    ks = jax.random.split(key, 14)
    n_out_disc = disc_dim * n_disc
    return {
        # conv weights stored HWIO: [kh, kw, Cin, Cout]
        "w1": 0.02 * jax.random.normal(ks[0], (4, 4, 256, 128), jnp.float32),
        "b1": 0.02 * jax.random.normal(ks[1], (1, 128), jnp.float32),
        "g1": 1.0 + 0.1 * jax.random.normal(ks[2], (1, 128), jnp.float32),
        "beta1": 0.1 * jax.random.normal(ks[3], (1, 128), jnp.float32),
        "w2": 0.02 * jax.random.normal(ks[4], (4, 4, 128, 64), jnp.float32),
        "b2": 0.02 * jax.random.normal(ks[5], (1, 64), jnp.float32),
        "g2": 1.0 + 0.1 * jax.random.normal(ks[6], (1, 64), jnp.float32),
        "beta2": 0.1 * jax.random.normal(ks[7], (1, 64), jnp.float32),
        # linear heads stored [in, out]
        "wm": 0.1 * jax.random.normal(ks[8], (64, cont_dim), jnp.float32),
        "bm": 0.1 * jax.random.normal(ks[9], (1, cont_dim), jnp.float32),
        "wv": 0.1 * jax.random.normal(ks[10], (64, cont_dim), jnp.float32),
        "bv": 0.1 * jax.random.normal(ks[11], (1, cont_dim), jnp.float32),
        "wd": 0.1 * jax.random.normal(ks[12], (64, n_out_disc), jnp.float32),
        "bd": 0.1 * jax.random.normal(ks[13], (1, n_out_disc), jnp.float32),
    }


# ------------------------- pure-JAX reference (PyTorch semantics) ------------------

def reference(x_nchw, p):
    """f32 conv-based forward (independent path: lax.conv, NCHW, true flatten)."""
    hi = lax.Precision.HIGHEST

    def bn_lrelu(y, gamma, beta):  # y: NCHW, training-mode batch stats
        mu = y.mean(axis=(0, 2, 3), keepdims=True)
        var = ((y - mu) ** 2).mean(axis=(0, 2, 3), keepdims=True)
        z = (y - mu) / jnp.sqrt(var + BN_EPS)
        z = z * gamma.reshape(1, -1, 1, 1) + beta.reshape(1, -1, 1, 1)
        return jnp.where(z > 0, z, LEAK * z)

    w1_oihw = jnp.transpose(p["w1"], (3, 2, 0, 1))
    y1 = lax.conv_general_dilated(x_nchw, w1_oihw, (1, 1), "VALID", precision=hi)
    y1 = y1 + p["b1"].reshape(1, -1, 1, 1)
    h1 = bn_lrelu(y1, p["g1"], p["beta1"])

    w2_oihw = jnp.transpose(p["w2"], (3, 2, 0, 1))
    y2 = lax.conv_general_dilated(h1, w2_oihw, (1, 1), "VALID", precision=hi)
    y2 = y2 + p["b2"].reshape(1, -1, 1, 1)
    h2 = bn_lrelu(y2, p["g2"], p["beta2"])

    feat = h2.reshape(h2.shape[0], -1)                               # [B, 64]
    mean = jnp.dot(feat, p["wm"], precision=hi) + p["bm"]
    var = jnp.exp(jnp.dot(feat, p["wv"], precision=hi) + p["bv"])
    disc = jnp.dot(feat, p["wd"], precision=hi) + p["bd"]
    return mean, var, disc


# -------------------------------------- main --------------------------------------

if __name__ == "__main__":
    cont_dim, disc_dim, n_disc = 2, 4, 2
    disc_total = disc_dim * n_disc
    key = jax.random.PRNGKey(0)
    kx, kp = jax.random.split(key)

    # input: NCHW [batch=4, C=256, H=7, W=7] (7x7 so two valid 4x4 convs -> 1x1 map)
    batch = 4
    x = jax.random.normal(kx, (batch, 256, 7, 7), jnp.float32)
    raw = init_params(kp, cont_dim, disc_dim, n_disc)
    prep = prepare_params(raw)                                       # one-time layout prep

    fwd = jax.jit(functools.partial(auxiliary_network_forward,
                                    cont_dim=cont_dim, disc_total=disc_total))
    mean, var, disc = jax.block_until_ready(fwd(x, prep))

    # Reference check: same PyTorch-semantics math via lax.conv (independent path),
    # evaluated on bf16-rounded activations/weights to match the kernel's MXU
    # operand precision (BN / bias math stays f32 in both).
    def r16(a):
        return a.astype(jnp.bfloat16).astype(jnp.float32)

    raw_r = dict(raw)
    for kname in ("w1", "w2", "wm", "wv", "wd"):
        raw_r[kname] = r16(raw[kname])
    rm, rv, rd = reference(r16(x), raw_r)

    assert mean.shape == (batch, cont_dim) and var.shape == (batch, cont_dim)
    assert disc.shape == (batch, disc_total)
    assert jnp.allclose(mean, rm, atol=3e-2, rtol=3e-2)
    assert jnp.allclose(var, rv, atol=3e-2, rtol=3e-2)
    assert jnp.allclose(disc, rd, atol=3e-2, rtol=3e-2)

    print("KERNEL_OK")
</pallas_src>

<mosaic_0001>
module attributes {stable_mosaic.version = 11 : i64} {
  func.func @kernel(%arg0: i32, %arg1: memref<64x4096xbf16, #tpu.memory_space<vmem>>, %arg2: memref<4096x128xbf16, #tpu.memory_space<vmem>>, %arg3: memref<1x128xf32, #tpu.memory_space<vmem>>, %arg4: memref<1x128xf32, #tpu.memory_space<vmem>>, %arg5: memref<1x128xf32, #tpu.memory_space<vmem>>, %arg6: memref<2048x64xbf16, #tpu.memory_space<vmem>>, %arg7: memref<1x64xf32, #tpu.memory_space<vmem>>, %arg8: memref<1x64xf32, #tpu.memory_space<vmem>>, %arg9: memref<1x64xf32, #tpu.memory_space<vmem>>, %arg10: memref<64x128xbf16, #tpu.memory_space<vmem>>, %arg11: memref<1x128xf32, #tpu.memory_space<vmem>>, %arg12: memref<8x128xf32, #tpu.memory_space<vmem>>) attributes {dimension_semantics = [#tpu.dimension_semantics<arbitrary>], iteration_bounds = array<i64: 1>, scalar_prefetch = 0 : i64, scratch_operands = 0 : i64, tpu.core_type = #tpu.core_type<tc>, window_params = [{pipeline_mode = #tpu.pipeline_mode<synchronous>, transform_indices = @transform_0, window_bounds = array<i64: 64, 4096>}, {pipeline_mode = #tpu.pipeline_mode<synchronous>, transform_indices = @transform_1, window_bounds = array<i64: 4096, 128>}, {pipeline_mode = #tpu.pipeline_mode<synchronous>, transform_indices = @transform_2, window_bounds = array<i64: 1, 128>}, {pipeline_mode = #tpu.pipeline_mode<synchronous>, transform_indices = @transform_3, window_bounds = array<i64: 1, 128>}, {pipeline_mode = #tpu.pipeline_mode<synchronous>, transform_indices = @transform_4, window_bounds = array<i64: 1, 128>}, {pipeline_mode = #tpu.pipeline_mode<synchronous>, transform_indices = @transform_5, window_bounds = array<i64: 2048, 64>}, {pipeline_mode = #tpu.pipeline_mode<synchronous>, transform_indices = @transform_6, window_bounds = array<i64: 1, 64>}, {pipeline_mode = #tpu.pipeline_mode<synchronous>, transform_indices = @transform_7, window_bounds = array<i64: 1, 64>}, {pipeline_mode = #tpu.pipeline_mode<synchronous>, transform_indices = @transform_8, window_bounds = array<i64: 1, 64>}, {pipeline_mode = #tpu.pipeline_mode<synchronous>, transform_indices = @transform_9, window_bounds = array<i64: 64, 128>}, {pipeline_mode = #tpu.pipeline_mode<synchronous>, transform_indices = @transform_10, window_bounds = array<i64: 1, 128>}, {pipeline_mode = #tpu.pipeline_mode<synchronous>, transform_indices = @transform_11, window_bounds = array<i64: 8, 128>}]} {
    %c0 = arith.constant 0 : index
    %c0_0 = arith.constant 0 : index
    %0 = vector.load %arg1[%c0, %c0_0] : memref<64x4096xbf16, #tpu.memory_space<vmem>>, vector<64x4096xbf16>
    %c0_1 = arith.constant 0 : index
    %c0_2 = arith.constant 0 : index
    %1 = vector.load %arg2[%c0_1, %c0_2] : memref<4096x128xbf16, #tpu.memory_space<vmem>>, vector<4096x128xbf16>
    %cst = arith.constant dense<0.000000e+00> : vector<64x128xf32>
    %2 = tpu.matmul %0, %1, %cst {dimension_numbers = #tpu.dot_dimension_numbers<[1], [0], [0], [1], [0, 0, 1, 1], [], []>} : vector<64x4096xbf16>, vector<4096x128xbf16>, vector<64x128xf32> -> vector<64x128xf32>
    %c0_3 = arith.constant 0 : index
    %c0_4 = arith.constant 0 : index
    %3 = vector.load %arg3[%c0_3, %c0_4] : memref<1x128xf32, #tpu.memory_space<vmem>>, vector<1x128xf32>
    %4 = vector.broadcast %3 : vector<1x128xf32> to vector<64x128xf32>
    %5 = arith.addf %2, %4 : vector<64x128xf32>
    %cst_5 = arith.constant dense<0.000000e+00> : vector<128xf32>
    %6 = vector.multi_reduction <add>, %5, %cst_5 [0] : vector<64x128xf32> to vector<128xf32>
    %7 = vector.shape_cast %6 : vector<128xf32> to vector<1x128xf32>
    %cst_6 = arith.constant 6.400000e+01 : f32
    %8 = vector.broadcast %cst_6 : f32 to vector<1x128xf32>
    %9 = arith.divf %7, %8 : vector<1x128xf32>
    %10 = vector.broadcast %9 : vector<1x128xf32> to vector<64x128xf32>
    %11 = arith.subf %5, %10 : vector<64x128xf32>
    %12 = arith.mulf %11, %11 : vector<64x128xf32>
    %cst_7 = arith.constant dense<0.000000e+00> : vector<128xf32>
    %13 = vector.multi_reduction <add>, %12, %cst_7 [0] : vector<64x128xf32> to vector<128xf32>
    %14 = vector.shape_cast %13 : vector<128xf32> to vector<1x128xf32>
    %cst_8 = arith.constant 6.400000e+01 : f32
    %15 = vector.broadcast %cst_8 : f32 to vector<1x128xf32>
    %16 = arith.divf %14, %15 : vector<1x128xf32>
    %c0_9 = arith.constant 0 : index
    %c0_10 = arith.constant 0 : index
    %17 = vector.load %arg4[%c0_9, %c0_10] : memref<1x128xf32, #tpu.memory_space<vmem>>, vector<1x128xf32>
    %cst_11 = arith.constant 9.99999974E-6 : f32
    %18 = vector.broadcast %cst_11 : f32 to vector<1x128xf32>
    %19 = arith.addf %16, %18 : vector<1x128xf32>
    %20 = math.rsqrt %19 : vector<1x128xf32>
    %21 = arith.mulf %17, %20 : vector<1x128xf32>
    %c0_12 = arith.constant 0 : index
    %c0_13 = arith.constant 0 : index
    %22 = vector.load %arg5[%c0_12, %c0_13] : memref<1x128xf32, #tpu.memory_space<vmem>>, vector<1x128xf32>
    %23 = arith.mulf %9, %21 : vector<1x128xf32>
    %24 = arith.subf %22, %23 : vector<1x128xf32>
    %25 = vector.broadcast %21 : vector<1x128xf32> to vector<64x128xf32>
    %26 = arith.mulf %5, %25 : vector<64x128xf32>
    %27 = vector.broadcast %24 : vector<1x128xf32> to vector<64x128xf32>
    %28 = arith.addf %26, %27 : vector<64x128xf32>
    %cst_14 = arith.constant 0.000000e+00 : f32
    %29 = vector.broadcast %cst_14 : f32 to vector<64x128xf32>
    %30 = arith.cmpf ogt, %28, %29 : vector<64x128xf32>
    %cst_15 = arith.constant 2.000000e-01 : f32
    %31 = vector.broadcast %cst_15 : f32 to vector<64x128xf32>
    %32 = arith.mulf %31, %28 : vector<64x128xf32>
    %33 = arith.select %30, %28, %32 : vector<64x128xi1>, vector<64x128xf32>
    %cst_16 = arith.constant 0.000000e+00 : f32
    %34 = vector.broadcast %cst_16 : f32 to vector<4x64xf32>
    %35 = vector.extract_strided_slice %33 {offsets = [0, 0], sizes = [4, 128], strides = [1, 1]} : vector<64x128xf32> to vector<4x128xf32>
    %36 = arith.truncf %35 : vector<4x128xf32> to vector<4x128xbf16>
    %c0_17 = arith.constant 0 : index
    %c0_18 = arith.constant 0 : index
    %37 = vector.load %arg6[%c0_17, %c0_18] : memref<2048x64xbf16, #tpu.memory_space<vmem>>, vector<128x64xbf16>
    %cst_19 = arith.constant dense<0.000000e+00> : vector<4x64xf32>
    %38 = tpu.matmul %36, %37, %cst_19 {dimension_numbers = #tpu.dot_dimension_numbers<[1], [0], [0], [1], [0, 0, 1, 1], [], []>} : vector<4x128xbf16>, vector<128x64xbf16>, vector<4x64xf32> -> vector<4x64xf32>
    %39 = arith.addf %34, %38 : vector<4x64xf32>
    %40 = vector.extract_strided_slice %33 {offsets = [4, 0], sizes = [4, 128], strides = [1, 1]} : vector<64x128xf32> to vector<4x128xf32>
    %41 = arith.truncf %40 : vector<4x128xf32> to vector<4x128xbf16>
    %c128 = arith.constant 128 : index
    %c0_20 = arith.constant 0 : index
    %42 = vector.load %arg6[%c128, %c0_20] : memref<2048x64xbf16, #tpu.memory_space<vmem>>, vector<128x64xbf16>
    %cst_21 = arith.constant dense<0.000000e+00> : vector<4x64xf32>
    %43 = tpu.matmul %41, %42, %cst_21 {dimension_numbers = #tpu.dot_dimension_numbers<[1], [0], [0], [1], [0, 0, 1, 1], [], []>} : vector<4x128xbf16>, vector<128x64xbf16>, vector<4x64xf32> -> vector<4x64xf32>
    %44 = arith.addf %39, %43 : vector<4x64xf32>
    %45 = vector.extract_strided_slice %33 {offsets = [8, 0], sizes = [4, 128], strides = [1, 1]} : vector<64x128xf32> to vector<4x128xf32>
    %46 = arith.truncf %45 : vector<4x128xf32> to vector<4x128xbf16>
    %c256 = arith.constant 256 : index
    %c0_22 = arith.constant 0 : index
    %47 = vector.load %arg6[%c256, %c0_22] : memref<2048x64xbf16, #tpu.memory_space<vmem>>, vector<128x64xbf16>
    %cst_23 = arith.constant dense<0.000000e+00> : vector<4x64xf32>
    %48 = tpu.matmul %46, %47, %cst_23 {dimension_numbers = #tpu.dot_dimension_numbers<[1], [0], [0], [1], [0, 0, 1, 1], [], []>} : vector<4x128xbf16>, vector<128x64xbf16>, vector<4x64xf32> -> vector<4x64xf32>
    %49 = arith.addf %44, %48 : vector<4x64xf32>
    %50 = vector.extract_strided_slice %33 {offsets = [12, 0], sizes = [4, 128], strides = [1, 1]} : vector<64x128xf32> to vector<4x128xf32>
    %51 = arith.truncf %50 : vector<4x128xf32> to vector<4x128xbf16>
    %c384 = arith.constant 384 : index
    %c0_24 = arith.constant 0 : index
    %52 = vector.load %arg6[%c384, %c0_24] : memref<2048x64xbf16, #tpu.memory_space<vmem>>, vector<128x64xbf16>
    %cst_25 = arith.constant dense<0.000000e+00> : vector<4x64xf32>
    %53 = tpu.matmul %51, %52, %cst_25 {dimension_numbers = #tpu.dot_dimension_numbers<[1], [0], [0], [1], [0, 0, 1, 1], [], []>} : vector<4x128xbf16>, vector<128x64xbf16>, vector<4x64xf32> -> vector<4x64xf32>
    %54 = arith.addf %49, %53 : vector<4x64xf32>
    %55 = vector.extract_strided_slice %33 {offsets = [16, 0], sizes = [4, 128], strides = [1, 1]} : vector<64x128xf32> to vector<4x128xf32>
    %56 = arith.truncf %55 : vector<4x128xf32> to vector<4x128xbf16>
    %c512 = arith.constant 512 : index
    %c0_26 = arith.constant 0 : index
    %57 = vector.load %arg6[%c512, %c0_26] : memref<2048x64xbf16, #tpu.memory_space<vmem>>, vector<128x64xbf16>
    %cst_27 = arith.constant dense<0.000000e+00> : vector<4x64xf32>
    %58 = tpu.matmul %56, %57, %cst_27 {dimension_numbers = #tpu.dot_dimension_numbers<[1], [0], [0], [1], [0, 0, 1, 1], [], []>} : vector<4x128xbf16>, vector<128x64xbf16>, vector<4x64xf32> -> vector<4x64xf32>
    %59 = arith.addf %54, %58 : vector<4x64xf32>
    %60 = vector.extract_strided_slice %33 {offsets = [20, 0], sizes = [4, 128], strides = [1, 1]} : vector<64x128xf32> to vector<4x128xf32>
    %61 = arith.truncf %60 : vector<4x128xf32> to vector<4x128xbf16>
    %c640 = arith.constant 640 : index
    %c0_28 = arith.constant 0 : index
    %62 = vector.load %arg6[%c640, %c0_28] : memref<2048x64xbf16, #tpu.memory_space<vmem>>, vector<128x64xbf16>
    %cst_29 = arith.constant dense<0.000000e+00> : vector<4x64xf32>
    %63 = tpu.matmul %61, %62, %cst_29 {dimension_numbers = #tpu.dot_dimension_numbers<[1], [0], [0], [1], [0, 0, 1, 1], [], []>} : vector<4x128xbf16>, vector<128x64xbf16>, vector<4x64xf32> -> vector<4x64xf32>
    %64 = arith.addf %59, %63 : vector<4x64xf32>
    %65 = vector.extract_strided_slice %33 {offsets = [24, 0], sizes = [4, 128], strides = [1, 1]} : vector<64x128xf32> to vector<4x128xf32>
    %66 = arith.truncf %65 : vector<4x128xf32> to vector<4x128xbf16>
    %c768 = arith.constant 768 : index
    %c0_30 = arith.constant 0 : index
    %67 = vector.load %arg6[%c768, %c0_30] : memref<2048x64xbf16, #tpu.memory_space<vmem>>, vector<128x64xbf16>
    %cst_31 = arith.constant dense<0.000000e+00> : vector<4x64xf32>
    %68 = tpu.matmul %66, %67, %cst_31 {dimension_numbers = #tpu.dot_dimension_numbers<[1], [0], [0], [1], [0, 0, 1, 1], [], []>} : vector<4x128xbf16>, vector<128x64xbf16>, vector<4x64xf32> -> vector<4x64xf32>
    %69 = arith.addf %64, %68 : vector<4x64xf32>
    %70 = vector.extract_strided_slice %33 {offsets = [28, 0], sizes = [4, 128], strides = [1, 1]} : vector<64x128xf32> to vector<4x128xf32>
    %71 = arith.truncf %70 : vector<4x128xf32> to vector<4x128xbf16>
    %c896 = arith.constant 896 : index
    %c0_32 = arith.constant 0 : index
    %72 = vector.load %arg6[%c896, %c0_32] : memref<2048x64xbf16, #tpu.memory_space<vmem>>, vector<128x64xbf16>
    %cst_33 = arith.constant dense<0.000000e+00> : vector<4x64xf32>
    %73 = tpu.matmul %71, %72, %cst_33 {dimension_numbers = #tpu.dot_dimension_numbers<[1], [0], [0], [1], [0, 0, 1, 1], [], []>} : vector<4x128xbf16>, vector<128x64xbf16>, vector<4x64xf32> -> vector<4x64xf32>
    %74 = arith.addf %69, %73 : vector<4x64xf32>
    %75 = vector.extract_strided_slice %33 {offsets = [32, 0], sizes = [4, 128], strides = [1, 1]} : vector<64x128xf32> to vector<4x128xf32>
    %76 = arith.truncf %75 : vector<4x128xf32> to vector<4x128xbf16>
    %c1024 = arith.constant 1024 : index
    %c0_34 = arith.constant 0 : index
    %77 = vector.load %arg6[%c1024, %c0_34] : memref<2048x64xbf16, #tpu.memory_space<vmem>>, vector<128x64xbf16>
    %cst_35 = arith.constant dense<0.000000e+00> : vector<4x64xf32>
    %78 = tpu.matmul %76, %77, %cst_35 {dimension_numbers = #tpu.dot_dimension_numbers<[1], [0], [0], [1], [0, 0, 1, 1], [], []>} : vector<4x128xbf16>, vector<128x64xbf16>, vector<4x64xf32> -> vector<4x64xf32>
    %79 = arith.addf %74, %78 : vector<4x64xf32>
    %80 = vector.extract_strided_slice %33 {offsets = [36, 0], sizes = [4, 128], strides = [1, 1]} : vector<64x128xf32> to vector<4x128xf32>
    %81 = arith.truncf %80 : vector<4x128xf32> to vector<4x128xbf16>
    %c1152 = arith.constant 1152 : index
    %c0_36 = arith.constant 0 : index
    %82 = vector.load %arg6[%c1152, %c0_36] : memref<2048x64xbf16, #tpu.memory_space<vmem>>, vector<128x64xbf16>
    %cst_37 = arith.constant dense<0.000000e+00> : vector<4x64xf32>
    %83 = tpu.matmul %81, %82, %cst_37 {dimension_numbers = #tpu.dot_dimension_numbers<[1], [0], [0], [1], [0, 0, 1, 1], [], []>} : vector<4x128xbf16>, vector<128x64xbf16>, vector<4x64xf32> -> vector<4x64xf32>
    %84 = arith.addf %79, %83 : vector<4x64xf32>
    %85 = vector.extract_strided_slice %33 {offsets = [40, 0], sizes = [4, 128], strides = [1, 1]} : vector<64x128xf32> to vector<4x128xf32>
    %86 = arith.truncf %85 : vector<4x128xf32> to vector<4x128xbf16>
    %c1280 = arith.constant 1280 : index
    %c0_38 = arith.constant 0 : index
    %87 = vector.load %arg6[%c1280, %c0_38] : memref<2048x64xbf16, #tpu.memory_space<vmem>>, vector<128x64xbf16>
    %cst_39 = arith.constant dense<0.000000e+00> : vector<4x64xf32>
    %88 = tpu.matmul %86, %87, %cst_39 {dimension_numbers = #tpu.dot_dimension_numbers<[1], [0], [0], [1], [0, 0, 1, 1], [], []>} : vector<4x128xbf16>, vector<128x64xbf16>, vector<4x64xf32> -> vector<4x64xf32>
    %89 = arith.addf %84, %88 : vector<4x64xf32>
    %90 = vector.extract_strided_slice %33 {offsets = [44, 0], sizes = [4, 128], strides = [1, 1]} : vector<64x128xf32> to vector<4x128xf32>
    %91 = arith.truncf %90 : vector<4x128xf32> to vector<4x128xbf16>
    %c1408 = arith.constant 1408 : index
    %c0_40 = arith.constant 0 : index
    %92 = vector.load %arg6[%c1408, %c0_40] : memref<2048x64xbf16, #tpu.memory_space<vmem>>, vector<128x64xbf16>
    %cst_41 = arith.constant dense<0.000000e+00> : vector<4x64xf32>
    %93 = tpu.matmul %91, %92, %cst_41 {dimension_numbers = #tpu.dot_dimension_numbers<[1], [0], [0], [1], [0, 0, 1, 1], [], []>} : vector<4x128xbf16>, vector<128x64xbf16>, vector<4x64xf32> -> vector<4x64xf32>
    %94 = arith.addf %89, %93 : vector<4x64xf32>
    %95 = vector.extract_strided_slice %33 {offsets = [48, 0], sizes = [4, 128], strides = [1, 1]} : vector<64x128xf32> to vector<4x128xf32>
    %96 = arith.truncf %95 : vector<4x128xf32> to vector<4x128xbf16>
    %c1536 = arith.constant 1536 : index
    %c0_42 = arith.constant 0 : index
    %97 = vector.load %arg6[%c1536, %c0_42] : memref<2048x64xbf16, #tpu.memory_space<vmem>>, vector<128x64xbf16>
    %cst_43 = arith.constant dense<0.000000e+00> : vector<4x64xf32>
    %98 = tpu.matmul %96, %97, %cst_43 {dimension_numbers = #tpu.dot_dimension_numbers<[1], [0], [0], [1], [0, 0, 1, 1], [], []>} : vector<4x128xbf16>, vector<128x64xbf16>, vector<4x64xf32> -> vector<4x64xf32>
    %99 = arith.addf %94, %98 : vector<4x64xf32>
    %100 = vector.extract_strided_slice %33 {offsets = [52, 0], sizes = [4, 128], strides = [1, 1]} : vector<64x128xf32> to vector<4x128xf32>
    %101 = arith.truncf %100 : vector<4x128xf32> to vector<4x128xbf16>
    %c1664 = arith.constant 1664 : index
    %c0_44 = arith.constant 0 : index
    %102 = vector.load %arg6[%c1664, %c0_44] : memref<2048x64xbf16, #tpu.memory_space<vmem>>, vector<128x64xbf16>
    %cst_45 = arith.constant dense<0.000000e+00> : vector<4x64xf32>
    %103 = tpu.matmul %101, %102, %cst_45 {dimension_numbers = #tpu.dot_dimension_numbers<[1], [0], [0], [1], [0, 0, 1, 1], [], []>} : vector<4x128xbf16>, vector<128x64xbf16>, vector<4x64xf32> -> vector<4x64xf32>
    %104 = arith.addf %99, %103 : vector<4x64xf32>
    %105 = vector.extract_strided_slice %33 {offsets = [56, 0], sizes = [4, 128], strides = [1, 1]} : vector<64x128xf32> to vector<4x128xf32>
    %106 = arith.truncf %105 : vector<4x128xf32> to vector<4x128xbf16>
    %c1792 = arith.constant 1792 : index
    %c0_46 = arith.constant 0 : index
    %107 = vector.load %arg6[%c1792, %c0_46] : memref<2048x64xbf16, #tpu.memory_space<vmem>>, vector<128x64xbf16>
    %cst_47 = arith.constant dense<0.000000e+00> : vector<4x64xf32>
    %108 = tpu.matmul %106, %107, %cst_47 {dimension_numbers = #tpu.dot_dimension_numbers<[1], [0], [0], [1], [0, 0, 1, 1], [], []>} : vector<4x128xbf16>, vector<128x64xbf16>, vector<4x64xf32> -> vector<4x64xf32>
    %109 = arith.addf %104, %108 : vector<4x64xf32>
    %110 = vector.extract_strided_slice %33 {offsets = [60, 0], sizes = [4, 128], strides = [1, 1]} : vector<64x128xf32> to vector<4x128xf32>
    %111 = arith.truncf %110 : vector<4x128xf32> to vector<4x128xbf16>
    %c1920 = arith.constant 1920 : index
    %c0_48 = arith.constant 0 : index
    %112 = vector.load %arg6[%c1920, %c0_48] : memref<2048x64xbf16, #tpu.memory_space<vmem>>, vector<128x64xbf16>
    %cst_49 = arith.constant dense<0.000000e+00> : vector<4x64xf32>
    %113 = tpu.matmul %111, %112, %cst_49 {dimension_numbers = #tpu.dot_dimension_numbers<[1], [0], [0], [1], [0, 0, 1, 1], [], []>} : vector<4x128xbf16>, vector<128x64xbf16>, vector<4x64xf32> -> vector<4x64xf32>
    %114 = arith.addf %109, %113 : vector<4x64xf32>
    %c0_50 = arith.constant 0 : index
    %c0_51 = arith.constant 0 : index
    %115 = vector.load %arg7[%c0_50, %c0_51] : memref<1x64xf32, #tpu.memory_space<vmem>>, vector<1x64xf32>
    %116 = vector.broadcast %115 : vector<1x64xf32> to vector<4x64xf32>
    %117 = arith.addf %114, %116 : vector<4x64xf32>
    %cst_52 = arith.constant dense<0.000000e+00> : vector<64xf32>
    %118 = vector.multi_reduction <add>, %117, %cst_52 [0] : vector<4x64xf32> to vector<64xf32>
    %119 = vector.shape_cast %118 : vector<64xf32> to vector<1x64xf32>
    %cst_53 = arith.constant 4.000000e+00 : f32
    %120 = vector.broadcast %cst_53 : f32 to vector<1x64xf32>
    %121 = arith.divf %119, %120 : vector<1x64xf32>
    %122 = vector.broadcast %121 : vector<1x64xf32> to vector<4x64xf32>
    %123 = arith.subf %117, %122 : vector<4x64xf32>
    %124 = arith.mulf %123, %123 : vector<4x64xf32>
    %cst_54 = arith.constant dense<0.000000e+00> : vector<64xf32>
    %125 = vector.multi_reduction <add>, %124, %cst_54 [0] : vector<4x64xf32> to vector<64xf32>
    %126 = vector.shape_cast %125 : vector<64xf32> to vector<1x64xf32>
    %cst_55 = arith.constant 4.000000e+00 : f32
    %127 = vector.broadcast %cst_55 : f32 to vector<1x64xf32>
    %128 = arith.divf %126, %127 : vector<1x64xf32>
    %c0_56 = arith.constant 0 : index
    %c0_57 = arith.constant 0 : index
    %129 = vector.load %arg8[%c0_56, %c0_57] : memref<1x64xf32, #tpu.memory_space<vmem>>, vector<1x64xf32>
    %cst_58 = arith.constant 9.99999974E-6 : f32
    %130 = vector.broadcast %cst_58 : f32 to vector<1x64xf32>
    %131 = arith.addf %128, %130 : vector<1x64xf32>
    %132 = math.rsqrt %131 : vector<1x64xf32>
    %133 = arith.mulf %129, %132 : vector<1x64xf32>
    %c0_59 = arith.constant 0 : index
    %c0_60 = arith.constant 0 : index
    %134 = vector.load %arg9[%c0_59, %c0_60] : memref<1x64xf32, #tpu.memory_space<vmem>>, vector<1x64xf32>
    %135 = arith.mulf %121, %133 : vector<1x64xf32>
    %136 = arith.subf %134, %135 : vector<1x64xf32>
    %137 = vector.broadcast %133 : vector<1x64xf32> to vector<4x64xf32>
    %138 = arith.mulf %117, %137 : vector<4x64xf32>
    %139 = vector.broadcast %136 : vector<1x64xf32> to vector<4x64xf32>
    %140 = arith.addf %138, %139 : vector<4x64xf32>
    %cst_61 = arith.constant 0.000000e+00 : f32
    %141 = vector.broadcast %cst_61 : f32 to vector<4x64xf32>
    %142 = arith.cmpf ogt, %140, %141 : vector<4x64xf32>
    %cst_62 = arith.constant 2.000000e-01 : f32
    %143 = vector.broadcast %cst_62 : f32 to vector<4x64xf32>
    %144 = arith.mulf %143, %140 : vector<4x64xf32>
    %145 = arith.select %142, %140, %144 : vector<4x64xi1>, vector<4x64xf32>
    %cst_63 = arith.constant 0.000000e+00 : f32
    %146 = vector.broadcast %cst_63 : f32 to vector<4x64xf32>
    %147 = tpu.concatenate %145, %146 in 0 : vector<4x64xf32>, vector<4x64xf32> -> vector<8x64xf32>
    %148 = arith.truncf %147 : vector<8x64xf32> to vector<8x64xbf16>
    %c0_64 = arith.constant 0 : index
    %c0_65 = arith.constant 0 : index
    %149 = vector.load %arg10[%c0_64, %c0_65] : memref<64x128xbf16, #tpu.memory_space<vmem>>, vector<64x128xbf16>
    %cst_66 = arith.constant dense<0.000000e+00> : vector<8x128xf32>
    %150 = tpu.matmul %148, %149, %cst_66 {dimension_numbers = #tpu.dot_dimension_numbers<[1], [0], [0], [1], [0, 0, 1, 1], [], []>} : vector<8x64xbf16>, vector<64x128xbf16>, vector<8x128xf32> -> vector<8x128xf32>
    %c0_67 = arith.constant 0 : index
    %c0_68 = arith.constant 0 : index
    %151 = vector.load %arg11[%c0_67, %c0_68] : memref<1x128xf32, #tpu.memory_space<vmem>>, vector<1x128xf32>
    %152 = vector.broadcast %151 : vector<1x128xf32> to vector<8x128xf32>
    %153 = arith.addf %150, %152 : vector<8x128xf32>
    %c0_69 = arith.constant 0 : index
    %c0_70 = arith.constant 0 : index
    %154 = vector.load %arg12[%c0_69, %c0_70] : memref<8x128xf32, #tpu.memory_space<vmem>>, vector<8x128xf32>
    tpu.vector_store %arg12[%c0_69, %c0_70], %153 {strides = array<i32>} : memref<8x128xf32, #tpu.memory_space<vmem>>, vector<8x128xf32>,
    return
  }
  func.func @transform_0(%arg0: i32) -> (i32, i32) {
    %c0_i32 = arith.constant 0 : i32
    %c0_i32_0 = arith.constant 0 : i32
    %c0_i32_1 = arith.constant 0 : i32
    return %c0_i32, %c0_i32_0 : i32, i32
  }
  func.func @transform_1(%arg0: i32) -> (i32, i32) {
    %c0_i32 = arith.constant 0 : i32
    %c0_i32_0 = arith.constant 0 : i32
    %c0_i32_1 = arith.constant 0 : i32
    return %c0_i32, %c0_i32_0 : i32, i32
  }
  func.func @transform_2(%arg0: i32) -> (i32, i32) {
    %c0_i32 = arith.constant 0 : i32
    %c0_i32_0 = arith.constant 0 : i32
    %c0_i32_1 = arith.constant 0 : i32
    return %c0_i32, %c0_i32_0 : i32, i32
  }
  func.func @transform_3(%arg0: i32) -> (i32, i32) {
    %c0_i32 = arith.constant 0 : i32
    %c0_i32_0 = arith.constant 0 : i32
    %c0_i32_1 = arith.constant 0 : i32
    return %c0_i32, %c0_i32_0 : i32, i32
  }
  func.func @transform_4(%arg0: i32) -> (i32, i32) {
    %c0_i32 = arith.constant 0 : i32
    %c0_i32_0 = arith.constant 0 : i32
    %c0_i32_1 = arith.constant 0 : i32
    return %c0_i32, %c0_i32_0 : i32, i32
  }
  func.func @transform_5(%arg0: i32) -> (i32, i32) {
    %c0_i32 = arith.constant 0 : i32
    %c0_i32_0 = arith.constant 0 : i32
    %c0_i32_1 = arith.constant 0 : i32
    return %c0_i32, %c0_i32_0 : i32, i32
  }
  func.func @transform_6(%arg0: i32) -> (i32, i32) {
    %c0_i32 = arith.constant 0 : i32
    %c0_i32_0 = arith.constant 0 : i32
    %c0_i32_1 = arith.constant 0 : i32
    return %c0_i32, %c0_i32_0 : i32, i32
  }
  func.func @transform_7(%arg0: i32) -> (i32, i32) {
    %c0_i32 = arith.constant 0 : i32
    %c0_i32_0 = arith.constant 0 : i32
    %c0_i32_1 = arith.constant 0 : i32
    return %c0_i32, %c0_i32_0 : i32, i32
  }
  func.func @transform_8(%arg0: i32) -> (i32, i32) {
    %c0_i32 = arith.constant 0 : i32
    %c0_i32_0 = arith.constant 0 : i32
    %c0_i32_1 = arith.constant 0 : i32
    return %c0_i32, %c0_i32_0 : i32, i32
  }
  func.func @transform_9(%arg0: i32) -> (i32, i32) {
    %c0_i32 = arith.constant 0 : i32
    %c0_i32_0 = arith.constant 0 : i32
    %c0_i32_1 = arith.constant 0 : i32
    return %c0_i32, %c0_i32_0 : i32, i32
  }
  func.func @transform_10(%arg0: i32) -> (i32, i32) {
    %c0_i32 = arith.constant 0 : i32
    %c0_i32_0 = arith.constant 0 : i32
    %c0_i32_1 = arith.constant 0 : i32
    return %c0_i32, %c0_i32_0 : i32, i32
  }
  func.func @transform_11(%arg0: i32) -> (i32, i32) {
    %c0_i32 = arith.constant 0 : i32
    %c0_i32_0 = arith.constant 0 : i32
    %c0_i32_1 = arith.constant 0 : i32
    return %c0_i32, %c0_i32_0 : i32, i32
  }
}

</mosaic_0001>

<llo_original>
// kernel: auxiliary_network_forward.1
$region0: #{auxiliary_network_forward.1}
  #allocation0 [shape = 'u32[]', space=smem, size = 0x4, offset = 0x4, fixed_abs, tag = 'smem constant byte address 0x4 - core index']
  #allocation1 [shape = 'u32[144,128]{1,0:T(1,128)}', space=vmem, size = 0x12000, scoped, tag = 'internal scratch']
  %s0 = inlined_call_operand.vmem [shape: bf16[64,4096], index: 0, kind: input, shape index: {}]
  %s1 = inlined_call_operand.vmem [shape: bf16[4096,128], index: 1, kind: input, shape index: {}]
  %s2 = inlined_call_operand.vmem [shape: f32[1,128], index: 2, kind: input, shape index: {}]
  %s3 = inlined_call_operand.vmem [shape: f32[1,128], index: 3, kind: input, shape index: {}]
  %s4 = inlined_call_operand.vmem [shape: f32[1,128], index: 4, kind: input, shape index: {}]
  %s5 = inlined_call_operand.vmem [shape: bf16[2048,64], index: 5, kind: input, shape index: {}]
  %s6 = inlined_call_operand.vmem [shape: f32[1,64], index: 6, kind: input, shape index: {}]
  %s7 = inlined_call_operand.vmem [shape: f32[1,64], index: 7, kind: input, shape index: {}]
  %s8 = inlined_call_operand.vmem [shape: f32[1,64], index: 8, kind: input, shape index: {}]
  %s9 = inlined_call_operand.vmem [shape: bf16[64,128], index: 9, kind: input, shape index: {}]
  %s10 = inlined_call_operand.vmem [shape: f32[1,128], index: 10, kind: input, shape index: {}]
  %s11 = inlined_call_operand.vmem [shape: f32[8,128], index: 11, kind: output, shape index: {}]
  %s12 = sld [smem:[#allocation0]]
  $region54: #{auxiliary_network_forward.1} parent=0
    _
  %s14 = ssub.s32 1, %s12
  %s15 = scalar_select 0, %s14, %s12
  // Predicated region
  $region2: #{auxiliary_network_forward.1} parent=0 // pred_check
    _
  $region3: #{auxiliary_network_forward.1} parent=0 // pred_check_branch
    %17 = sbr.rel (0) target = $region5
  $region4: #{auxiliary_network_forward.1} parent=0 // pred_region
    _
  $region5: #{auxiliary_network_forward.1} parent=0 // pred_fallthru
    _
  // Predicated region
  $region6: #{auxiliary_network_forward.1} parent=0 // pred_check
    _
  $region7: #{auxiliary_network_forward.1} parent=0 // pred_check_branch
    %19 = sbr.rel (0) target = $region9
  $region8: #{auxiliary_network_forward.1} parent=0 // pred_region
    _
  $region9: #{auxiliary_network_forward.1} parent=0 // pred_fallthru
    _
  // Predicated region
  $region10: #{auxiliary_network_forward.1} parent=0 // pred_check
    _
  $region11: #{auxiliary_network_forward.1} parent=0 // pred_check_branch
    %21 = sbr.rel (0) target = $region13
  $region12: #{auxiliary_network_forward.1} parent=0 // pred_region
    _
  $region13: #{auxiliary_network_forward.1} parent=0 // pred_fallthru
    _
  // Predicated region
  $region14: #{auxiliary_network_forward.1} parent=0 // pred_check
    _
  $region15: #{auxiliary_network_forward.1} parent=0 // pred_check_branch
    %23 = sbr.rel (0) target = $region17
  $region16: #{auxiliary_network_forward.1} parent=0 // pred_region
    _
  $region17: #{auxiliary_network_forward.1} parent=0 // pred_fallthru
    _
  // Predicated region
  $region18: #{auxiliary_network_forward.1} parent=0 // pred_check
    _
  $region19: #{auxiliary_network_forward.1} parent=0 // pred_check_branch
    %25 = sbr.rel (0) target = $region21
  $region20: #{auxiliary_network_forward.1} parent=0 // pred_region
    _
  $region21: #{auxiliary_network_forward.1} parent=0 // pred_fallthru
    _
  // Predicated region
  $region22: #{auxiliary_network_forward.1} parent=0 // pred_check
    _
  $region23: #{auxiliary_network_forward.1} parent=0 // pred_check_branch
    %27 = sbr.rel (0) target = $region25
  $region24: #{auxiliary_network_forward.1} parent=0 // pred_region
    _
  $region25: #{auxiliary_network_forward.1} parent=0 // pred_fallthru
    _
  // Predicated region
  $region26: #{auxiliary_network_forward.1} parent=0 // pred_check
    _
  $region27: #{auxiliary_network_forward.1} parent=0 // pred_check_branch
    %29 = sbr.rel (0) target = $region29
  $region28: #{auxiliary_network_forward.1} parent=0 // pred_region
    _
  $region29: #{auxiliary_network_forward.1} parent=0 // pred_fallthru
    _
  // Predicated region
  $region30: #{auxiliary_network_forward.1} parent=0 // pred_check
    _
  $region31: #{auxiliary_network_forward.1} parent=0 // pred_check_branch
    %31 = sbr.rel (0) target = $region33
  $region32: #{auxiliary_network_forward.1} parent=0 // pred_region
    _
  $region33: #{auxiliary_network_forward.1} parent=0 // pred_fallthru
    _
  // Predicated region
  $region34: #{auxiliary_network_forward.1} parent=0 // pred_check
    _
  $region35: #{auxiliary_network_forward.1} parent=0 // pred_check_branch
    %33 = sbr.rel (0) target = $region37
  $region36: #{auxiliary_network_forward.1} parent=0 // pred_region
    _
  $region37: #{auxiliary_network_forward.1} parent=0 // pred_fallthru
    _
  // Predicated region
  $region38: #{auxiliary_network_forward.1} parent=0 // pred_check
    _
  $region39: #{auxiliary_network_forward.1} parent=0 // pred_check_branch
    %35 = sbr.rel (0) target = $region41
  $region40: #{auxiliary_network_forward.1} parent=0 // pred_region
    _
  $region41: #{auxiliary_network_forward.1} parent=0 // pred_fallthru
    _
  // Predicated region
  $region42: #{auxiliary_network_forward.1} parent=0 // pred_check
    _
  $region43: #{auxiliary_network_forward.1} parent=0 // pred_check_branch
    %37 = sbr.rel (0) target = $region45
  $region44: #{auxiliary_network_forward.1} parent=0 // pred_region
    _
  $region45: #{auxiliary_network_forward.1} parent=0 // pred_fallthru
    _
  %v39 = vld [vmem:[%s0] sm:$0xff]
  %v40 = vld [vmem:[%s0 + $0x8] sm:$0xff]
  %v41 = vld [vmem:[%s0 + $0x10] sm:$0xff]
  %v42 = vld [vmem:[%s0 + $0x18] sm:$0xff]
  %v43 = vld [vmem:[%s0 + $0x20] sm:$0xff]
  %v44 = vld [vmem:[%s0 + $0x28] sm:$0xff]
  %v45 = vld [vmem:[%s0 + $0x30] sm:$0xff]
  %v46 = vld [vmem:[%s0 + $0x38] sm:$0xff]
  %v47 = vld [vmem:[%s0 + $0x40] sm:$0xff]
  %v48 = vld [vmem:[%s0 + $0x48] sm:$0xff]
  %v49 = vld [vmem:[%s0 + $0x50] sm:$0xff]
  %v50 = vld [vmem:[%s0 + $0x58] sm:$0xff]
  %v51 = vld [vmem:[%s0 + $0x60] sm:$0xff]
  %v52 = vld [vmem:[%s0 + $0x68] sm:$0xff]
  %v53 = vld [vmem:[%s0 + $0x70] sm:$0xff]
  %v54 = vld [vmem:[%s0 + $0x78] sm:$0xff]
  %v55 = vld [vmem:[%s0 + $0x80] sm:$0xff]
  %v56 = vld [vmem:[%s0 + $0x88] sm:$0xff]
  %v57 = vld [vmem:[%s0 + $0x90] sm:$0xff]
  %v58 = vld [vmem:[%s0 + $0x98] sm:$0xff]
  %v59 = vld [vmem:[%s0 + $0xa0] sm:$0xff]
  %v60 = vld [vmem:[%s0 + $0xa8] sm:$0xff]
  %v61 = vld [vmem:[%s0 + $0xb0] sm:$0xff]
  %v62 = vld [vmem:[%s0 + $0xb8] sm:$0xff]
  %v63 = vld [vmem:[%s0 + $0xc0] sm:$0xff]
  %v64 = vld [vmem:[%s0 + $0xc8] sm:$0xff]
  %v65 = vld [vmem:[%s0 + $0xd0] sm:$0xff]
  %v66 = vld [vmem:[%s0 + $0xd8] sm:$0xff]
  %v67 = vld [vmem:[%s0 + $0xe0] sm:$0xff]
  %v68 = vld [vmem:[%s0 + $0xe8] sm:$0xff]
  %v69 = vld [vmem:[%s0 + $0xf0] sm:$0xff]
  %v70 = vld [vmem:[%s0 + $0xf8] sm:$0xff]
  %v71 = vld [vmem:[%s0 + $0x100] sm:$0xff]
  %v72 = vld [vmem:[%s0 + $0x108] sm:$0xff]
  %v73 = vld [vmem:[%s0 + $0x110] sm:$0xff]
  %v74 = vld [vmem:[%s0 + $0x118] sm:$0xff]
  %v75 = vld [vmem:[%s0 + $0x120] sm:$0xff]
  %v76 = vld [vmem:[%s0 + $0x128] sm:$0xff]
  %v77 = vld [vmem:[%s0 + $0x130] sm:$0xff]
  %v78 = vld [vmem:[%s0 + $0x138] sm:$0xff]
  %v79 = vld [vmem:[%s0 + $0x140] sm:$0xff]
  %v80 = vld [vmem:[%s0 + $0x148] sm:$0xff]
  %v81 = vld [vmem:[%s0 + $0x150] sm:$0xff]
  %v82 = vld [vmem:[%s0 + $0x158] sm:$0xff]
  %v83 = vld [vmem:[%s0 + $0x160] sm:$0xff]
  %v84 = vld [vmem:[%s0 + $0x168] sm:$0xff]
  %v85 = vld [vmem:[%s0 + $0x170] sm:$0xff]
  %v86 = vld [vmem:[%s0 + $0x178] sm:$0xff]
  %v87 = vld [vmem:[%s0 + $0x180] sm:$0xff]
  %v88 = vld [vmem:[%s0 + $0x188] sm:$0xff]
  %v89 = vld [vmem:[%s0 + $0x190] sm:$0xff]
  %v90 = vld [vmem:[%s0 + $0x198] sm:$0xff]
  %v91 = vld [vmem:[%s0 + $0x1a0] sm:$0xff]
  %v92 = vld [vmem:[%s0 + $0x1a8] sm:$0xff]
  %v93 = vld [vmem:[%s0 + $0x1b0] sm:$0xff]
  %v94 = vld [vmem:[%s0 + $0x1b8] sm:$0xff]
  %v95 = vld [vmem:[%s0 + $0x1c0] sm:$0xff]
  %v96 = vld [vmem:[%s0 + $0x1c8] sm:$0xff]
  %v97 = vld [vmem:[%s0 + $0x1d0] sm:$0xff]
  %v98 = vld [vmem:[%s0 + $0x1d8] sm:$0xff]
  %v99 = vld [vmem:[%s0 + $0x1e0] sm:$0xff]
  %v100 = vld [vmem:[%s0 + $0x1e8] sm:$0xff]
  %v101 = vld [vmem:[%s0 + $0x1f0] sm:$0xff]
  %v102 = vld [vmem:[%s0 + $0x1f8] sm:$0xff]
  %v103 = vld [vmem:[%s0 + $0x200] sm:$0xff]
  %v104 = vld [vmem:[%s0 + $0x208] sm:$0xff]
  %v105 = vld [vmem:[%s0 + $0x210] sm:$0xff]
  %v106 = vld [vmem:[%s0 + $0x218] sm:$0xff]
  %v107 = vld [vmem:[%s0 + $0x220] sm:$0xff]
  %v108 = vld [vmem:[%s0 + $0x228] sm:$0xff]
  %v109 = vld [vmem:[%s0 + $0x230] sm:$0xff]
  %v110 = vld [vmem:[%s0 + $0x238] sm:$0xff]
  %v111 = vld [vmem:[%s0 + $0x240] sm:$0xff]
  %v112 = vld [vmem:[%s0 + $0x248] sm:$0xff]
  %v113 = vld [vmem:[%s0 + $0x250] sm:$0xff]
  %v114 = vld [vmem:[%s0 + $0x258] sm:$0xff]
  %v115 = vld [vmem:[%s0 + $0x260] sm:$0xff]
  %v116 = vld [vmem:[%s0 + $0x268] sm:$0xff]
  %v117 = vld [vmem:[%s0 + $0x270] sm:$0xff]
  %v118 = vld [vmem:[%s0 + $0x278] sm:$0xff]
  %v119 = vld [vmem:[%s0 + $0x280] sm:$0xff]
  %v120 = vld [vmem:[%s0 + $0x288] sm:$0xff]
  %v121 = vld [vmem:[%s0 + $0x290] sm:$0xff]
  %v122 = vld [vmem:[%s0 + $0x298] sm:$0xff]
  %v123 = vld [vmem:[%s0 + $0x2a0] sm:$0xff]
  %v124 = vld [vmem:[%s0 + $0x2a8] sm:$0xff]
  %v125 = vld [vmem:[%s0 + $0x2b0] sm:$0xff]
  %v126 = vld [vmem:[%s0 + $0x2b8] sm:$0xff]
  %v127 = vld [vmem:[%s0 + $0x2c0] sm:$0xff]
  %v128 = vld [vmem:[%s0 + $0x2c8] sm:$0xff]
  %v129 = vld [vmem:[%s0 + $0x2d0] sm:$0xff]
  %v130 = vld [vmem:[%s0 + $0x2d8] sm:$0xff]
  %v131 = vld [vmem:[%s0 + $0x2e0] sm:$0xff]
  %v132 = vld [vmem:[%s0 + $0x2e8] sm:$0xff]
  %v133 = vld [vmem:[%s0 + $0x2f0] sm:$0xff]
  %v134 = vld [vmem:[%s0 + $0x2f8] sm:$0xff]
  %v135 = vld [vmem:[%s0 + $0x300] sm:$0xff]
  %v136 = vld [vmem:[%s0 + $0x308] sm:$0xff]
  %v137 = vld [vmem:[%s0 + $0x310] sm:$0xff]
  %v138 = vld [vmem:[%s0 + $0x318] sm:$0xff]
  %v139 = vld [vmem:[%s0 + $0x320] sm:$0xff]
  %v140 = vld [vmem:[%s0 + $0x328] sm:$0xff]
  %v141 = vld [vmem:[%s0 + $0x330] sm:$0xff]
  %v142 = vld [vmem:[%s0 + $0x338] sm:$0xff]
  %v143 = vld [vmem:[%s0 + $0x340] sm:$0xff]
  %v144 = vld [vmem:[%s0 + $0x348] sm:$0xff]
  %v145 = vld [vmem:[%s0 + $0x350] sm:$0xff]
  %v146 = vld [vmem:[%s0 + $0x358] sm:$0xff]
  %v147 = vld [vmem:[%s0 + $0x360] sm:$0xff]
  %v148 = vld [vmem:[%s0 + $0x368] sm:$0xff]
  %v149 = vld [vmem:[%s0 + $0x370] sm:$0xff]
  %v150 = vld [vmem:[%s0 + $0x378] sm:$0xff]
  %v151 = vld [vmem:[%s0 + $0x380] sm:$0xff]
  %v152 = vld [vmem:[%s0 + $0x388] sm:$0xff]
  %v153 = vld [vmem:[%s0 + $0x390] sm:$0xff]
  %v154 = vld [vmem:[%s0 + $0x398] sm:$0xff]
  %v155 = vld [vmem:[%s0 + $0x3a0] sm:$0xff]
  %v156 = vld [vmem:[%s0 + $0x3a8] sm:$0xff]
  %v157 = vld [vmem:[%s0 + $0x3b0] sm:$0xff]
  %v158 = vld [vmem:[%s0 + $0x3b8] sm:$0xff]
  %v159 = vld [vmem:[%s0 + $0x3c0] sm:$0xff]
  %v160 = vld [vmem:[%s0 + $0x3c8] sm:$0xff]
  %v161 = vld [vmem:[%s0 + $0x3d0] sm:$0xff]
  %v162 = vld [vmem:[%s0 + $0x3d8] sm:$0xff]
  %v163 = vld [vmem:[%s0 + $0x3e0] sm:$0xff]
  %v164 = vld [vmem:[%s0 + $0x3e8] sm:$0xff]
  %v165 = vld [vmem:[%s0 + $0x3f0] sm:$0xff]
  %v166 = vld [vmem:[%s0 + $0x3f8] sm:$0xff]
  %v167 = vld [vmem:[%s1] sm:$0xf]
  %v168 = vld [vmem:[%s1 + $0x4] sm:$0xf]
  %v169 = vld [vmem:[%s1 + $0x8] sm:$0xf]
  %v170 = vld [vmem:[%s1 + $0xc] sm:$0xf]
  %v171 = vld [vmem:[%s1 + $0x10] sm:$0xf]
  %v172 = vld [vmem:[%s1 + $0x14] sm:$0xf]
  %v173 = vld [vmem:[%s1 + $0x18] sm:$0xf]
  %v174 = vld [vmem:[%s1 + $0x1c] sm:$0xf]
  %v175 = vld [vmem:[%s1 + $0x20] sm:$0xf]
  %v176 = vld [vmem:[%s1 + $0x24] sm:$0xf]
  %v177 = vld [vmem:[%s1 + $0x28] sm:$0xf]
  %v178 = vld [vmem:[%s1 + $0x2c] sm:$0xf]
  %v179 = vld [vmem:[%s1 + $0x30] sm:$0xf]
  %v180 = vld [vmem:[%s1 + $0x34] sm:$0xf]
  %v181 = vld [vmem:[%s1 + $0x38] sm:$0xf]
  %v182 = vld [vmem:[%s1 + $0x3c] sm:$0xf]
  %v183 = vld [vmem:[%s1 + $0x40] sm:$0xf]
  %v184 = vld [vmem:[%s1 + $0x44] sm:$0xf]
  %v185 = vld [vmem:[%s1 + $0x48] sm:$0xf]
  %v186 = vld [vmem:[%s1 + $0x4c] sm:$0xf]
  %v187 = vld [vmem:[%s1 + $0x50] sm:$0xf]
  %v188 = vld [vmem:[%s1 + $0x54] sm:$0xf]
  %v189 = vld [vmem:[%s1 + $0x58] sm:$0xf]
  %v190 = vld [vmem:[%s1 + $0x5c] sm:$0xf]
  %v191 = vld [vmem:[%s1 + $0x60] sm:$0xf]
  %v192 = vld [vmem:[%s1 + $0x64] sm:$0xf]
  %v193 = vld [vmem:[%s1 + $0x68] sm:$0xf]
  %v194 = vld [vmem:[%s1 + $0x6c] sm:$0xf]
  %v195 = vld [vmem:[%s1 + $0x70] sm:$0xf]
  %v196 = vld [vmem:[%s1 + $0x74] sm:$0xf]
  %v197 = vld [vmem:[%s1 + $0x78] sm:$0xf]
  %v198 = vld [vmem:[%s1 + $0x7c] sm:$0xf]
  %v199 = vld [vmem:[%s1 + $0x80] sm:$0xf]
  %v200 = vld [vmem:[%s1 + $0x84] sm:$0xf]
  %v201 = vld [vmem:[%s1 + $0x88] sm:$0xf]
  %v202 = vld [vmem:[%s1 + $0x8c] sm:$0xf]
  %v203 = vld [vmem:[%s1 + $0x90] sm:$0xf]
  %v204 = vld [vmem:[%s1 + $0x94] sm:$0xf]
  %v205 = vld [vmem:[%s1 + $0x98] sm:$0xf]
  %v206 = vld [vmem:[%s1 + $0x9c] sm:$0xf]
  %v207 = vld [vmem:[%s1 + $0xa0] sm:$0xf]
  %v208 = vld [vmem:[%s1 + $0xa4] sm:$0xf]
  %v209 = vld [vmem:[%s1 + $0xa8] sm:$0xf]
  %v210 = vld [vmem:[%s1 + $0xac] sm:$0xf]
  %v211 = vld [vmem:[%s1 + $0xb0] sm:$0xf]
  %v212 = vld [vmem:[%s1 + $0xb4] sm:$0xf]
  %v213 = vld [vmem:[%s1 + $0xb8] sm:$0xf]
  %v214 = vld [vmem:[%s1 + $0xbc] sm:$0xf]
  %v215 = vld [vmem:[%s1 + $0xc0] sm:$0xf]
  %v216 = vld [vmem:[%s1 + $0xc4] sm:$0xf]
  %v217 = vld [vmem:[%s1 + $0xc8] sm:$0xf]
  %v218 = vld [vmem:[%s1 + $0xcc] sm:$0xf]
  %v219 = vld [vmem:[%s1 + $0xd0] sm:$0xf]
  %v220 = vld [vmem:[%s1 + $0xd4] sm:$0xf]
  %v221 = vld [vmem:[%s1 + $0xd8] sm:$0xf]
  %v222 = vld [vmem:[%s1 + $0xdc] sm:$0xf]
  %v223 = vld [vmem:[%s1 + $0xe0] sm:$0xf]
  %v224 = vld [vmem:[%s1 + $0xe4] sm:$0xf]
  %v225 = vld [vmem:[%s1 + $0xe8] sm:$0xf]
  %v226 = vld [vmem:[%s1 + $0xec] sm:$0xf]
  %v227 = vld [vmem:[%s1 + $0xf0] sm:$0xf]
  %v228 = vld [vmem:[%s1 + $0xf4] sm:$0xf]
  %v229 = vld [vmem:[%s1 + $0xf8] sm:$0xf]
  %v230 = vld [vmem:[%s1 + $0xfc] sm:$0xf]
  %v231 = vld [vmem:[%s1 + $0x100] sm:$0xf]
  %v232 = vld [vmem:[%s1 + $0x104] sm:$0xf]
  %v233 = vld [vmem:[%s1 + $0x108] sm:$0xf]
  %v234 = vld [vmem:[%s1 + $0x10c] sm:$0xf]
  %v235 = vld [vmem:[%s1 + $0x110] sm:$0xf]
  %v236 = vld [vmem:[%s1 + $0x114] sm:$0xf]
  %v237 = vld [vmem:[%s1 + $0x118] sm:$0xf]
  %v238 = vld [vmem:[%s1 + $0x11c] sm:$0xf]
  %v239 = vld [vmem:[%s1 + $0x120] sm:$0xf]
  %v240 = vld [vmem:[%s1 + $0x124] sm:$0xf]
  %v241 = vld [vmem:[%s1 + $0x128] sm:$0xf]
  %v242 = vld [vmem:[%s1 + $0x12c] sm:$0xf]
  %v243 = vld [vmem:[%s1 + $0x130] sm:$0xf]
  %v244 = vld [vmem:[%s1 + $0x134] sm:$0xf]
  %v245 = vld [vmem:[%s1 + $0x138] sm:$0xf]
  %v246 = vld [vmem:[%s1 + $0x13c] sm:$0xf]
  %v247 = vld [vmem:[%s1 + $0x140] sm:$0xf]
  %v248 = vld [vmem:[%s1 + $0x144] sm:$0xf]
  %v249 = vld [vmem:[%s1 + $0x148] sm:$0xf]
  %v250 = vld [vmem:[%s1 + $0x14c] sm:$0xf]
  %v251 = vld [vmem:[%s1 + $0x150] sm:$0xf]
  %v252 = vld [vmem:[%s1 + $0x154] sm:$0xf]
  %v253 = vld [vmem:[%s1 + $0x158] sm:$0xf]
  %v254 = vld [vmem:[%s1 + $0x15c] sm:$0xf]
  %v255 = vld [vmem:[%s1 + $0x160] sm:$0xf]
  %v256 = vld [vmem:[%s1 + $0x164] sm:$0xf]
  %v257 = vld [vmem:[%s1 + $0x168] sm:$0xf]
  %v258 = vld [vmem:[%s1 + $0x16c] sm:$0xf]
  %v259 = vld [vmem:[%s1 + $0x170] sm:$0xf]
  %v260 = vld [vmem:[%s1 + $0x174] sm:$0xf]
  %v261 = vld [vmem:[%s1 + $0x178] sm:$0xf]
  %v262 = vld [vmem:[%s1 + $0x17c] sm:$0xf]
  %v263 = vld [vmem:[%s1 + $0x180] sm:$0xf]
  %v264 = vld [vmem:[%s1 + $0x184] sm:$0xf]
  %v265 = vld [vmem:[%s1 + $0x188] sm:$0xf]
  %v266 = vld [vmem:[%s1 + $0x18c] sm:$0xf]
  %v267 = vld [vmem:[%s1 + $0x190] sm:$0xf]
  %v268 = vld [vmem:[%s1 + $0x194] sm:$0xf]
  %v269 = vld [vmem:[%s1 + $0x198] sm:$0xf]
  %v270 = vld [vmem:[%s1 + $0x19c] sm:$0xf]
  %v271 = vld [vmem:[%s1 + $0x1a0] sm:$0xf]
  %v272 = vld [vmem:[%s1 + $0x1a4] sm:$0xf]
  %v273 = vld [vmem:[%s1 + $0x1a8] sm:$0xf]
  %v274 = vld [vmem:[%s1 + $0x1ac] sm:$0xf]
  %v275 = vld [vmem:[%s1 + $0x1b0] sm:$0xf]
  %v276 = vld [vmem:[%s1 + $0x1b4] sm:$0xf]
  %v277 = vld [vmem:[%s1 + $0x1b8] sm:$0xf]
  %v278 = vld [vmem:[%s1 + $0x1bc] sm:$0xf]
  %v279 = vld [vmem:[%s1 + $0x1c0] sm:$0xf]
  %v280 = vld [vmem:[%s1 + $0x1c4] sm:$0xf]
  %v281 = vld [vmem:[%s1 + $0x1c8] sm:$0xf]
  %v282 = vld [vmem:[%s1 + $0x1cc] sm:$0xf]
  %v283 = vld [vmem:[%s1 + $0x1d0] sm:$0xf]
  %v284 = vld [vmem:[%s1 + $0x1d4] sm:$0xf]
  %v285 = vld [vmem:[%s1 + $0x1d8] sm:$0xf]
  %v286 = vld [vmem:[%s1 + $0x1dc] sm:$0xf]
  %v287 = vld [vmem:[%s1 + $0x1e0] sm:$0xf]
  %v288 = vld [vmem:[%s1 + $0x1e4] sm:$0xf]
  %v289 = vld [vmem:[%s1 + $0x1e8] sm:$0xf]
  %v290 = vld [vmem:[%s1 + $0x1ec] sm:$0xf]
  %v291 = vld [vmem:[%s1 + $0x1f0] sm:$0xf]
  %v292 = vld [vmem:[%s1 + $0x1f4] sm:$0xf]
  %v293 = vld [vmem:[%s1 + $0x1f8] sm:$0xf]
  %v294 = vld [vmem:[%s1 + $0x1fc] sm:$0xf]
  %v295 = vld [vmem:[%s1 + $0x200] sm:$0xf]
  %v296 = vld [vmem:[%s1 + $0x204] sm:$0xf]
  %v297 = vld [vmem:[%s1 + $0x208] sm:$0xf]
  %v298 = vld [vmem:[%s1 + $0x20c] sm:$0xf]
  %v299 = vld [vmem:[%s1 + $0x210] sm:$0xf]
  %v300 = vld [vmem:[%s1 + $0x214] sm:$0xf]
  %v301 = vld [vmem:[%s1 + $0x218] sm:$0xf]
  %v302 = vld [vmem:[%s1 + $0x21c] sm:$0xf]
  %v303 = vld [vmem:[%s1 + $0x220] sm:$0xf]
  %v304 = vld [vmem:[%s1 + $0x224] sm:$0xf]
  %v305 = vld [vmem:[%s1 + $0x228] sm:$0xf]
  %v306 = vld [vmem:[%s1 + $0x22c] sm:$0xf]
  %v307 = vld [vmem:[%s1 + $0x230] sm:$0xf]
  %v308 = vld [vmem:[%s1 + $0x234] sm:$0xf]
  %v309 = vld [vmem:[%s1 + $0x238] sm:$0xf]
  %v310 = vld [vmem:[%s1 + $0x23c] sm:$0xf]
  %v311 = vld [vmem:[%s1 + $0x240] sm:$0xf]
  %v312 = vld [vmem:[%s1 + $0x244] sm:$0xf]
  %v313 = vld [vmem:[%s1 + $0x248] sm:$0xf]
  %v314 = vld [vmem:[%s1 + $0x24c] sm:$0xf]
  %v315 = vld [vmem:[%s1 + $0x250] sm:$0xf]
  %v316 = vld [vmem:[%s1 + $0x254] sm:$0xf]
  %v317 = vld [vmem:[%s1 + $0x258] sm:$0xf]
  %v318 = vld [vmem:[%s1 + $0x25c] sm:$0xf]
  %v319 = vld [vmem:[%s1 + $0x260] sm:$0xf]
  %v320 = vld [vmem:[%s1 + $0x264] sm:$0xf]
  %v321 = vld [vmem:[%s1 + $0x268] sm:$0xf]
  %v322 = vld [vmem:[%s1 + $0x26c] sm:$0xf]
  %v323 = vld [vmem:[%s1 + $0x270] sm:$0xf]
  %v324 = vld [vmem:[%s1 + $0x274] sm:$0xf]
  %v325 = vld [vmem:[%s1 + $0x278] sm:$0xf]
  %v326 = vld [vmem:[%s1 + $0x27c] sm:$0xf]
  %v327 = vld [vmem:[%s1 + $0x280] sm:$0xf]
  %v328 = vld [vmem:[%s1 + $0x284] sm:$0xf]
  %v329 = vld [vmem:[%s1 + $0x288] sm:$0xf]
  %v330 = vld [vmem:[%s1 + $0x28c] sm:$0xf]
  %v331 = vld [vmem:[%s1 + $0x290] sm:$0xf]
  %v332 = vld [vmem:[%s1 + $0x294] sm:$0xf]
  %v333 = vld [vmem:[%s1 + $0x298] sm:$0xf]
  %v334 = vld [vmem:[%s1 + $0x29c] sm:$0xf]
  %v335 = vld [vmem:[%s1 + $0x2a0] sm:$0xf]
  %v336 = vld [vmem:[%s1 + $0x2a4] sm:$0xf]
  %v337 = vld [vmem:[%s1 + $0x2a8] sm:$0xf]
  %v338 = vld [vmem:[%s1 + $0x2ac] sm:$0xf]
  %v339 = vld [vmem:[%s1 + $0x2b0] sm:$0xf]
  %v340 = vld [vmem:[%s1 + $0x2b4] sm:$0xf]
  %v341 = vld [vmem:[%s1 + $0x2b8] sm:$0xf]
  %v342 = vld [vmem:[%s1 + $0x2bc] sm:$0xf]
  %v343 = vld [vmem:[%s1 + $0x2c0] sm:$0xf]
  %v344 = vld [vmem:[%s1 + $0x2c4] sm:$0xf]
  %v345 = vld [vmem:[%s1 + $0x2c8] sm:$0xf]
  %v346 = vld [vmem:[%s1 + $0x2cc] sm:$0xf]
  %v347 = vld [vmem:[%s1 + $0x2d0] sm:$0xf]
  %v348 = vld [vmem:[%s1 + $0x2d4] sm:$0xf]
  %v349 = vld [vmem:[%s1 + $0x2d8] sm:$0xf]
  %v350 = vld [vmem:[%s1 + $0x2dc] sm:$0xf]
  %v351 = vld [vmem:[%s1 + $0x2e0] sm:$0xf]
  %v352 = vld [vmem:[%s1 + $0x2e4] sm:$0xf]
  %v353 = vld [vmem:[%s1 + $0x2e8] sm:$0xf]
  %v354 = vld [vmem:[%s1 + $0x2ec] sm:$0xf]
  %v355 = vld [vmem:[%s1 + $0x2f0] sm:$0xf]
  %v356 = vld [vmem:[%s1 + $0x2f4] sm:$0xf]
  %v357 = vld [vmem:[%s1 + $0x2f8] sm:$0xf]
  %v358 = vld [vmem:[%s1 + $0x2fc] sm:$0xf]
  %v359 = vld [vmem:[%s1 + $0x300] sm:$0xf]
  %v360 = vld [vmem:[%s1 + $0x304] sm:$0xf]
  %v361 = vld [vmem:[%s1 + $0x308] sm:$0xf]
  %v362 = vld [vmem:[%s1 + $0x30c] sm:$0xf]
  %v363 = vld [vmem:[%s1 + $0x310] sm:$0xf]
  %v364 = vld [vmem:[%s1 + $0x314] sm:$0xf]
  %v365 = vld [vmem:[%s1 + $0x318] sm:$0xf]
  %v366 = vld [vmem:[%s1 + $0x31c] sm:$0xf]
  %v367 = vld [vmem:[%s1 + $0x320] sm:$0xf]
  %v368 = vld [vmem:[%s1 + $0x324] sm:$0xf]
  %v369 = vld [vmem:[%s1 + $0x328] sm:$0xf]
  %v370 = vld [vmem:[%s1 + $0x32c] sm:$0xf]
  %v371 = vld [vmem:[%s1 + $0x330] sm:$0xf]
  %v372 = vld [vmem:[%s1 + $0x334] sm:$0xf]
  %v373 = vld [vmem:[%s1 + $0x338] sm:$0xf]
  %v374 = vld [vmem:[%s1 + $0x33c] sm:$0xf]
  %v375 = vld [vmem:[%s1 + $0x340] sm:$0xf]
  %v376 = vld [vmem:[%s1 + $0x344] sm:$0xf]
  %v377 = vld [vmem:[%s1 + $0x348] sm:$0xf]
  %v378 = vld [vmem:[%s1 + $0x34c] sm:$0xf]
  %v379 = vld [vmem:[%s1 + $0x350] sm:$0xf]
  %v380 = vld [vmem:[%s1 + $0x354] sm:$0xf]
  %v381 = vld [vmem:[%s1 + $0x358] sm:$0xf]
  %v382 = vld [vmem:[%s1 + $0x35c] sm:$0xf]
  %v383 = vld [vmem:[%s1 + $0x360] sm:$0xf]
  %v384 = vld [vmem:[%s1 + $0x364] sm:$0xf]
  %v385 = vld [vmem:[%s1 + $0x368] sm:$0xf]
  %v386 = vld [vmem:[%s1 + $0x36c] sm:$0xf]
  %v387 = vld [vmem:[%s1 + $0x370] sm:$0xf]
  %v388 = vld [vmem:[%s1 + $0x374] sm:$0xf]
  %v389 = vld [vmem:[%s1 + $0x378] sm:$0xf]
  %v390 = vld [vmem:[%s1 + $0x37c] sm:$0xf]
  %v391 = vld [vmem:[%s1 + $0x380] sm:$0xf]
  %v392 = vld [vmem:[%s1 + $0x384] sm:$0xf]
  %v393 = vld [vmem:[%s1 + $0x388] sm:$0xf]
  %v394 = vld [vmem:[%s1 + $0x38c] sm:$0xf]
  %v395 = vld [vmem:[%s1 + $0x390] sm:$0xf]
  %v396 = vld [vmem:[%s1 + $0x394] sm:$0xf]
  %v397 = vld [vmem:[%s1 + $0x398] sm:$0xf]
  %v398 = vld [vmem:[%s1 + $0x39c] sm:$0xf]
  %v399 = vld [vmem:[%s1 + $0x3a0] sm:$0xf]
  %v400 = vld [vmem:[%s1 + $0x3a4] sm:$0xf]
  %v401 = vld [vmem:[%s1 + $0x3a8] sm:$0xf]
  %v402 = vld [vmem:[%s1 + $0x3ac] sm:$0xf]
  %v403 = vld [vmem:[%s1 + $0x3b0] sm:$0xf]
  %v404 = vld [vmem:[%s1 + $0x3b4] sm:$0xf]
  %v405 = vld [vmem:[%s1 + $0x3b8] sm:$0xf]
  %v406 = vld [vmem:[%s1 + $0x3bc] sm:$0xf]
  %v407 = vld [vmem:[%s1 + $0x3c0] sm:$0xf]
  %v408 = vld [vmem:[%s1 + $0x3c4] sm:$0xf]
  %v409 = vld [vmem:[%s1 + $0x3c8] sm:$0xf]
  %v410 = vld [vmem:[%s1 + $0x3cc] sm:$0xf]
  %v411 = vld [vmem:[%s1 + $0x3d0] sm:$0xf]
  %v412 = vld [vmem:[%s1 + $0x3d4] sm:$0xf]
  %v413 = vld [vmem:[%s1 + $0x3d8] sm:$0xf]
  %v414 = vld [vmem:[%s1 + $0x3dc] sm:$0xf]
  %v415 = vld [vmem:[%s1 + $0x3e0] sm:$0xf]
  %v416 = vld [vmem:[%s1 + $0x3e4] sm:$0xf]
  %v417 = vld [vmem:[%s1 + $0x3e8] sm:$0xf]
  %v418 = vld [vmem:[%s1 + $0x3ec] sm:$0xf]
  %v419 = vld [vmem:[%s1 + $0x3f0] sm:$0xf]
  %v420 = vld [vmem:[%s1 + $0x3f4] sm:$0xf]
  %v421 = vld [vmem:[%s1 + $0x3f8] sm:$0xf]
  %v422 = vld [vmem:[%s1 + $0x3fc] sm:$0xf]
  %v423 = vld [vmem:[%s1 + $0x400] sm:$0xf]
  %v424 = vld [vmem:[%s1 + $0x404] sm:$0xf]
  %v425 = vld [vmem:[%s1 + $0x408] sm:$0xf]
  %v426 = vld [vmem:[%s1 + $0x40c] sm:$0xf]
  %v427 = vld [vmem:[%s1 + $0x410] sm:$0xf]
  %v428 = vld [vmem:[%s1 + $0x414] sm:$0xf]
  %v429 = vld [vmem:[%s1 + $0x418] sm:$0xf]
  %v430 = vld [vmem:[%s1 + $0x41c] sm:$0xf]
  %v431 = vld [vmem:[%s1 + $0x420] sm:$0xf]
  %v432 = vld [vmem:[%s1 + $0x424] sm:$0xf]
  %v433 = vld [vmem:[%s1 + $0x428] sm:$0xf]
  %v434 = vld [vmem:[%s1 + $0x42c] sm:$0xf]
  %v435 = vld [vmem:[%s1 + $0x430] sm:$0xf]
  %v436 = vld [vmem:[%s1 + $0x434] sm:$0xf]
  %v437 = vld [vmem:[%s1 + $0x438] sm:$0xf]
  %v438 = vld [vmem:[%s1 + $0x43c] sm:$0xf]
  %v439 = vld [vmem:[%s1 + $0x440] sm:$0xf]
  %v440 = vld [vmem:[%s1 + $0x444] sm:$0xf]
  %v441 = vld [vmem:[%s1 + $0x448] sm:$0xf]
  %v442 = vld [vmem:[%s1 + $0x44c] sm:$0xf]
  %v443 = vld [vmem:[%s1 + $0x450] sm:$0xf]
  %v444 = vld [vmem:[%s1 + $0x454] sm:$0xf]
  %v445 = vld [vmem:[%s1 + $0x458] sm:$0xf]
  %v446 = vld [vmem:[%s1 + $0x45c] sm:$0xf]
  %v447 = vld [vmem:[%s1 + $0x460] sm:$0xf]
  %v448 = vld [vmem:[%s1 + $0x464] sm:$0xf]
  %v449 = vld [vmem:[%s1 + $0x468] sm:$0xf]
  %v450 = vld [vmem:[%s1 + $0x46c] sm:$0xf]
  %v451 = vld [vmem:[%s1 + $0x470] sm:$0xf]
  %v452 = vld [vmem:[%s1 + $0x474] sm:$0xf]
  %v453 = vld [vmem:[%s1 + $0x478] sm:$0xf]
  %v454 = vld [vmem:[%s1 + $0x47c] sm:$0xf]
  %v455 = vld [vmem:[%s1 + $0x480] sm:$0xf]
  %v456 = vld [vmem:[%s1 + $0x484] sm:$0xf]
  %v457 = vld [vmem:[%s1 + $0x488] sm:$0xf]
  %v458 = vld [vmem:[%s1 + $0x48c] sm:$0xf]
  %v459 = vld [vmem:[%s1 + $0x490] sm:$0xf]
  %v460 = vld [vmem:[%s1 + $0x494] sm:$0xf]
  %v461 = vld [vmem:[%s1 + $0x498] sm:$0xf]
  %v462 = vld [vmem:[%s1 + $0x49c] sm:$0xf]
  %v463 = vld [vmem:[%s1 + $0x4a0] sm:$0xf]
  %v464 = vld [vmem:[%s1 + $0x4a4] sm:$0xf]
  %v465 = vld [vmem:[%s1 + $0x4a8] sm:$0xf]
  %v466 = vld [vmem:[%s1 + $0x4ac] sm:$0xf]
  %v467 = vld [vmem:[%s1 + $0x4b0] sm:$0xf]
  %v468 = vld [vmem:[%s1 + $0x4b4] sm:$0xf]
  %v469 = vld [vmem:[%s1 + $0x4b8] sm:$0xf]
  %v470 = vld [vmem:[%s1 + $0x4bc] sm:$0xf]
  %v471 = vld [vmem:[%s1 + $0x4c0] sm:$0xf]
  %v472 = vld [vmem:[%s1 + $0x4c4] sm:$0xf]
  %v473 = vld [vmem:[%s1 + $0x4c8] sm:$0xf]
  %v474 = vld [vmem:[%s1 + $0x4cc] sm:$0xf]
  %v475 = vld [vmem:[%s1 + $0x4d0] sm:$0xf]
  %v476 = vld [vmem:[%s1 + $0x4d4] sm:$0xf]
  %v477 = vld [vmem:[%s1 + $0x4d8] sm:$0xf]
  %v478 = vld [vmem:[%s1 + $0x4dc] sm:$0xf]
  %v479 = vld [vmem:[%s1 + $0x4e0] sm:$0xf]
  %v480 = vld [vmem:[%s1 + $0x4e4] sm:$0xf]
  %v481 = vld [vmem:[%s1 + $0x4e8] sm:$0xf]
  %v482 = vld [vmem:[%s1 + $0x4ec] sm:$0xf]
  %v483 = vld [vmem:[%s1 + $0x4f0] sm:$0xf]
  %v484 = vld [vmem:[%s1 + $0x4f4] sm:$0xf]
  %v485 = vld [vmem:[%s1 + $0x4f8] sm:$0xf]
  %v486 = vld [vmem:[%s1 + $0x4fc] sm:$0xf]
  %v487 = vld [vmem:[%s1 + $0x500] sm:$0xf]
  %v488 = vld [vmem:[%s1 + $0x504] sm:$0xf]
  %v489 = vld [vmem:[%s1 + $0x508] sm:$0xf]
  %v490 = vld [vmem:[%s1 + $0x50c] sm:$0xf]
  %v491 = vld [vmem:[%s1 + $0x510] sm:$0xf]
  %v492 = vld [vmem:[%s1 + $0x514] sm:$0xf]
  %v493 = vld [vmem:[%s1 + $0x518] sm:$0xf]
  %v494 = vld [vmem:[%s1 + $0x51c] sm:$0xf]
  %v495 = vld [vmem:[%s1 + $0x520] sm:$0xf]
  %v496 = vld [vmem:[%s1 + $0x524] sm:$0xf]
  %v497 = vld [vmem:[%s1 + $0x528] sm:$0xf]
  %v498 = vld [vmem:[%s1 + $0x52c] sm:$0xf]
  %v499 = vld [vmem:[%s1 + $0x530] sm:$0xf]
  %v500 = vld [vmem:[%s1 + $0x534] sm:$0xf]
  %v501 = vld [vmem:[%s1 + $0x538] sm:$0xf]
  %v502 = vld [vmem:[%s1 + $0x53c] sm:$0xf]
  %v503 = vld [vmem:[%s1 + $0x540] sm:$0xf]
  %v504 = vld [vmem:[%s1 + $0x544] sm:$0xf]
  %v505 = vld [vmem:[%s1 + $0x548] sm:$0xf]
  %v506 = vld [vmem:[%s1 + $0x54c] sm:$0xf]
  %v507 = vld [vmem:[%s1 + $0x550] sm:$0xf]
  %v508 = vld [vmem:[%s1 + $0x554] sm:$0xf]
  %v509 = vld [vmem:[%s1 + $0x558] sm:$0xf]
  %v510 = vld [vmem:[%s1 + $0x55c] sm:$0xf]
  %v511 = vld [vmem:[%s1 + $0x560] sm:$0xf]
  %v512 = vld [vmem:[%s1 + $0x564] sm:$0xf]
  %v513 = vld [vmem:[%s1 + $0x568] sm:$0xf]
  %v514 = vld [vmem:[%s1 + $0x56c] sm:$0xf]
  %v515 = vld [vmem:[%s1 + $0x570] sm:$0xf]
  %v516 = vld [vmem:[%s1 + $0x574] sm:$0xf]
  %v517 = vld [vmem:[%s1 + $0x578] sm:$0xf]
  %v518 = vld [vmem:[%s1 + $0x57c] sm:$0xf]
  %v519 = vld [vmem:[%s1 + $0x580] sm:$0xf]
  %v520 = vld [vmem:[%s1 + $0x584] sm:$0xf]
  %v521 = vld [vmem:[%s1 + $0x588] sm:$0xf]
  %v522 = vld [vmem:[%s1 + $0x58c] sm:$0xf]
  %v523 = vld [vmem:[%s1 + $0x590] sm:$0xf]
  %v524 = vld [vmem:[%s1 + $0x594] sm:$0xf]
  %v525 = vld [vmem:[%s1 + $0x598] sm:$0xf]
  %v526 = vld [vmem:[%s1 + $0x59c] sm:$0xf]
  %v527 = vld [vmem:[%s1 + $0x5a0] sm:$0xf]
  %v528 = vld [vmem:[%s1 + $0x5a4] sm:$0xf]
  %v529 = vld [vmem:[%s1 + $0x5a8] sm:$0xf]
  %v530 = vld [vmem:[%s1 + $0x5ac] sm:$0xf]
  %v531 = vld [vmem:[%s1 + $0x5b0] sm:$0xf]
  %v532 = vld [vmem:[%s1 + $0x5b4] sm:$0xf]
  %v533 = vld [vmem:[%s1 + $0x5b8] sm:$0xf]
  %v534 = vld [vmem:[%s1 + $0x5bc] sm:$0xf]
  %v535 = vld [vmem:[%s1 + $0x5c0] sm:$0xf]
  %v536 = vld [vmem:[%s1 + $0x5c4] sm:$0xf]
  %v537 = vld [vmem:[%s1 + $0x5c8] sm:$0xf]
  %v538 = vld [vmem:[%s1 + $0x5cc] sm:$0xf]
  %v539 = vld [vmem:[%s1 + $0x5d0] sm:$0xf]
  %v540 = vld [vmem:[%s1 + $0x5d4] sm:$0xf]
  %v541 = vld [vmem:[%s1 + $0x5d8] sm:$0xf]
  %v542 = vld [vmem:[%s1 + $0x5dc] sm:$0xf]
  %v543 = vld [vmem:[%s1 + $0x5e0] sm:$0xf]
  %v544 = vld [vmem:[%s1 + $0x5e4] sm:$0xf]
  %v545 = vld [vmem:[%s1 + $0x5e8] sm:$0xf]
  %v546 = vld [vmem:[%s1 + $0x5ec] sm:$0xf]
  %v547 = vld [vmem:[%s1 + $0x5f0] sm:$0xf]
  %v548 = vld [vmem:[%s1 + $0x5f4] sm:$0xf]
  %v549 = vld [vmem:[%s1 + $0x5f8] sm:$0xf]
  %v550 = vld [vmem:[%s1 + $0x5fc] sm:$0xf]
  %v551 = vld [vmem:[%s1 + $0x600] sm:$0xf]
  %v552 = vld [vmem:[%s1 + $0x604] sm:$0xf]
  %v553 = vld [vmem:[%s1 + $0x608] sm:$0xf]
  %v554 = vld [vmem:[%s1 + $0x60c] sm:$0xf]
  %v555 = vld [vmem:[%s1 + $0x610] sm:$0xf]
  %v556 = vld [vmem:[%s1 + $0x614] sm:$0xf]
  %v557 = vld [vmem:[%s1 + $0x618] sm:$0xf]
  %v558 = vld [vmem:[%s1 + $0x61c] sm:$0xf]
  %v559 = vld [vmem:[%s1 + $0x620] sm:$0xf]
  %v560 = vld [vmem:[%s1 + $0x624] sm:$0xf]
  %v561 = vld [vmem:[%s1 + $0x628] sm:$0xf]
  %v562 = vld [vmem:[%s1 + $0x62c] sm:$0xf]
  %v563 = vld [vmem:[%s1 + $0x630] sm:$0xf]
  %v564 = vld [vmem:[%s1 + $0x634] sm:$0xf]
  %v565 = vld [vmem:[%s1 + $0x638] sm:$0xf]
  %v566 = vld [vmem:[%s1 + $0x63c] sm:$0xf]
  %v567 = vld [vmem:[%s1 + $0x640] sm:$0xf]
  %v568 = vld [vmem:[%s1 + $0x644] sm:$0xf]
  %v569 = vld [vmem:[%s1 + $0x648] sm:$0xf]
  %v570 = vld [vmem:[%s1 + $0x64c] sm:$0xf]
  %v571 = vld [vmem:[%s1 + $0x650] sm:$0xf]
  %v572 = vld [vmem:[%s1 + $0x654] sm:$0xf]
  %v573 = vld [vmem:[%s1 + $0x658] sm:$0xf]
  %v574 = vld [vmem:[%s1 + $0x65c] sm:$0xf]
  %v575 = vld [vmem:[%s1 + $0x660] sm:$0xf]
  %v576 = vld [vmem:[%s1 + $0x664] sm:$0xf]
  %v577 = vld [vmem:[%s1 + $0x668] sm:$0xf]
  %v578 = vld [vmem:[%s1 + $0x66c] sm:$0xf]
  %v579 = vld [vmem:[%s1 + $0x670] sm:$0xf]
  %v580 = vld [vmem:[%s1 + $0x674] sm:$0xf]
  %v581 = vld [vmem:[%s1 + $0x678] sm:$0xf]
  %v582 = vld [vmem:[%s1 + $0x67c] sm:$0xf]
  %v583 = vld [vmem:[%s1 + $0x680] sm:$0xf]
  %v584 = vld [vmem:[%s1 + $0x684] sm:$0xf]
  %v585 = vld [vmem:[%s1 + $0x688] sm:$0xf]
  %v586 = vld [vmem:[%s1 + $0x68c] sm:$0xf]
  %v587 = vld [vmem:[%s1 + $0x690] sm:$0xf]
  %v588 = vld [vmem:[%s1 + $0x694] sm:$0xf]
  %v589 = vld [vmem:[%s1 + $0x698] sm:$0xf]
  %v590 = vld [vmem:[%s1 + $0x69c] sm:$0xf]
  %v591 = vld [vmem:[%s1 + $0x6a0] sm:$0xf]
  %v592 = vld [vmem:[%s1 + $0x6a4] sm:$0xf]
  %v593 = vld [vmem:[%s1 + $0x6a8] sm:$0xf]
  %v594 = vld [vmem:[%s1 + $0x6ac] sm:$0xf]
  %v595 = vld [vmem:[%s1 + $0x6b0] sm:$0xf]
  %v596 = vld [vmem:[%s1 + $0x6b4] sm:$0xf]
  %v597 = vld [vmem:[%s1 + $0x6b8] sm:$0xf]
  %v598 = vld [vmem:[%s1 + $0x6bc] sm:$0xf]
  %v599 = vld [vmem:[%s1 + $0x6c0] sm:$0xf]
  %v600 = vld [vmem:[%s1 + $0x6c4] sm:$0xf]
  %v601 = vld [vmem:[%s1 + $0x6c8] sm:$0xf]
  %v602 = vld [vmem:[%s1 + $0x6cc] sm:$0xf]
  %v603 = vld [vmem:[%s1 + $0x6d0] sm:$0xf]
  %v604 = vld [vmem:[%s1 + $0x6d4] sm:$0xf]
  %v605 = vld [vmem:[%s1 + $0x6d8] sm:$0xf]
  %v606 = vld [vmem:[%s1 + $0x6dc] sm:$0xf]
  %v607 = vld [vmem:[%s1 + $0x6e0] sm:$0xf]
  %v608 = vld [vmem:[%s1 + $0x6e4] sm:$0xf]
  %v609 = vld [vmem:[%s1 + $0x6e8] sm:$0xf]
  %v610 = vld [vmem:[%s1 + $0x6ec] sm:$0xf]
  %v611 = vld [vmem:[%s1 + $0x6f0] sm:$0xf]
  %v612 = vld [vmem:[%s1 + $0x6f4] sm:$0xf]
  %v613 = vld [vmem:[%s1 + $0x6f8] sm:$0xf]
  %v614 = vld [vmem:[%s1 + $0x6fc] sm:$0xf]
  %v615 = vld [vmem:[%s1 + $0x700] sm:$0xf]
  %v616 = vld [vmem:[%s1 + $0x704] sm:$0xf]
  %v617 = vld [vmem:[%s1 + $0x708] sm:$0xf]
  %v618 = vld [vmem:[%s1 + $0x70c] sm:$0xf]
  %v619 = vld [vmem:[%s1 + $0x710] sm:$0xf]
  %v620 = vld [vmem:[%s1 + $0x714] sm:$0xf]
  %v621 = vld [vmem:[%s1 + $0x718] sm:$0xf]
  %v622 = vld [vmem:[%s1 + $0x71c] sm:$0xf]
  %v623 = vld [vmem:[%s1 + $0x720] sm:$0xf]
  %v624 = vld [vmem:[%s1 + $0x724] sm:$0xf]
  %v625 = vld [vmem:[%s1 + $0x728] sm:$0xf]
  %v626 = vld [vmem:[%s1 + $0x72c] sm:$0xf]
  %v627 = vld [vmem:[%s1 + $0x730] sm:$0xf]
  %v628 = vld [vmem:[%s1 + $0x734] sm:$0xf]
  %v629 = vld [vmem:[%s1 + $0x738] sm:$0xf]
  %v630 = vld [vmem:[%s1 + $0x73c] sm:$0xf]
  %v631 = vld [vmem:[%s1 + $0x740] sm:$0xf]
  %v632 = vld [vmem:[%s1 + $0x744] sm:$0xf]
  %v633 = vld [vmem:[%s1 + $0x748] sm:$0xf]
  %v634 = vld [vmem:[%s1 + $0x74c] sm:$0xf]
  %v635 = vld [vmem:[%s1 + $0x750] sm:$0xf]
  %v636 = vld [vmem:[%s1 + $0x754] sm:$0xf]
  %v637 = vld [vmem:[%s1 + $0x758] sm:$0xf]
  %v638 = vld [vmem:[%s1 + $0x75c] sm:$0xf]
  %v639 = vld [vmem:[%s1 + $0x760] sm:$0xf]
  %v640 = vld [vmem:[%s1 + $0x764] sm:$0xf]
  %v641 = vld [vmem:[%s1 + $0x768] sm:$0xf]
  %v642 = vld [vmem:[%s1 + $0x76c] sm:$0xf]
  %v643 = vld [vmem:[%s1 + $0x770] sm:$0xf]
  %v644 = vld [vmem:[%s1 + $0x774] sm:$0xf]
  %v645 = vld [vmem:[%s1 + $0x778] sm:$0xf]
  %v646 = vld [vmem:[%s1 + $0x77c] sm:$0xf]
  %v647 = vld [vmem:[%s1 + $0x780] sm:$0xf]
  %v648 = vld [vmem:[%s1 + $0x784] sm:$0xf]
  %v649 = vld [vmem:[%s1 + $0x788] sm:$0xf]
  %v650 = vld [vmem:[%s1 + $0x78c] sm:$0xf]
  %v651 = vld [vmem:[%s1 + $0x790] sm:$0xf]
  %v652 = vld [vmem:[%s1 + $0x794] sm:$0xf]
  %v653 = vld [vmem:[%s1 + $0x798] sm:$0xf]
  %v654 = vld [vmem:[%s1 + $0x79c] sm:$0xf]
  %v655 = vld [vmem:[%s1 + $0x7a0] sm:$0xf]
  %v656 = vld [vmem:[%s1 + $0x7a4] sm:$0xf]
  %v657 = vld [vmem:[%s1 + $0x7a8] sm:$0xf]
  %v658 = vld [vmem:[%s1 + $0x7ac] sm:$0xf]
  %v659 = vld [vmem:[%s1 + $0x7b0] sm:$0xf]
  %v660 = vld [vmem:[%s1 + $0x7b4] sm:$0xf]
  %v661 = vld [vmem:[%s1 + $0x7b8] sm:$0xf]
  %v662 = vld [vmem:[%s1 + $0x7bc] sm:$0xf]
  %v663 = vld [vmem:[%s1 + $0x7c0] sm:$0xf]
  %v664 = vld [vmem:[%s1 + $0x7c4] sm:$0xf]
  %v665 = vld [vmem:[%s1 + $0x7c8] sm:$0xf]
  %v666 = vld [vmem:[%s1 + $0x7cc] sm:$0xf]
  %v667 = vld [vmem:[%s1 + $0x7d0] sm:$0xf]
  %v668 = vld [vmem:[%s1 + $0x7d4] sm:$0xf]
  %v669 = vld [vmem:[%s1 + $0x7d8] sm:$0xf]
  %v670 = vld [vmem:[%s1 + $0x7dc] sm:$0xf]
  %v671 = vld [vmem:[%s1 + $0x7e0] sm:$0xf]
  %v672 = vld [vmem:[%s1 + $0x7e4] sm:$0xf]
  %v673 = vld [vmem:[%s1 + $0x7e8] sm:$0xf]
  %v674 = vld [vmem:[%s1 + $0x7ec] sm:$0xf]
  %v675 = vld [vmem:[%s1 + $0x7f0] sm:$0xf]
  %v676 = vld [vmem:[%s1 + $0x7f4] sm:$0xf]
  %v677 = vld [vmem:[%s1 + $0x7f8] sm:$0xf]
  %v678 = vld [vmem:[%s1 + $0x7fc] sm:$0xf]
  %v679 = vld [vmem:[%s2] sm:$0x1]
  %v681 = vlaneseq
  %v682 = vshrl.u32 %v681, 7
  %v683 = vsub.s32 0, %v682
  %v684 = vrot.slane %v679, %v683
  %v814 = vunpack.c.l.b16 %v39
  %v815 = vunpack.c.h.b16 %v39
  %v816 = vunpack.c.l.b16 %v40
  %v817 = vunpack.c.h.b16 %v40
  %v818 = vunpack.c.l.b16 %v41
  %v819 = vunpack.c.h.b16 %v41
  %v820 = vunpack.c.l.b16 %v42
  %v821 = vunpack.c.h.b16 %v42
  %v822 = vunpack.c.l.b16 %v43
  %v823 = vunpack.c.h.b16 %v43
  %v824 = vunpack.c.l.b16 %v44
  %v825 = vunpack.c.h.b16 %v44
  %v826 = vunpack.c.l.b16 %v45
  %v827 = vunpack.c.h.b16 %v45
  %v828 = vunpack.c.l.b16 %v46
  %v829 = vunpack.c.h.b16 %v46
  %v830 = vunpack.c.l.b16 %v47
  %v831 = vunpack.c.h.b16 %v47
  %v832 = vunpack.c.l.b16 %v48
  %v833 = vunpack.c.h.b16 %v48
  %v834 = vunpack.c.l.b16 %v49
  %v835 = vunpack.c.h.b16 %v49
  %v836 = vunpack.c.l.b16 %v50
  %v837 = vunpack.c.h.b16 %v50
  %v838 = vunpack.c.l.b16 %v51
  %v839 = vunpack.c.h.b16 %v51
  %v840 = vunpack.c.l.b16 %v52
  %v841 = vunpack.c.h.b16 %v52
  %v842 = vunpack.c.l.b16 %v53
  %v843 = vunpack.c.h.b16 %v53
  %v844 = vunpack.c.l.b16 %v54
  %v845 = vunpack.c.h.b16 %v54
  %v846 = vunpack.c.l.b16 %v55
  %v847 = vunpack.c.h.b16 %v55
  %v848 = vunpack.c.l.b16 %v56
  %v849 = vunpack.c.h.b16 %v56
  %v850 = vunpack.c.l.b16 %v57
  %v851 = vunpack.c.h.b16 %v57
  %v852 = vunpack.c.l.b16 %v58
  %v853 = vunpack.c.h.b16 %v58
  %v854 = vunpack.c.l.b16 %v59
  %v855 = vunpack.c.h.b16 %v59
  %v856 = vunpack.c.l.b16 %v60
  %v857 = vunpack.c.h.b16 %v60
  %v858 = vunpack.c.l.b16 %v61
  %v859 = vunpack.c.h.b16 %v61
  %v860 = vunpack.c.l.b16 %v62
  %v861 = vunpack.c.h.b16 %v62
  %v862 = vunpack.c.l.b16 %v63
  %v863 = vunpack.c.h.b16 %v63
  %v864 = vunpack.c.l.b16 %v64
  %v865 = vunpack.c.h.b16 %v64
  %v866 = vunpack.c.l.b16 %v65
  %v867 = vunpack.c.h.b16 %v65
  %v868 = vunpack.c.l.b16 %v66
  %v869 = vunpack.c.h.b16 %v66
  %v870 = vunpack.c.l.b16 %v67
  %v871 = vunpack.c.h.b16 %v67
  %v872 = vunpack.c.l.b16 %v68
  %v873 = vunpack.c.h.b16 %v68
  %v874 = vunpack.c.l.b16 %v69
  %v875 = vunpack.c.h.b16 %v69
  %v876 = vunpack.c.l.b16 %v70
  %v877 = vunpack.c.h.b16 %v70
  %v878 = vunpack.c.l.b16 %v71
  %v879 = vunpack.c.h.b16 %v71
  %v880 = vunpack.c.l.b16 %v72
  %v881 = vunpack.c.h.b16 %v72
  %v882 = vunpack.c.l.b16 %v73
  %v883 = vunpack.c.h.b16 %v73
  %v884 = vunpack.c.l.b16 %v74
  %v885 = vunpack.c.h.b16 %v74
  %v886 = vunpack.c.l.b16 %v75
  %v887 = vunpack.c.h.b16 %v75
  %v888 = vunpack.c.l.b16 %v76
  %v889 = vunpack.c.h.b16 %v76
  %v890 = vunpack.c.l.b16 %v77
  %v891 = vunpack.c.h.b16 %v77
  %v892 = vunpack.c.l.b16 %v78
  %v893 = vunpack.c.h.b16 %v78
  %v894 = vunpack.c.l.b16 %v79
  %v895 = vunpack.c.h.b16 %v79
  %v896 = vunpack.c.l.b16 %v80
  %v897 = vunpack.c.h.b16 %v80
  %v898 = vunpack.c.l.b16 %v81
  %v899 = vunpack.c.h.b16 %v81
  %v900 = vunpack.c.l.b16 %v82
  %v901 = vunpack.c.h.b16 %v82
  %v902 = vunpack.c.l.b16 %v83
  %v903 = vunpack.c.h.b16 %v83
  %v904 = vunpack.c.l.b16 %v84
  %v905 = vunpack.c.h.b16 %v84
  %v906 = vunpack.c.l.b16 %v85
  %v907 = vunpack.c.h.b16 %v85
  %v908 = vunpack.c.l.b16 %v86
  %v909 = vunpack.c.h.b16 %v86
  %v910 = vunpack.c.l.b16 %v87
  %v911 = vunpack.c.h.b16 %v87
  %v912 = vunpack.c.l.b16 %v88
  %v913 = vunpack.c.h.b16 %v88
  %v914 = vunpack.c.l.b16 %v89
  %v915 = vunpack.c.h.b16 %v89
  %v916 = vunpack.c.l.b16 %v90
  %v917 = vunpack.c.h.b16 %v90
  %v918 = vunpack.c.l.b16 %v91
  %v919 = vunpack.c.h.b16 %v91
  %v920 = vunpack.c.l.b16 %v92
  %v921 = vunpack.c.h.b16 %v92
  %v922 = vunpack.c.l.b16 %v93
  %v923 = vunpack.c.h.b16 %v93
  %v924 = vunpack.c.l.b16 %v94
  %v925 = vunpack.c.h.b16 %v94
  %v926 = vunpack.c.l.b16 %v95
  %v927 = vunpack.c.h.b16 %v95
  %v928 = vunpack.c.l.b16 %v96
  %v929 = vunpack.c.h.b16 %v96
  %v930 = vunpack.c.l.b16 %v97
  %v931 = vunpack.c.h.b16 %v97
  %v932 = vunpack.c.l.b16 %v98
  %v933 = vunpack.c.h.b16 %v98
  %v934 = vunpack.c.l.b16 %v99
  %v935 = vunpack.c.h.b16 %v99
  %v936 = vunpack.c.l.b16 %v100
  %v937 = vunpack.c.h.b16 %v100
  %v938 = vunpack.c.l.b16 %v101
  %v939 = vunpack.c.h.b16 %v101
  %v940 = vunpack.c.l.b16 %v102
  %v941 = vunpack.c.h.b16 %v102
  %v942 = vunpack.c.l.b16 %v103
  %v943 = vunpack.c.h.b16 %v103
  %v944 = vunpack.c.l.b16 %v104
  %v945 = vunpack.c.h.b16 %v104
  %v946 = vunpack.c.l.b16 %v105
  %v947 = vunpack.c.h.b16 %v105
  %v948 = vunpack.c.l.b16 %v106
  %v949 = vunpack.c.h.b16 %v106
  %v950 = vunpack.c.l.b16 %v107
  %v951 = vunpack.c.h.b16 %v107
  %v952 = vunpack.c.l.b16 %v108
  %v953 = vunpack.c.h.b16 %v108
  %v954 = vunpack.c.l.b16 %v109
  %v955 = vunpack.c.h.b16 %v109
  %v956 = vunpack.c.l.b16 %v110
  %v957 = vunpack.c.h.b16 %v110
  %v958 = vunpack.c.l.b16 %v111
  %v959 = vunpack.c.h.b16 %v111
  %v960 = vunpack.c.l.b16 %v112
  %v961 = vunpack.c.h.b16 %v112
  %v962 = vunpack.c.l.b16 %v113
  %v963 = vunpack.c.h.b16 %v113
  %v964 = vunpack.c.l.b16 %v114
  %v965 = vunpack.c.h.b16 %v114
  %v966 = vunpack.c.l.b16 %v115
  %v967 = vunpack.c.h.b16 %v115
  %v968 = vunpack.c.l.b16 %v116
  %v969 = vunpack.c.h.b16 %v116
  %v970 = vunpack.c.l.b16 %v117
  %v971 = vunpack.c.h.b16 %v117
  %v972 = vunpack.c.l.b16 %v118
  %v973 = vunpack.c.h.b16 %v118
  %v974 = vunpack.c.l.b16 %v119
  %v975 = vunpack.c.h.b16 %v119
  %v976 = vunpack.c.l.b16 %v120
  %v977 = vunpack.c.h.b16 %v120
  %v978 = vunpack.c.l.b16 %v121
  %v979 = vunpack.c.h.b16 %v121
  %v980 = vunpack.c.l.b16 %v122
  %v981 = vunpack.c.h.b16 %v122
  %v982 = vunpack.c.l.b16 %v123
  %v983 = vunpack.c.h.b16 %v123
  %v984 = vunpack.c.l.b16 %v124
  %v985 = vunpack.c.h.b16 %v124
  %v986 = vunpack.c.l.b16 %v125
  %v987 = vunpack.c.h.b16 %v125
  %v988 = vunpack.c.l.b16 %v126
  %v989 = vunpack.c.h.b16 %v126
  %v990 = vunpack.c.l.b16 %v127
  %v991 = vunpack.c.h.b16 %v127
  %v992 = vunpack.c.l.b16 %v128
  %v993 = vunpack.c.h.b16 %v128
  %v994 = vunpack.c.l.b16 %v129
  %v995 = vunpack.c.h.b16 %v129
  %v996 = vunpack.c.l.b16 %v130
  %v997 = vunpack.c.h.b16 %v130
  %v998 = vunpack.c.l.b16 %v131
  %v999 = vunpack.c.h.b16 %v131
  %v1000 = vunpack.c.l.b16 %v132
  %v1001 = vunpack.c.h.b16 %v132
  %v1002 = vunpack.c.l.b16 %v133
  %v1003 = vunpack.c.h.b16 %v133
  %v1004 = vunpack.c.l.b16 %v134
  %v1005 = vunpack.c.h.b16 %v134
  %v1006 = vunpack.c.l.b16 %v135
  %v1007 = vunpack.c.h.b16 %v135
  %v1008 = vunpack.c.l.b16 %v136
  %v1009 = vunpack.c.h.b16 %v136
  %v1010 = vunpack.c.l.b16 %v137
  %v1011 = vunpack.c.h.b16 %v137
  %v1012 = vunpack.c.l.b16 %v138
  %v1013 = vunpack.c.h.b16 %v138
  %v1014 = vunpack.c.l.b16 %v139
  %v1015 = vunpack.c.h.b16 %v139
  %v1016 = vunpack.c.l.b16 %v140
  %v1017 = vunpack.c.h.b16 %v140
  %v1018 = vunpack.c.l.b16 %v141
  %v1019 = vunpack.c.h.b16 %v141
  %v1020 = vunpack.c.l.b16 %v142
  %v1021 = vunpack.c.h.b16 %v142
  %v1022 = vunpack.c.l.b16 %v143
  %v1023 = vunpack.c.h.b16 %v143
  %v1024 = vunpack.c.l.b16 %v144
  %v1025 = vunpack.c.h.b16 %v144
  %v1026 = vunpack.c.l.b16 %v145
  %v1027 = vunpack.c.h.b16 %v145
  %v1028 = vunpack.c.l.b16 %v146
  %v1029 = vunpack.c.h.b16 %v146
  %v1030 = vunpack.c.l.b16 %v147
  %v1031 = vunpack.c.h.b16 %v147
  %v1032 = vunpack.c.l.b16 %v148
  %v1033 = vunpack.c.h.b16 %v148
  %v1034 = vunpack.c.l.b16 %v149
  %v1035 = vunpack.c.h.b16 %v149
  %v1036 = vunpack.c.l.b16 %v150
  %v1037 = vunpack.c.h.b16 %v150
  %v1038 = vunpack.c.l.b16 %v151
  %v1039 = vunpack.c.h.b16 %v151
  %v1040 = vunpack.c.l.b16 %v152
  %v1041 = vunpack.c.h.b16 %v152
  %v1042 = vunpack.c.l.b16 %v153
  %v1043 = vunpack.c.h.b16 %v153
  %v1044 = vunpack.c.l.b16 %v154
  %v1045 = vunpack.c.h.b16 %v154
  %v1046 = vunpack.c.l.b16 %v155
  %v1047 = vunpack.c.h.b16 %v155
  %v1048 = vunpack.c.l.b16 %v156
  %v1049 = vunpack.c.h.b16 %v156
  %v1050 = vunpack.c.l.b16 %v157
  %v1051 = vunpack.c.h.b16 %v157
  %v1052 = vunpack.c.l.b16 %v158
  %v1053 = vunpack.c.h.b16 %v158
  %v1054 = vunpack.c.l.b16 %v159
  %v1055 = vunpack.c.h.b16 %v159
  %v1056 = vunpack.c.l.b16 %v160
  %v1057 = vunpack.c.h.b16 %v160
  %v1058 = vunpack.c.l.b16 %v161
  %v1059 = vunpack.c.h.b16 %v161
  %v1060 = vunpack.c.l.b16 %v162
  %v1061 = vunpack.c.h.b16 %v162
  %v1062 = vunpack.c.l.b16 %v163
  %v1063 = vunpack.c.h.b16 %v163
  %v1064 = vunpack.c.l.b16 %v164
  %v1065 = vunpack.c.h.b16 %v164
  %v1066 = vunpack.c.l.b16 %v165
  %v1067 = vunpack.c.h.b16 %v165
  %v1068 = vunpack.c.l.b16 %v166
  %v1069 = vunpack.c.h.b16 %v166
  %v1070 = vpack.c.b16 %v846, %v814
  %v1071 = vpack.c.b16 %v847, %v815
  %v1072 = vpack.c.b16 %v848, %v816
  %v1073 = vpack.c.b16 %v849, %v817
  %v1074 = vpack.c.b16 %v850, %v818
  %v1075 = vpack.c.b16 %v851, %v819
  %v1076 = vpack.c.b16 %v852, %v820
  %v1077 = vpack.c.b16 %v853, %v821
  %v1078 = vpack.c.b16 %v854, %v822
  %v1079 = vpack.c.b16 %v855, %v823
  %v1080 = vpack.c.b16 %v856, %v824
  %v1081 = vpack.c.b16 %v857, %v825
  %v1082 = vpack.c.b16 %v858, %v826
  %v1083 = vpack.c.b16 %v859, %v827
  %v1084 = vpack.c.b16 %v860, %v828
  %v1085 = vpack.c.b16 %v861, %v829
  %v1086 = vpack.c.b16 %v862, %v830
  %v1087 = vpack.c.b16 %v863, %v831
  %v1088 = vpack.c.b16 %v864, %v832
  %v1089 = vpack.c.b16 %v865, %v833
  %v1090 = vpack.c.b16 %v866, %v834
  %v1091 = vpack.c.b16 %v867, %v835
  %v1092 = vpack.c.b16 %v868, %v836
  %v1093 = vpack.c.b16 %v869, %v837
  %v1094 = vpack.c.b16 %v870, %v838
  %v1095 = vpack.c.b16 %v871, %v839
  %v1096 = vpack.c.b16 %v872, %v840
  %v1097 = vpack.c.b16 %v873, %v841
  %v1098 = vpack.c.b16 %v874, %v842
  %v1099 = vpack.c.b16 %v875, %v843
  %v1100 = vpack.c.b16 %v876, %v844
  %v1101 = vpack.c.b16 %v877, %v845
  %v1102 = vpack.c.b16 %v910, %v878
  %v1103 = vpack.c.b16 %v911, %v879
  %v1104 = vpack.c.b16 %v912, %v880
  %v1105 = vpack.c.b16 %v913, %v881
  %v1106 = vpack.c.b16 %v914, %v882
  %v1107 = vpack.c.b16 %v915, %v883
  %v1108 = vpack.c.b16 %v916, %v884
  %v1109 = vpack.c.b16 %v917, %v885
  %v1110 = vpack.c.b16 %v918, %v886
  %v1111 = vpack.c.b16 %v919, %v887
  %v1112 = vpack.c.b16 %v920, %v888
  %v1113 = vpack.c.b16 %v921, %v889
  %v1114 = vpack.c.b16 %v922, %v890
  %v1115 = vpack.c.b16 %v923, %v891
  %v1116 = vpack.c.b16 %v924, %v892
  %v1117 = vpack.c.b16 %v925, %v893
  %v1118 = vpack.c.b16 %v926, %v894
  %v1119 = vpack.c.b16 %v927, %v895
  %v1120 = vpack.c.b16 %v928, %v896
  %v1121 = vpack.c.b16 %v929, %v897
  %v1122 = vpack.c.b16 %v930, %v898
  %v1123 = vpack.c.b16 %v931, %v899
  %v1124 = vpack.c.b16 %v932, %v900
  %v1125 = vpack.c.b16 %v933, %v901
  %v1126 = vpack.c.b16 %v934, %v902
  %v1127 = vpack.c.b16 %v935, %v903
  %v1128 = vpack.c.b16 %v936, %v904
  %v1129 = vpack.c.b16 %v937, %v905
  %v1130 = vpack.c.b16 %v938, %v906
  %v1131 = vpack.c.b16 %v939, %v907
  %v1132 = vpack.c.b16 %v940, %v908
  %v1133 = vpack.c.b16 %v941, %v909
  %v1134 = vpack.c.b16 %v974, %v942
  %v1135 = vpack.c.b16 %v975, %v943
  %v1136 = vpack.c.b16 %v976, %v944
  %v1137 = vpack.c.b16 %v977, %v945
  %v1138 = vpack.c.b16 %v978, %v946
  %v1139 = vpack.c.b16 %v979, %v947
  %v1140 = vpack.c.b16 %v980, %v948
  %v1141 = vpack.c.b16 %v981, %v949
  %v1142 = vpack.c.b16 %v982, %v950
  %v1143 = vpack.c.b16 %v983, %v951
  %v1144 = vpack.c.b16 %v984, %v952
  %v1145 = vpack.c.b16 %v985, %v953
  %v1146 = vpack.c.b16 %v986, %v954
  %v1147 = vpack.c.b16 %v987, %v955
  %v1148 = vpack.c.b16 %v988, %v956
  %v1149 = vpack.c.b16 %v989, %v957
  %v1150 = vpack.c.b16 %v990, %v958
  %v1151 = vpack.c.b16 %v991, %v959
  %v1152 = vpack.c.b16 %v992, %v960
  %v1153 = vpack.c.b16 %v993, %v961
  %v1154 = vpack.c.b16 %v994, %v962
  %v1155 = vpack.c.b16 %v995, %v963
  %v1156 = vpack.c.b16 %v996, %v964
  %v1157 = vpack.c.b16 %v997, %v965
  %v1158 = vpack.c.b16 %v998, %v966
  %v1159 = vpack.c.b16 %v999, %v967
  %v1160 = vpack.c.b16 %v1000, %v968
  %v1161 = vpack.c.b16 %v1001, %v969
  %v1162 = vpack.c.b16 %v1002, %v970
  %v1163 = vpack.c.b16 %v1003, %v971
  %v1164 = vpack.c.b16 %v1004, %v972
  %v1165 = vpack.c.b16 %v1005, %v973
  %v1166 = vpack.c.b16 %v1038, %v1006
  %v1167 = vpack.c.b16 %v1039, %v1007
  %v1168 = vpack.c.b16 %v1040, %v1008
  %v1169 = vpack.c.b16 %v1041, %v1009
  %v1170 = vpack.c.b16 %v1042, %v1010
  %v1171 = vpack.c.b16 %v1043, %v1011
  %v1172 = vpack.c.b16 %v1044, %v1012
  %v1173 = vpack.c.b16 %v1045, %v1013
  %v1174 = vpack.c.b16 %v1046, %v1014
  %v1175 = vpack.c.b16 %v1047, %v1015
  %v1176 = vpack.c.b16 %v1048, %v1016
  %v1177 = vpack.c.b16 %v1049, %v1017
  %v1178 = vpack.c.b16 %v1050, %v1018
  %v1179 = vpack.c.b16 %v1051, %v1019
  %v1180 = vpack.c.b16 %v1052, %v1020
  %v1181 = vpack.c.b16 %v1053, %v1021
  %v1182 = vpack.c.b16 %v1054, %v1022
  %v1183 = vpack.c.b16 %v1055, %v1023
  %v1184 = vpack.c.b16 %v1056, %v1024
  %v1185 = vpack.c.b16 %v1057, %v1025
  %v1186 = vpack.c.b16 %v1058, %v1026
  %v1187 = vpack.c.b16 %v1059, %v1027
  %v1188 = vpack.c.b16 %v1060, %v1028
  %v1189 = vpack.c.b16 %v1061, %v1029
  %v1190 = vpack.c.b16 %v1062, %v1030
  %v1191 = vpack.c.b16 %v1063, %v1031
  %v1192 = vpack.c.b16 %v1064, %v1032
  %v1193 = vpack.c.b16 %v1065, %v1033
  %v1194 = vpack.c.b16 %v1066, %v1034
  %v1195 = vpack.c.b16 %v1067, %v1035
  %v1196 = vpack.c.b16 %v1068, %v1036
  %v1197 = vpack.c.b16 %v1069, %v1037
  %v1838 = vunpack.c.l.b16 %v167
  %v1839 = vunpack.c.l.b16 %v168
  %v1840 = vunpack.c.l.b16 %v169
  %v1841 = vunpack.c.l.b16 %v170
  %v1842 = vunpack.c.l.b16 %v171
  %v1843 = vunpack.c.l.b16 %v172
  %v1844 = vunpack.c.l.b16 %v173
  %v1845 = vunpack.c.l.b16 %v174
  %v1846 = vunpack.c.l.b16 %v175
  %v1847 = vunpack.c.l.b16 %v176
  %v1848 = vunpack.c.l.b16 %v177
  %v1849 = vunpack.c.l.b16 %v178
  %v1850 = vunpack.c.l.b16 %v179
  %v1851 = vunpack.c.l.b16 %v180
  %v1852 = vunpack.c.l.b16 %v181
  %v1853 = vunpack.c.l.b16 %v182
  %v1854 = vunpack.c.l.b16 %v183
  %v1855 = vunpack.c.l.b16 %v184
  %v1856 = vunpack.c.l.b16 %v185
  %v1857 = vunpack.c.l.b16 %v186
  %v1858 = vunpack.c.l.b16 %v187
  %v1859 = vunpack.c.l.b16 %v188
  %v1860 = vunpack.c.l.b16 %v189
  %v1861 = vunpack.c.l.b16 %v190
  %v1862 = vunpack.c.l.b16 %v191
  %v1863 = vunpack.c.l.b16 %v192
  %v1864 = vunpack.c.l.b16 %v193
  %v1865 = vunpack.c.l.b16 %v194
  %v1866 = vunpack.c.l.b16 %v195
  %v1867 = vunpack.c.l.b16 %v196
  %v1868 = vunpack.c.l.b16 %v197
  %v1869 = vunpack.c.l.b16 %v198
  %v1870 = vunpack.c.l.b16 %v199
  %v1871 = vunpack.c.l.b16 %v200
  %v1872 = vunpack.c.l.b16 %v201
  %v1873 = vunpack.c.l.b16 %v202
  %v1874 = vunpack.c.l.b16 %v203
  %v1875 = vunpack.c.l.b16 %v204
  %v1876 = vunpack.c.l.b16 %v205
  %v1877 = vunpack.c.l.b16 %v206
  %v1878 = vunpack.c.l.b16 %v207
  %v1879 = vunpack.c.l.b16 %v208
  %v1880 = vunpack.c.l.b16 %v209
  %v1881 = vunpack.c.l.b16 %v210
  %v1882 = vunpack.c.l.b16 %v211
  %v1883 = vunpack.c.l.b16 %v212
  %v1884 = vunpack.c.l.b16 %v213
  %v1885 = vunpack.c.l.b16 %v214
  %v1886 = vunpack.c.l.b16 %v215
  %v1887 = vunpack.c.l.b16 %v216
  %v1888 = vunpack.c.l.b16 %v217
  %v1889 = vunpack.c.l.b16 %v218
  %v1890 = vunpack.c.l.b16 %v219
  %v1891 = vunpack.c.l.b16 %v220
  %v1892 = vunpack.c.l.b16 %v221
  %v1893 = vunpack.c.l.b16 %v222
  %v1894 = vunpack.c.l.b16 %v223
  %v1895 = vunpack.c.l.b16 %v224
  %v1896 = vunpack.c.l.b16 %v225
  %v1897 = vunpack.c.l.b16 %v226
  %v1898 = vunpack.c.l.b16 %v227
  %v1899 = vunpack.c.l.b16 %v228
  %v1900 = vunpack.c.l.b16 %v229
  %v1901 = vunpack.c.l.b16 %v230
  %v1902 = vunpack.c.l.b16 %v231
  %v1903 = vunpack.c.l.b16 %v232
  %v1904 = vunpack.c.l.b16 %v233
  %v1905 = vunpack.c.l.b16 %v234
  %v1906 = vunpack.c.l.b16 %v235
  %v1907 = vunpack.c.l.b16 %v236
  %v1908 = vunpack.c.l.b16 %v237
  %v1909 = vunpack.c.l.b16 %v238
  %v1910 = vunpack.c.l.b16 %v239
  %v1911 = vunpack.c.l.b16 %v240
  %v1912 = vunpack.c.l.b16 %v241
  %v1913 = vunpack.c.l.b16 %v242
  %v1914 = vunpack.c.l.b16 %v243
  %v1915 = vunpack.c.l.b16 %v244
  %v1916 = vunpack.c.l.b16 %v245
  %v1917 = vunpack.c.l.b16 %v246
  %v1918 = vunpack.c.l.b16 %v247
  %v1919 = vunpack.c.l.b16 %v248
  %v1920 = vunpack.c.l.b16 %v249
  %v1921 = vunpack.c.l.b16 %v250
  %v1922 = vunpack.c.l.b16 %v251
  %v1923 = vunpack.c.l.b16 %v252
  %v1924 = vunpack.c.l.b16 %v253
  %v1925 = vunpack.c.l.b16 %v254
  %v1926 = vunpack.c.l.b16 %v255
  %v1927 = vunpack.c.l.b16 %v256
  %v1928 = vunpack.c.l.b16 %v257
  %v1929 = vunpack.c.l.b16 %v258
  %v1930 = vunpack.c.l.b16 %v259
  %v1931 = vunpack.c.l.b16 %v260
  %v1932 = vunpack.c.l.b16 %v261
  %v1933 = vunpack.c.l.b16 %v262
  %v1934 = vunpack.c.l.b16 %v263
  %v1935 = vunpack.c.l.b16 %v264
  %v1936 = vunpack.c.l.b16 %v265
  %v1937 = vunpack.c.l.b16 %v266
  %v1938 = vunpack.c.l.b16 %v267
  %v1939 = vunpack.c.l.b16 %v268
  %v1940 = vunpack.c.l.b16 %v269
  %v1941 = vunpack.c.l.b16 %v270
  %v1942 = vunpack.c.l.b16 %v271
  %v1943 = vunpack.c.l.b16 %v272
  %v1944 = vunpack.c.l.b16 %v273
  %v1945 = vunpack.c.l.b16 %v274
  %v1946 = vunpack.c.l.b16 %v275
  %v1947 = vunpack.c.l.b16 %v276
  %v1948 = vunpack.c.l.b16 %v277
  %v1949 = vunpack.c.l.b16 %v278
  %v1950 = vunpack.c.l.b16 %v279
  %v1951 = vunpack.c.l.b16 %v280
  %v1952 = vunpack.c.l.b16 %v281
  %v1953 = vunpack.c.l.b16 %v282
  %v1954 = vunpack.c.l.b16 %v283
  %v1955 = vunpack.c.l.b16 %v284
  %v1956 = vunpack.c.l.b16 %v285
  %v1957 = vunpack.c.l.b16 %v286
  %v1958 = vunpack.c.l.b16 %v287
  %v1959 = vunpack.c.l.b16 %v288
  %v1960 = vunpack.c.l.b16 %v289
  %v1961 = vunpack.c.l.b16 %v290
  %v1962 = vunpack.c.l.b16 %v291
  %v1963 = vunpack.c.l.b16 %v292
  %v1964 = vunpack.c.l.b16 %v293
  %v1965 = vunpack.c.l.b16 %v294
  %v1966 = vunpack.c.l.b16 %v295
  %v1967 = vunpack.c.l.b16 %v296
  %v1968 = vunpack.c.l.b16 %v297
  %v1969 = vunpack.c.l.b16 %v298
  %v1970 = vunpack.c.l.b16 %v299
  %v1971 = vunpack.c.l.b16 %v300
  %v1972 = vunpack.c.l.b16 %v301
  %v1973 = vunpack.c.l.b16 %v302
  %v1974 = vunpack.c.l.b16 %v303
  %v1975 = vunpack.c.l.b16 %v304
  %v1976 = vunpack.c.l.b16 %v305
  %v1977 = vunpack.c.l.b16 %v306
  %v1978 = vunpack.c.l.b16 %v307
  %v1979 = vunpack.c.l.b16 %v308
  %v1980 = vunpack.c.l.b16 %v309
  %v1981 = vunpack.c.l.b16 %v310
  %v1982 = vunpack.c.l.b16 %v311
  %v1983 = vunpack.c.l.b16 %v312
  %v1984 = vunpack.c.l.b16 %v313
  %v1985 = vunpack.c.l.b16 %v314
  %v1986 = vunpack.c.l.b16 %v315
  %v1987 = vunpack.c.l.b16 %v316
  %v1988 = vunpack.c.l.b16 %v317
  %v1989 = vunpack.c.l.b16 %v318
  %v1990 = vunpack.c.l.b16 %v319
  %v1991 = vunpack.c.l.b16 %v320
  %v1992 = vunpack.c.l.b16 %v321
  %v1993 = vunpack.c.l.b16 %v322
  %v1994 = vunpack.c.l.b16 %v323
  %v1995 = vunpack.c.l.b16 %v324
  %v1996 = vunpack.c.l.b16 %v325
  %v1997 = vunpack.c.l.b16 %v326
  %v1998 = vunpack.c.l.b16 %v327
  %v1999 = vunpack.c.l.b16 %v328
  %v2000 = vunpack.c.l.b16 %v329
  %v2001 = vunpack.c.l.b16 %v330
  %v2002 = vunpack.c.l.b16 %v331
  %v2003 = vunpack.c.l.b16 %v332
  %v2004 = vunpack.c.l.b16 %v333
  %v2005 = vunpack.c.l.b16 %v334
  %v2006 = vunpack.c.l.b16 %v335
  %v2007 = vunpack.c.l.b16 %v336
  %v2008 = vunpack.c.l.b16 %v337
  %v2009 = vunpack.c.l.b16 %v338
  %v2010 = vunpack.c.l.b16 %v339
  %v2011 = vunpack.c.l.b16 %v340
  %v2012 = vunpack.c.l.b16 %v341
  %v2013 = vunpack.c.l.b16 %v342
  %v2014 = vunpack.c.l.b16 %v343
  %v2015 = vunpack.c.l.b16 %v344
  %v2016 = vunpack.c.l.b16 %v345
  %v2017 = vunpack.c.l.b16 %v346
  %v2018 = vunpack.c.l.b16 %v347
  %v2019 = vunpack.c.l.b16 %v348
  %v2020 = vunpack.c.l.b16 %v349
  %v2021 = vunpack.c.l.b16 %v350
  %v2022 = vunpack.c.l.b16 %v351
  %v2023 = vunpack.c.l.b16 %v352
  %v2024 = vunpack.c.l.b16 %v353
  %v2025 = vunpack.c.l.b16 %v354
  %v2026 = vunpack.c.l.b16 %v355
  %v2027 = vunpack.c.l.b16 %v356
  %v2028 = vunpack.c.l.b16 %v357
  %v2029 = vunpack.c.l.b16 %v358
  %v2030 = vunpack.c.l.b16 %v359
  %v2031 = vunpack.c.l.b16 %v360
  %v2032 = vunpack.c.l.b16 %v361
  %v2033 = vunpack.c.l.b16 %v362
  %v2034 = vunpack.c.l.b16 %v363
  %v2035 = vunpack.c.l.b16 %v364
  %v2036 = vunpack.c.l.b16 %v365
  %v2037 = vunpack.c.l.b16 %v366
  %v2038 = vunpack.c.l.b16 %v367
  %v2039 = vunpack.c.l.b16 %v368
  %v2040 = vunpack.c.l.b16 %v369
  %v2041 = vunpack.c.l.b16 %v370
  %v2042 = vunpack.c.l.b16 %v371
  %v2043 = vunpack.c.l.b16 %v372
  %v2044 = vunpack.c.l.b16 %v373
  %v2045 = vunpack.c.l.b16 %v374
  %v2046 = vunpack.c.l.b16 %v375
  %v2047 = vunpack.c.l.b16 %v376
  %v2048 = vunpack.c.l.b16 %v377
  %v2049 = vunpack.c.l.b16 %v378
  %v2050 = vunpack.c.l.b16 %v379
  %v2051 = vunpack.c.l.b16 %v380
  %v2052 = vunpack.c.l.b16 %v381
  %v2053 = vunpack.c.l.b16 %v382
  %v2054 = vunpack.c.l.b16 %v383
  %v2055 = vunpack.c.l.b16 %v384
  %v2056 = vunpack.c.l.b16 %v385
  %v2057 = vunpack.c.l.b16 %v386
  %v2058 = vunpack.c.l.b16 %v387
  %v2059 = vunpack.c.l.b16 %v388
  %v2060 = vunpack.c.l.b16 %v389
  %v2061 = vunpack.c.l.b16 %v390
  %v2062 = vunpack.c.l.b16 %v391
  %v2063 = vunpack.c.l.b16 %v392
  %v2064 = vunpack.c.l.b16 %v393
  %v2065 = vunpack.c.l.b16 %v394
  %v2066 = vunpack.c.l.b16 %v395
  %v2067 = vunpack.c.l.b16 %v396
  %v2068 = vunpack.c.l.b16 %v397
  %v2069 = vunpack.c.l.b16 %v398
  %v2070 = vunpack.c.l.b16 %v399
  %v2071 = vunpack.c.l.b16 %v400
  %v2072 = vunpack.c.l.b16 %v401
  %v2073 = vunpack.c.l.b16 %v402
  %v2074 = vunpack.c.l.b16 %v403
  %v2075 = vunpack.c.l.b16 %v404
  %v2076 = vunpack.c.l.b16 %v405
  %v2077 = vunpack.c.l.b16 %v406
  %v2078 = vunpack.c.l.b16 %v407
  %v2079 = vunpack.c.l.b16 %v408
  %v2080 = vunpack.c.l.b16 %v409
  %v2081 = vunpack.c.l.b16 %v410
  %v2082 = vunpack.c.l.b16 %v411
  %v2083 = vunpack.c.l.b16 %v412
  %v2084 = vunpack.c.l.b16 %v413
  %v2085 = vunpack.c.l.b16 %v414
  %v2086 = vunpack.c.l.b16 %v415
  %v2087 = vunpack.c.l.b16 %v416
  %v2088 = vunpack.c.l.b16 %v417
  %v2089 = vunpack.c.l.b16 %v418
  %v2090 = vunpack.c.l.b16 %v419
  %v2091 = vunpack.c.l.b16 %v420
  %v2092 = vunpack.c.l.b16 %v421
  %v2093 = vunpack.c.l.b16 %v422
  %v2094 = vunpack.c.l.b16 %v423
  %v2095 = vunpack.c.l.b16 %v424
  %v2096 = vunpack.c.l.b16 %v425
  %v2097 = vunpack.c.l.b16 %v426
  %v2098 = vunpack.c.l.b16 %v427
  %v2099 = vunpack.c.l.b16 %v428
  %v2100 = vunpack.c.l.b16 %v429
  %v2101 = vunpack.c.l.b16 %v430
  %v2102 = vunpack.c.l.b16 %v431
  %v2103 = vunpack.c.l.b16 %v432
  %v2104 = vunpack.c.l.b16 %v433
  %v2105 = vunpack.c.l.b16 %v434
  %v2106 = vunpack.c.l.b16 %v435
  %v2107 = vunpack.c.l.b16 %v436
  %v2108 = vunpack.c.l.b16 %v437
  %v2109 = vunpack.c.l.b16 %v438
  %v2110 = vunpack.c.l.b16 %v439
  %v2111 = vunpack.c.l.b16 %v440
  %v2112 = vunpack.c.l.b16 %v441
  %v2113 = vunpack.c.l.b16 %v442
  %v2114 = vunpack.c.l.b16 %v443
  %v2115 = vunpack.c.l.b16 %v444
  %v2116 = vunpack.c.l.b16 %v445
  %v2117 = vunpack.c.l.b16 %v446
  %v2118 = vunpack.c.l.b16 %v447
  %v2119 = vunpack.c.l.b16 %v448
  %v2120 = vunpack.c.l.b16 %v449
  %v2121 = vunpack.c.l.b16 %v450
  %v2122 = vunpack.c.l.b16 %v451
  %v2123 = vunpack.c.l.b16 %v452
  %v2124 = vunpack.c.l.b16 %v453
  %v2125 = vunpack.c.l.b16 %v454
  %v2126 = vunpack.c.l.b16 %v455
  %v2127 = vunpack.c.l.b16 %v456
  %v2128 = vunpack.c.l.b16 %v457
  %v2129 = vunpack.c.l.b16 %v458
  %v2130 = vunpack.c.l.b16 %v459
  %v2131 = vunpack.c.l.b16 %v460
  %v2132 = vunpack.c.l.b16 %v461
  %v2133 = vunpack.c.l.b16 %v462
  %v2134 = vunpack.c.l.b16 %v463
  %v2135 = vunpack.c.l.b16 %v464
  %v2136 = vunpack.c.l.b16 %v465
  %v2137 = vunpack.c.l.b16 %v466
  %v2138 = vunpack.c.l.b16 %v467
  %v2139 = vunpack.c.l.b16 %v468
  %v2140 = vunpack.c.l.b16 %v469
  %v2141 = vunpack.c.l.b16 %v470
  %v2142 = vunpack.c.l.b16 %v471
  %v2143 = vunpack.c.l.b16 %v472
  %v2144 = vunpack.c.l.b16 %v473
  %v2145 = vunpack.c.l.b16 %v474
  %v2146 = vunpack.c.l.b16 %v475
  %v2147 = vunpack.c.l.b16 %v476
  %v2148 = vunpack.c.l.b16 %v477
  %v2149 = vunpack.c.l.b16 %v478
  %v2150 = vunpack.c.l.b16 %v479
  %v2151 = vunpack.c.l.b16 %v480
  %v2152 = vunpack.c.l.b16 %v481
  %v2153 = vunpack.c.l.b16 %v482
  %v2154 = vunpack.c.l.b16 %v483
  %v2155 = vunpack.c.l.b16 %v484
  %v2156 = vunpack.c.l.b16 %v485
  %v2157 = vunpack.c.l.b16 %v486
  %v2158 = vunpack.c.l.b16 %v487
  %v2159 = vunpack.c.l.b16 %v488
  %v2160 = vunpack.c.l.b16 %v489
  %v2161 = vunpack.c.l.b16 %v490
  %v2162 = vunpack.c.l.b16 %v491
  %v2163 = vunpack.c.l.b16 %v492
  %v2164 = vunpack.c.l.b16 %v493
  %v2165 = vunpack.c.l.b16 %v494
  %v2166 = vunpack.c.l.b16 %v495
  %v2167 = vunpack.c.l.b16 %v496
  %v2168 = vunpack.c.l.b16 %v497
  %v2169 = vunpack.c.l.b16 %v498
  %v2170 = vunpack.c.l.b16 %v499
  %v2171 = vunpack.c.l.b16 %v500
  %v2172 = vunpack.c.l.b16 %v501
  %v2173 = vunpack.c.l.b16 %v502
  %v2174 = vunpack.c.l.b16 %v503
  %v2175 = vunpack.c.l.b16 %v504
  %v2176 = vunpack.c.l.b16 %v505
  %v2177 = vunpack.c.l.b16 %v506
  %v2178 = vunpack.c.l.b16 %v507
  %v2179 = vunpack.c.l.b16 %v508
  %v2180 = vunpack.c.l.b16 %v509
  %v2181 = vunpack.c.l.b16 %v510
  %v2182 = vunpack.c.l.b16 %v511
  %v2183 = vunpack.c.l.b16 %v512
  %v2184 = vunpack.c.l.b16 %v513
  %v2185 = vunpack.c.l.b16 %v514
  %v2186 = vunpack.c.l.b16 %v515
  %v2187 = vunpack.c.l.b16 %v516
  %v2188 = vunpack.c.l.b16 %v517
  %v2189 = vunpack.c.l.b16 %v518
  %v2190 = vunpack.c.l.b16 %v519
  %v2191 = vunpack.c.l.b16 %v520
  %v2192 = vunpack.c.l.b16 %v521
  %v2193 = vunpack.c.l.b16 %v522
  %v2194 = vunpack.c.l.b16 %v523
  %v2195 = vunpack.c.l.b16 %v524
  %v2196 = vunpack.c.l.b16 %v525
  %v2197 = vunpack.c.l.b16 %v526
  %v2198 = vunpack.c.l.b16 %v527
  %v2199 = vunpack.c.l.b16 %v528
  %v2200 = vunpack.c.l.b16 %v529
  %v2201 = vunpack.c.l.b16 %v530
  %v2202 = vunpack.c.l.b16 %v531
  %v2203 = vunpack.c.l.b16 %v532
  %v2204 = vunpack.c.l.b16 %v533
  %v2205 = vunpack.c.l.b16 %v534
  %v2206 = vunpack.c.l.b16 %v535
  %v2207 = vunpack.c.l.b16 %v536
  %v2208 = vunpack.c.l.b16 %v537
  %v2209 = vunpack.c.l.b16 %v538
  %v2210 = vunpack.c.l.b16 %v539
  %v2211 = vunpack.c.l.b16 %v540
  %v2212 = vunpack.c.l.b16 %v541
  %v2213 = vunpack.c.l.b16 %v542
  %v2214 = vunpack.c.l.b16 %v543
  %v2215 = vunpack.c.l.b16 %v544
  %v2216 = vunpack.c.l.b16 %v545
  %v2217 = vunpack.c.l.b16 %v546
  %v2218 = vunpack.c.l.b16 %v547
  %v2219 = vunpack.c.l.b16 %v548
  %v2220 = vunpack.c.l.b16 %v549
  %v2221 = vunpack.c.l.b16 %v550
  %v2222 = vunpack.c.l.b16 %v551
  %v2223 = vunpack.c.l.b16 %v552
  %v2224 = vunpack.c.l.b16 %v553
  %v2225 = vunpack.c.l.b16 %v554
  %v2226 = vunpack.c.l.b16 %v555
  %v2227 = vunpack.c.l.b16 %v556
  %v2228 = vunpack.c.l.b16 %v557
  %v2229 = vunpack.c.l.b16 %v558
  %v2230 = vunpack.c.l.b16 %v559
  %v2231 = vunpack.c.l.b16 %v560
  %v2232 = vunpack.c.l.b16 %v561
  %v2233 = vunpack.c.l.b16 %v562
  %v2234 = vunpack.c.l.b16 %v563
  %v2235 = vunpack.c.l.b16 %v564
  %v2236 = vunpack.c.l.b16 %v565
  %v2237 = vunpack.c.l.b16 %v566
  %v2238 = vunpack.c.l.b16 %v567
  %v2239 = vunpack.c.l.b16 %v568
  %v2240 = vunpack.c.l.b16 %v569
  %v2241 = vunpack.c.l.b16 %v570
  %v2242 = vunpack.c.l.b16 %v571
  %v2243 = vunpack.c.l.b16 %v572
  %v2244 = vunpack.c.l.b16 %v573
  %v2245 = vunpack.c.l.b16 %v574
  %v2246 = vunpack.c.l.b16 %v575
  %v2247 = vunpack.c.l.b16 %v576
  %v2248 = vunpack.c.l.b16 %v577
  %v2249 = vunpack.c.l.b16 %v578
  %v2250 = vunpack.c.l.b16 %v579
  %v2251 = vunpack.c.l.b16 %v580
  %v2252 = vunpack.c.l.b16 %v581
  %v2253 = vunpack.c.l.b16 %v582
  %v2254 = vunpack.c.l.b16 %v583
  %v2255 = vunpack.c.l.b16 %v584
  %v2256 = vunpack.c.l.b16 %v585
  %v2257 = vunpack.c.l.b16 %v586
  %v2258 = vunpack.c.l.b16 %v587
  %v2259 = vunpack.c.l.b16 %v588
  %v2260 = vunpack.c.l.b16 %v589
  %v2261 = vunpack.c.l.b16 %v590
  %v2262 = vunpack.c.l.b16 %v591
  %v2263 = vunpack.c.l.b16 %v592
  %v2264 = vunpack.c.l.b16 %v593
  %v2265 = vunpack.c.l.b16 %v594
  %v2266 = vunpack.c.l.b16 %v595
  %v2267 = vunpack.c.l.b16 %v596
  %v2268 = vunpack.c.l.b16 %v597
  %v2269 = vunpack.c.l.b16 %v598
  %v2270 = vunpack.c.l.b16 %v599
  %v2271 = vunpack.c.l.b16 %v600
  %v2272 = vunpack.c.l.b16 %v601
  %v2273 = vunpack.c.l.b16 %v602
  %v2274 = vunpack.c.l.b16 %v603
  %v2275 = vunpack.c.l.b16 %v604
  %v2276 = vunpack.c.l.b16 %v605
  %v2277 = vunpack.c.l.b16 %v606
  %v2278 = vunpack.c.l.b16 %v607
  %v2279 = vunpack.c.l.b16 %v608
  %v2280 = vunpack.c.l.b16 %v609
  %v2281 = vunpack.c.l.b16 %v610
  %v2282 = vunpack.c.l.b16 %v611
  %v2283 = vunpack.c.l.b16 %v612
  %v2284 = vunpack.c.l.b16 %v613
  %v2285 = vunpack.c.l.b16 %v614
  %v2286 = vunpack.c.l.b16 %v615
  %v2287 = vunpack.c.l.b16 %v616
  %v2288 = vunpack.c.l.b16 %v617
  %v2289 = vunpack.c.l.b16 %v618
  %v2290 = vunpack.c.l.b16 %v619
  %v2291 = vunpack.c.l.b16 %v620
  %v2292 = vunpack.c.l.b16 %v621
  %v2293 = vunpack.c.l.b16 %v622
  %v2294 = vunpack.c.l.b16 %v623
  %v2295 = vunpack.c.l.b16 %v624
  %v2296 = vunpack.c.l.b16 %v625
  %v2297 = vunpack.c.l.b16 %v626
  %v2298 = vunpack.c.l.b16 %v627
  %v2299 = vunpack.c.l.b16 %v628
  %v2300 = vunpack.c.l.b16 %v629
  %v2301 = vunpack.c.l.b16 %v630
  %v2302 = vunpack.c.l.b16 %v631
  %v2303 = vunpack.c.l.b16 %v632
  %v2304 = vunpack.c.l.b16 %v633
  %v2305 = vunpack.c.l.b16 %v634
  %v2306 = vunpack.c.l.b16 %v635
  %v2307 = vunpack.c.l.b16 %v636
  %v2308 = vunpack.c.l.b16 %v637
  %v2309 = vunpack.c.l.b16 %v638
  %v2310 = vunpack.c.l.b16 %v639
  %v2311 = vunpack.c.l.b16 %v640
  %v2312 = vunpack.c.l.b16 %v641
  %v2313 = vunpack.c.l.b16 %v642
  %v2314 = vunpack.c.l.b16 %v643
  %v2315 = vunpack.c.l.b16 %v644
  %v2316 = vunpack.c.l.b16 %v645
  %v2317 = vunpack.c.l.b16 %v646
  %v2318 = vunpack.c.l.b16 %v647
  %v2319 = vunpack.c.l.b16 %v648
  %v2320 = vunpack.c.l.b16 %v649
  %v2321 = vunpack.c.l.b16 %v650
  %v2322 = vunpack.c.l.b16 %v651
  %v2323 = vunpack.c.l.b16 %v652
  %v2324 = vunpack.c.l.b16 %v653
  %v2325 = vunpack.c.l.b16 %v654
  %v2326 = vunpack.c.l.b16 %v655
  %v2327 = vunpack.c.l.b16 %v656
  %v2328 = vunpack.c.l.b16 %v657
  %v2329 = vunpack.c.l.b16 %v658
  %v2330 = vunpack.c.l.b16 %v659
  %v2331 = vunpack.c.l.b16 %v660
  %v2332 = vunpack.c.l.b16 %v661
  %v2333 = vunpack.c.l.b16 %v662
  %v2334 = vunpack.c.l.b16 %v663
  %v2335 = vunpack.c.l.b16 %v664
  %v2336 = vunpack.c.l.b16 %v665
  %v2337 = vunpack.c.l.b16 %v666
  %v2338 = vunpack.c.l.b16 %v667
  %v2339 = vunpack.c.l.b16 %v668
  %v2340 = vunpack.c.l.b16 %v669
  %v2341 = vunpack.c.l.b16 %v670
  %v2342 = vunpack.c.l.b16 %v671
  %v2343 = vunpack.c.l.b16 %v672
  %v2344 = vunpack.c.l.b16 %v673
  %v2345 = vunpack.c.l.b16 %v674
  %v2346 = vunpack.c.l.b16 %v675
  %v2347 = vunpack.c.l.b16 %v676
  %v2348 = vunpack.c.l.b16 %v677
  %v2349 = vunpack.c.l.b16 %v678
  %v2350 = vpack.c.b16 %v1839, %v1838
  %v2351 = vpack.c.b16 %v1841, %v1840
  %v2352 = vpack.c.b16 %v1843, %v1842
  %v2353 = vpack.c.b16 %v1845, %v1844
  %v2354 = vpack.c.b16 %v1847, %v1846
  %v2355 = vpack.c.b16 %v1849, %v1848
  %v2356 = vpack.c.b16 %v1851, %v1850
  %v2357 = vpack.c.b16 %v1853, %v1852
  %v2358 = vpack.c.b16 %v1855, %v1854
  %v2359 = vpack.c.b16 %v1857, %v1856
  %v2360 = vpack.c.b16 %v1859, %v1858
  %v2361 = vpack.c.b16 %v1861, %v1860
  %v2362 = vpack.c.b16 %v1863, %v1862
  %v2363 = vpack.c.b16 %v1865, %v1864
  %v2364 = vpack.c.b16 %v1867, %v1866
  %v2365 = vpack.c.b16 %v1869, %v1868
  %v2366 = vpack.c.b16 %v1871, %v1870
  %v2367 = vpack.c.b16 %v1873, %v1872
  %v2368 = vpack.c.b16 %v1875, %v1874
  %v2369 = vpack.c.b16 %v1877, %v1876
  %v2370 = vpack.c.b16 %v1879, %v1878
  %v2371 = vpack.c.b16 %v1881, %v1880
  %v2372 = vpack.c.b16 %v1883, %v1882
  %v2373 = vpack.c.b16 %v1885, %v1884
  %v2374 = vpack.c.b16 %v1887, %v1886
  %v2375 = vpack.c.b16 %v1889, %v1888
  %v2376 = vpack.c.b16 %v1891, %v1890
  %v2377 = vpack.c.b16 %v1893, %v1892
  %v2378 = vpack.c.b16 %v1895, %v1894
  %v2379 = vpack.c.b16 %v1897, %v1896
  %v2380 = vpack.c.b16 %v1899, %v1898
  %v2381 = vpack.c.b16 %v1901, %v1900
  %v2382 = vpack.c.b16 %v1903, %v1902
  %v2383 = vpack.c.b16 %v1905, %v1904
  %v2384 = vpack.c.b16 %v1907, %v1906
  %v2385 = vpack.c.b16 %v1909, %v1908
  %v2386 = vpack.c.b16 %v1911, %v1910
  %v2387 = vpack.c.b16 %v1913, %v1912
  %v2388 = vpack.c.b16 %v1915, %v1914
  %v2389 = vpack.c.b16 %v1917, %v1916
  %v2390 = vpack.c.b16 %v1919, %v1918
  %v2391 = vpack.c.b16 %v1921, %v1920
  %v2392 = vpack.c.b16 %v1923, %v1922
  %v2393 = vpack.c.b16 %v1925, %v1924
  %v2394 = vpack.c.b16 %v1927, %v1926
  %v2395 = vpack.c.b16 %v1929, %v1928
  %v2396 = vpack.c.b16 %v1931, %v1930
  %v2397 = vpack.c.b16 %v1933, %v1932
  %v2398 = vpack.c.b16 %v1935, %v1934
  %v2399 = vpack.c.b16 %v1937, %v1936
  %v2400 = vpack.c.b16 %v1939, %v1938
  %v2401 = vpack.c.b16 %v1941, %v1940
  %v2402 = vpack.c.b16 %v1943, %v1942
  %v2403 = vpack.c.b16 %v1945, %v1944
  %v2404 = vpack.c.b16 %v1947, %v1946
  %v2405 = vpack.c.b16 %v1949, %v1948
  %v2406 = vpack.c.b16 %v1951, %v1950
  %v2407 = vpack.c.b16 %v1953, %v1952
  %v2408 = vpack.c.b16 %v1955, %v1954
  %v2409 = vpack.c.b16 %v1957, %v1956
  %v2410 = vpack.c.b16 %v1959, %v1958
  %v2411 = vpack.c.b16 %v1961, %v1960
  %v2412 = vpack.c.b16 %v1963, %v1962
  %v2413 = vpack.c.b16 %v1965, %v1964
  %v2414 = vpack.c.b16 %v1967, %v1966
  %v2415 = vpack.c.b16 %v1969, %v1968
  %v2416 = vpack.c.b16 %v1971, %v1970
  %v2417 = vpack.c.b16 %v1973, %v1972
  %v2418 = vpack.c.b16 %v1975, %v1974
  %v2419 = vpack.c.b16 %v1977, %v1976
  %v2420 = vpack.c.b16 %v1979, %v1978
  %v2421 = vpack.c.b16 %v1981, %v1980
  %v2422 = vpack.c.b16 %v1983, %v1982
  %v2423 = vpack.c.b16 %v1985, %v1984
  %v2424 = vpack.c.b16 %v1987, %v1986
  %v2425 = vpack.c.b16 %v1989, %v1988
  %v2426 = vpack.c.b16 %v1991, %v1990
  %v2427 = vpack.c.b16 %v1993, %v1992
  %v2428 = vpack.c.b16 %v1995, %v1994
  %v2429 = vpack.c.b16 %v1997, %v1996
  %v2430 = vpack.c.b16 %v1999, %v1998
  %v2431 = vpack.c.b16 %v2001, %v2000
  %v2432 = vpack.c.b16 %v2003, %v2002
  %v2433 = vpack.c.b16 %v2005, %v2004
  %v2434 = vpack.c.b16 %v2007, %v2006
  %v2435 = vpack.c.b16 %v2009, %v2008
  %v2436 = vpack.c.b16 %v2011, %v2010
  %v2437 = vpack.c.b16 %v2013, %v2012
  %v2438 = vpack.c.b16 %v2015, %v2014
  %v2439 = vpack.c.b16 %v2017, %v2016
  %v2440 = vpack.c.b16 %v2019, %v2018
  %v2441 = vpack.c.b16 %v2021, %v2020
  %v2442 = vpack.c.b16 %v2023, %v2022
  %v2443 = vpack.c.b16 %v2025, %v2024
  %v2444 = vpack.c.b16 %v2027, %v2026
  %v2445 = vpack.c.b16 %v2029, %v2028
  %v2446 = vpack.c.b16 %v2031, %v2030
  %v2447 = vpack.c.b16 %v2033, %v2032
  %v2448 = vpack.c.b16 %v2035, %v2034
  %v2449 = vpack.c.b16 %v2037, %v2036
  %v2450 = vpack.c.b16 %v2039, %v2038
  %v2451 = vpack.c.b16 %v2041, %v2040
  %v2452 = vpack.c.b16 %v2043, %v2042
  %v2453 = vpack.c.b16 %v2045, %v2044
  %v2454 = vpack.c.b16 %v2047, %v2046
  %v2455 = vpack.c.b16 %v2049, %v2048
  %v2456 = vpack.c.b16 %v2051, %v2050
  %v2457 = vpack.c.b16 %v2053, %v2052
  %v2458 = vpack.c.b16 %v2055, %v2054
  %v2459 = vpack.c.b16 %v2057, %v2056
  %v2460 = vpack.c.b16 %v2059, %v2058
  %v2461 = vpack.c.b16 %v2061, %v2060
  %v2462 = vpack.c.b16 %v2063, %v2062
  %v2463 = vpack.c.b16 %v2065, %v2064
  %v2464 = vpack.c.b16 %v2067, %v2066
  %v2465 = vpack.c.b16 %v2069, %v2068
  %v2466 = vpack.c.b16 %v2071, %v2070
  %v2467 = vpack.c.b16 %v2073, %v2072
  %v2468 = vpack.c.b16 %v2075, %v2074
  %v2469 = vpack.c.b16 %v2077, %v2076
  %v2470 = vpack.c.b16 %v2079, %v2078
  %v2471 = vpack.c.b16 %v2081, %v2080
  %v2472 = vpack.c.b16 %v2083, %v2082
  %v2473 = vpack.c.b16 %v2085, %v2084
  %v2474 = vpack.c.b16 %v2087, %v2086
  %v2475 = vpack.c.b16 %v2089, %v2088
  %v2476 = vpack.c.b16 %v2091, %v2090
  %v2477 = vpack.c.b16 %v2093, %v2092
  %v2478 = vpack.c.b16 %v2095, %v2094
  %v2479 = vpack.c.b16 %v2097, %v2096
  %v2480 = vpack.c.b16 %v2099, %v2098
  %v2481 = vpack.c.b16 %v2101, %v2100
  %v2482 = vpack.c.b16 %v2103, %v2102
  %v2483 = vpack.c.b16 %v2105, %v2104
  %v2484 = vpack.c.b16 %v2107, %v2106
  %v2485 = vpack.c.b16 %v2109, %v2108
  %v2486 = vpack.c.b16 %v2111, %v2110
  %v2487 = vpack.c.b16 %v2113, %v2112
  %v2488 = vpack.c.b16 %v2115, %v2114
  %v2489 = vpack.c.b16 %v2117, %v2116
  %v2490 = vpack.c.b16 %v2119, %v2118
  %v2491 = vpack.c.b16 %v2121, %v2120
  %v2492 = vpack.c.b16 %v2123, %v2122
  %v2493 = vpack.c.b16 %v2125, %v2124
  %v2494 = vpack.c.b16 %v2127, %v2126
  %v2495 = vpack.c.b16 %v2129, %v2128
  %v2496 = vpack.c.b16 %v2131, %v2130
  %v2497 = vpack.c.b16 %v2133, %v2132
  %v2498 = vpack.c.b16 %v2135, %v2134
  %v2499 = vpack.c.b16 %v2137, %v2136
  %v2500 = vpack.c.b16 %v2139, %v2138
  %v2501 = vpack.c.b16 %v2141, %v2140
  %v2502 = vpack.c.b16 %v2143, %v2142
  %v2503 = vpack.c.b16 %v2145, %v2144
  %v2504 = vpack.c.b16 %v2147, %v2146
  %v2505 = vpack.c.b16 %v2149, %v2148
  %v2506 = vpack.c.b16 %v2151, %v2150
  %v2507 = vpack.c.b16 %v2153, %v2152
  %v2508 = vpack.c.b16 %v2155, %v2154
  %v2509 = vpack.c.b16 %v2157, %v2156
  %v2510 = vpack.c.b16 %v2159, %v2158
  %v2511 = vpack.c.b16 %v2161, %v2160
  %v2512 = vpack.c.b16 %v2163, %v2162
  %v2513 = vpack.c.b16 %v2165, %v2164
  %v2514 = vpack.c.b16 %v2167, %v2166
  %v2515 = vpack.c.b16 %v2169, %v2168
  %v2516 = vpack.c.b16 %v2171, %v2170
  %v2517 = vpack.c.b16 %v2173, %v2172
  %v2518 = vpack.c.b16 %v2175, %v2174
  %v2519 = vpack.c.b16 %v2177, %v2176
  %v2520 = vpack.c.b16 %v2179, %v2178
  %v2521 = vpack.c.b16 %v2181, %v2180
  %v2522 = vpack.c.b16 %v2183, %v2182
  %v2523 = vpack.c.b16 %v2185, %v2184
  %v2524 = vpack.c.b16 %v2187, %v2186
  %v2525 = vpack.c.b16 %v2189, %v2188
  %v2526 = vpack.c.b16 %v2191, %v2190
  %v2527 = vpack.c.b16 %v2193, %v2192
  %v2528 = vpack.c.b16 %v2195, %v2194
  %v2529 = vpack.c.b16 %v2197, %v2196
  %v2530 = vpack.c.b16 %v2199, %v2198
  %v2531 = vpack.c.b16 %v2201, %v2200
  %v2532 = vpack.c.b16 %v2203, %v2202
  %v2533 = vpack.c.b16 %v2205, %v2204
  %v2534 = vpack.c.b16 %v2207, %v2206
  %v2535 = vpack.c.b16 %v2209, %v2208
  %v2536 = vpack.c.b16 %v2211, %v2210
  %v2537 = vpack.c.b16 %v2213, %v2212
  %v2538 = vpack.c.b16 %v2215, %v2214
  %v2539 = vpack.c.b16 %v2217, %v2216
  %v2540 = vpack.c.b16 %v2219, %v2218
  %v2541 = vpack.c.b16 %v2221, %v2220
  %v2542 = vpack.c.b16 %v2223, %v2222
  %v2543 = vpack.c.b16 %v2225, %v2224
  %v2544 = vpack.c.b16 %v2227, %v2226
  %v2545 = vpack.c.b16 %v2229, %v2228
  %v2546 = vpack.c.b16 %v2231, %v2230
  %v2547 = vpack.c.b16 %v2233, %v2232
  %v2548 = vpack.c.b16 %v2235, %v2234
  %v2549 = vpack.c.b16 %v2237, %v2236
  %v2550 = vpack.c.b16 %v2239, %v2238
  %v2551 = vpack.c.b16 %v2241, %v2240
  %v2552 = vpack.c.b16 %v2243, %v2242
  %v2553 = vpack.c.b16 %v2245, %v2244
  %v2554 = vpack.c.b16 %v2247, %v2246
  %v2555 = vpack.c.b16 %v2249, %v2248
  %v2556 = vpack.c.b16 %v2251, %v2250
  %v2557 = vpack.c.b16 %v2253, %v2252
  %v2558 = vpack.c.b16 %v2255, %v2254
  %v2559 = vpack.c.b16 %v2257, %v2256
  %v2560 = vpack.c.b16 %v2259, %v2258
  %v2561 = vpack.c.b16 %v2261, %v2260
  %v2562 = vpack.c.b16 %v2263, %v2262
  %v2563 = vpack.c.b16 %v2265, %v2264
  %v2564 = vpack.c.b16 %v2267, %v2266
  %v2565 = vpack.c.b16 %v2269, %v2268
  %v2566 = vpack.c.b16 %v2271, %v2270
  %v2567 = vpack.c.b16 %v2273, %v2272
  %v2568 = vpack.c.b16 %v2275, %v2274
  %v2569 = vpack.c.b16 %v2277, %v2276
  %v2570 = vpack.c.b16 %v2279, %v2278
  %v2571 = vpack.c.b16 %v2281, %v2280
  %v2572 = vpack.c.b16 %v2283, %v2282
  %v2573 = vpack.c.b16 %v2285, %v2284
  %v2574 = vpack.c.b16 %v2287, %v2286
  %v2575 = vpack.c.b16 %v2289, %v2288
  %v2576 = vpack.c.b16 %v2291, %v2290
  %v2577 = vpack.c.b16 %v2293, %v2292
  %v2578 = vpack.c.b16 %v2295, %v2294
  %v2579 = vpack.c.b16 %v2297, %v2296
  %v2580 = vpack.c.b16 %v2299, %v2298
  %v2581 = vpack.c.b16 %v2301, %v2300
  %v2582 = vpack.c.b16 %v2303, %v2302
  %v2583 = vpack.c.b16 %v2305, %v2304
  %v2584 = vpack.c.b16 %v2307, %v2306
  %v2585 = vpack.c.b16 %v2309, %v2308
  %v2586 = vpack.c.b16 %v2311, %v2310
  %v2587 = vpack.c.b16 %v2313, %v2312
  %v2588 = vpack.c.b16 %v2315, %v2314
  %v2589 = vpack.c.b16 %v2317, %v2316
  %v2590 = vpack.c.b16 %v2319, %v2318
  %v2591 = vpack.c.b16 %v2321, %v2320
  %v2592 = vpack.c.b16 %v2323, %v2322
  %v2593 = vpack.c.b16 %v2325, %v2324
  %v2594 = vpack.c.b16 %v2327, %v2326
  %v2595 = vpack.c.b16 %v2329, %v2328
  %v2596 = vpack.c.b16 %v2331, %v2330
  %v2597 = vpack.c.b16 %v2333, %v2332
  %v2598 = vpack.c.b16 %v2335, %v2334
  %v2599 = vpack.c.b16 %v2337, %v2336
  %v2600 = vpack.c.b16 %v2339, %v2338
  %v2601 = vpack.c.b16 %v2341, %v2340
  %v2602 = vpack.c.b16 %v2343, %v2342
  %v2603 = vpack.c.b16 %v2345, %v2344
  %v2604 = vpack.c.b16 %v2347, %v2346
  %v2605 = vpack.c.b16 %v2349, %v2348
  %2862 = vmatprep.subr.bf16.mxu0 0
  %2863 = vmatpush1.bf16.msra.mxu0 %v2350
  %2864 = vmatprep.subr.bf16.mxu0 0
  %2865 = vmatpush1.bf16.msra.mxu0 %v2351
  %2866 = vmatprep.subr.bf16.mxu0 0
  %2867 = vmatpush1.bf16.msra.mxu0 %v2352
  %2868 = vmatprep.subr.bf16.mxu0 0
  %2869 = vmatpush1.bf16.msra.mxu0 %v2353
  %2870 = vmatprep.subr.bf16.mxu0 0
  %2871 = vmatpush1.bf16.msra.mxu0 %v2354
  %2872 = vmatprep.subr.bf16.mxu0 0
  %2873 = vmatpush1.bf16.msra.mxu0 %v2355
  %2874 = vmatprep.subr.bf16.mxu0 0
  %2875 = vmatpush1.bf16.msra.mxu0 %v2356
  %2876 = vmatprep.subr.bf16.mxu0 0
  %2877 = vmatpush1.bf16.msra.mxu0 %v2357
  %2878 = vmatprep.subr.bf16.mxu0 0
  %2879 = vmatpush1.bf16.msra.mxu0 %v2358
  %2880 = vmatprep.subr.bf16.mxu0 0
  %2881 = vmatpush1.bf16.msra.mxu0 %v2359
  %2882 = vmatprep.subr.bf16.mxu0 0
  %2883 = vmatpush1.bf16.msra.mxu0 %v2360
  %2884 = vmatprep.subr.bf16.mxu0 0
  %2885 = vmatpush1.bf16.msra.mxu0 %v2361
  %2886 = vmatprep.subr.bf16.mxu0 0
  %2887 = vmatpush1.bf16.msra.mxu0 %v2362
  %2888 = vmatprep.subr.bf16.mxu0 0
  %2889 = vmatpush1.bf16.msra.mxu0 %v2363
  %2890 = vmatprep.subr.bf16.mxu0 0
  %2891 = vmatpush1.bf16.msra.mxu0 %v2364
  %2892 = vmatprep.subr.bf16.mxu0 0
  %2893 = vmatpush1.bf16.msra.mxu0 %v2365
  %2894 = vmatprep.mubr.bf16.mxu0 %v1071
  %2895 = vmatmul.mubr.bf16.gmra.mrb[0].mxu0 %v1070
  %v2896 = vpop.f32.mrb[0].mxu0
  %v2897 = vadd.f32 %v684, %v2896
  %v2898 = vpop.f32.mrb[0].mxu0
  %v2899 = vpop.f32.mrb[0].mxu0
  %v2900 = vadd.f32 %v684, %v2899
  %v2901 = vpop.f32.mrb[0].mxu0
  %2902 = vmatprep.mubr.bf16.mxu0 %v1103
  %2903 = vmatmul.mubr.bf16.gmra.mrb[0].mxu0 %v1102
  %v2904 = vpop.f32.mrb[0].mxu0
  %v2905 = vadd.f32 %v684, %v2904
  %v2906 = vpop.f32.mrb[0].mxu0
  %v2907 = vpop.f32.mrb[0].mxu0
  %v2908 = vadd.f32 %v684, %v2907
  %v2909 = vpop.f32.mrb[0].mxu0
  %2910 = vmatprep.mubr.bf16.mxu0 %v1135
  %2911 = vmatmul.mubr.bf16.gmra.mrb[0].mxu0 %v1134
  %v2912 = vpop.f32.mrb[0].mxu0
  %v2913 = vadd.f32 %v684, %v2912
  %v2914 = vpop.f32.mrb[0].mxu0
  %v2915 = vpop.f32.mrb[0].mxu0
  %v2916 = vadd.f32 %v684, %v2915
  %v2917 = vpop.f32.mrb[0].mxu0
  %2918 = vmatprep.mubr.bf16.mxu0 %v1167
  %2919 = vmatmul.mubr.bf16.gmra.mrb[0].mxu0 %v1166
  %v2920 = vpop.f32.mrb[0].mxu0
  %v2921 = vadd.f32 %v684, %v2920
  %v2922 = vpop.f32.mrb[0].mxu0
  %v2923 = vpop.f32.mrb[0].mxu0
  %v2924 = vadd.f32 %v684, %v2923
  %v2925 = vpop.f32.mrb[0].mxu0
  %2926 = vdwg.mxu0
  %2927 = vmatprep.subr.bf16.mxu0 0
  %2928 = vmatpush1.bf16.msra.mxu0 %v2366
  %2929 = vmatprep.subr.bf16.mxu0 0
  %2930 = vmatpush1.bf16.msra.mxu0 %v2367
  %2931 = vmatprep.subr.bf16.mxu0 0
  %2932 = vmatpush1.bf16.msra.mxu0 %v2368
  %2933 = vmatprep.subr.bf16.mxu0 0
  %2934 = vmatpush1.bf16.msra.mxu0 %v2369
  %2935 = vmatprep.subr.bf16.mxu0 0
  %2936 = vmatpush1.bf16.msra.mxu0 %v2370
  %2937 = vmatprep.subr.bf16.mxu0 0
  %2938 = vmatpush1.bf16.msra.mxu0 %v2371
  %2939 = vmatprep.subr.bf16.mxu0 0
  %2940 = vmatpush1.bf16.msra.mxu0 %v2372
  %2941 = vmatprep.subr.bf16.mxu0 0
  %2942 = vmatpush1.bf16.msra.mxu0 %v2373
  %2943 = vmatprep.subr.bf16.mxu0 0
  %2944 = vmatpush1.bf16.msra.mxu0 %v2374
  %2945 = vmatprep.subr.bf16.mxu0 0
  %2946 = vmatpush1.bf16.msra.mxu0 %v2375
  %2947 = vmatprep.subr.bf16.mxu0 0
  %2948 = vmatpush1.bf16.msra.mxu0 %v2376
  %2949 = vmatprep.subr.bf16.mxu0 0
  %2950 = vmatpush1.bf16.msra.mxu0 %v2377
  %2951 = vmatprep.subr.bf16.mxu0 0
  %2952 = vmatpush1.bf16.msra.mxu0 %v2378
  %2953 = vmatprep.subr.bf16.mxu0 0
  %2954 = vmatpush1.bf16.msra.mxu0 %v2379
  %2955 = vmatprep.subr.bf16.mxu0 0
  %2956 = vmatpush1.bf16.msra.mxu0 %v2380
  %2957 = vmatprep.subr.bf16.mxu0 0
  %2958 = vmatpush1.bf16.msra.mxu0 %v2381
  %2959 = vmatprep.mubr.bf16.mxu0 %v1073
  %2960 = vmatmul.mubr.bf16.gmra.mrb[0].mxu0 %v1072
  %v2961 = vpop.f32.mrb[0].mxu0
  %v2962 = vadd.f32 %v2897, %v2961
  %v2963 = vpop.f32.mrb[0].mxu0
  %v2964 = vpop.f32.mrb[0].mxu0
  %v2965 = vadd.f32 %v2900, %v2964
  %v2966 = vpop.f32.mrb[0].mxu0
  %2967 = vmatprep.mubr.bf16.mxu0 %v1105
  %2968 = vmatmul.mubr.bf16.gmra.mrb[0].mxu0 %v1104
  %v2969 = vpop.f32.mrb[0].mxu0
  %v2970 = vadd.f32 %v2905, %v2969
  %v2971 = vpop.f32.mrb[0].mxu0
  %v2972 = vpop.f32.mrb[0].mxu0
  %v2973 = vadd.f32 %v2908, %v2972
  %v2974 = vpop.f32.mrb[0].mxu0
  %2975 = vmatprep.mubr.bf16.mxu0 %v1137
  %2976 = vmatmul.mubr.bf16.gmra.mrb[0].mxu0 %v1136
  %v2977 = vpop.f32.mrb[0].mxu0
  %v2978 = vadd.f32 %v2913, %v2977
  %v2979 = vpop.f32.mrb[0].mxu0
  %v2980 = vpop.f32.mrb[0].mxu0
  %v2981 = vadd.f32 %v2916, %v2980
  %v2982 = vpop.f32.mrb[0].mxu0
  %2983 = vmatprep.mubr.bf16.mxu0 %v1169
  %2984 = vmatmul.mubr.bf16.gmra.mrb[0].mxu0 %v1168
  %v2985 = vpop.f32.mrb[0].mxu0
  %v2986 = vadd.f32 %v2921, %v2985
  %v2987 = vpop.f32.mrb[0].mxu0
  %v2988 = vpop.f32.mrb[0].mxu0
  %v2989 = vadd.f32 %v2924, %v2988
  %v2990 = vpop.f32.mrb[0].mxu0
  %2991 = vdwg.mxu0
  %2992 = vmatprep.subr.bf16.mxu0 0
  %2993 = vmatpush1.bf16.msra.mxu0 %v2382
  %2994 = vmatprep.subr.bf16.mxu0 0
  %2995 = vmatpush1.bf16.msra.mxu0 %v2383
  %2996 = vmatprep.subr.bf16.mxu0 0
  %2997 = vmatpush1.bf16.msra.mxu0 %v2384
  %2998 = vmatprep.subr.bf16.mxu0 0
  %2999 = vmatpush1.bf16.msra.mxu0 %v2385
  %3000 = vmatprep.subr.bf16.mxu0 0
  %3001 = vmatpush1.bf16.msra.mxu0 %v2386
  %3002 = vmatprep.subr.bf16.mxu0 0
  %3003 = vmatpush1.bf16.msra.mxu0 %v2387
  %3004 = vmatprep.subr.bf16.mxu0 0
  %3005 = vmatpush1.bf16.msra.mxu0 %v2388
  %3006 = vmatprep.subr.bf16.mxu0 0
  %3007 = vmatpush1.bf16.msra.mxu0 %v2389
  %3008 = vmatprep.subr.bf16.mxu0 0
  %3009 = vmatpush1.bf16.msra.mxu0 %v2390
  %3010 = vmatprep.subr.bf16.mxu0 0
  %3011 = vmatpush1.bf16.msra.mxu0 %v2391
  %3012 = vmatprep.subr.bf16.mxu0 0
  %3013 = vmatpush1.bf16.msra.mxu0 %v2392
  %3014 = vmatprep.subr.bf16.mxu0 0
  %3015 = vmatpush1.bf16.msra.mxu0 %v2393
  %3016 = vmatprep.subr.bf16.mxu0 0
  %3017 = vmatpush1.bf16.msra.mxu0 %v2394
  %3018 = vmatprep.subr.bf16.mxu0 0
  %3019 = vmatpush1.bf16.msra.mxu0 %v2395
  %3020 = vmatprep.subr.bf16.mxu0 0
  %3021 = vmatpush1.bf16.msra.mxu0 %v2396
  %3022 = vmatprep.subr.bf16.mxu0 0
  %3023 = vmatpush1.bf16.msra.mxu0 %v2397
  %3024 = vmatprep.mubr.bf16.mxu0 %v1075
  %3025 = vmatmul.mubr.bf16.gmra.mrb[0].mxu0 %v1074
  %v3026 = vpop.f32.mrb[0].mxu0
  %v3027 = vadd.f32 %v2962, %v3026
  %v3028 = vpop.f32.mrb[0].mxu0
  %v3029 = vpop.f32.mrb[0].mxu0
  %v3030 = vadd.f32 %v2965, %v3029
  %v3031 = vpop.f32.mrb[0].mxu0
  %3032 = vmatprep.mubr.bf16.mxu0 %v1107
  %3033 = vmatmul.mubr.bf16.gmra.mrb[0].mxu0 %v1106
  %v3034 = vpop.f32.mrb[0].mxu0
  %v3035 = vadd.f32 %v2970, %v3034
  %v3036 = vpop.f32.mrb[0].mxu0
  %v3037 = vpop.f32.mrb[0].mxu0
  %v3038 = vadd.f32 %v2973, %v3037
  %v3039 = vpop.f32.mrb[0].mxu0
  %3040 = vmatprep.mubr.bf16.mxu0 %v1139
  %3041 = vmatmul.mubr.bf16.gmra.mrb[0].mxu0 %v1138
  %v3042 = vpop.f32.mrb[0].mxu0
  %v3043 = vadd.f32 %v2978, %v3042
  %v3044 = vpop.f32.mrb[0].mxu0
  %v3045 = vpop.f32.mrb[0].mxu0
  %v3046 = vadd.f32 %v2981, %v3045
  %v3047 = vpop.f32.mrb[0].mxu0
  %3048 = vmatprep.mubr.bf16.mxu0 %v1171
  %3049 = vmatmul.mubr.bf16.gmra.mrb[0].mxu0 %v1170
  %v3050 = vpop.f32.mrb[0].mxu0
  %v3051 = vadd.f32 %v2986, %v3050
  %v3052 = vpop.f32.mrb[0].mxu0
  %v3053 = vpop.f32.mrb[0].mxu0
  %v3054 = vadd.f32 %v2989, %v3053
  %v3055 = vpop.f32.mrb[0].mxu0
  %3056 = vdwg.mxu0
  %3057 = vmatprep.subr.bf16.mxu0 0
  %3058 = vmatpush1.bf16.msra.mxu0 %v2398
  %3059 = vmatprep.subr.bf16.mxu0 0
  %3060 = vmatpush1.bf16.msra.mxu0 %v2399
  %3061 = vmatprep.subr.bf16.mxu0 0
  %3062 = vmatpush1.bf16.msra.mxu0 %v2400
  %3063 = vmatprep.subr.bf16.mxu0 0
  %3064 = vmatpush1.bf16.msra.mxu0 %v2401
  %3065 = vmatprep.subr.bf16.mxu0 0
  %3066 = vmatpush1.bf16.msra.mxu0 %v2402
  %3067 = vmatprep.subr.bf16.mxu0 0
  %3068 = vmatpush1.bf16.msra.mxu0 %v2403
  %3069 = vmatprep.subr.bf16.mxu0 0
  %3070 = vmatpush1.bf16.msra.mxu0 %v2404
  %3071 = vmatprep.subr.bf16.mxu0 0
  %3072 = vmatpush1.bf16.msra.mxu0 %v2405
  %3073 = vmatprep.subr.bf16.mxu0 0
  %3074 = vmatpush1.bf16.msra.mxu0 %v2406
  %3075 = vmatprep.subr.bf16.mxu0 0
  %3076 = vmatpush1.bf16.msra.mxu0 %v2407
  %3077 = vmatprep.subr.bf16.mxu0 0
  %3078 = vmatpush1.bf16.msra.mxu0 %v2408
  %3079 = vmatprep.subr.bf16.mxu0 0
  %3080 = vmatpush1.bf16.msra.mxu0 %v2409
  %3081 = vmatprep.subr.bf16.mxu0 0
  %3082 = vmatpush1.bf16.msra.mxu0 %v2410
  %3083 = vmatprep.subr.bf16.mxu0 0
  %3084 = vmatpush1.bf16.msra.mxu0 %v2411
  %3085 = vmatprep.subr.bf16.mxu0 0
  %3086 = vmatpush1.bf16.msra.mxu0 %v2412
  %3087 = vmatprep.subr.bf16.mxu0 0
  %3088 = vmatpush1.bf16.msra.mxu0 %v2413
  %3089 = vmatprep.mubr.bf16.mxu0 %v1077
  %3090 = vmatmul.mubr.bf16.gmra.mrb[0].mxu0 %v1076
  %v3091 = vpop.f32.mrb[0].mxu0
  %v3092 = vadd.f32 %v3027, %v3091
  %v3093 = vpop.f32.mrb[0].mxu0
  %v3094 = vpop.f32.mrb[0].mxu0
  %v3095 = vadd.f32 %v3030, %v3094
  %v3096 = vpop.f32.mrb[0].mxu0
  %3097 = vmatprep.mubr.bf16.mxu0 %v1109
  %3098 = vmatmul.mubr.bf16.gmra.mrb[0].mxu0 %v1108
  %v3099 = vpop.f32.mrb[0].mxu0
  %v3100 = vadd.f32 %v3035, %v3099
  %v3101 = vpop.f32.mrb[0].mxu0
  %v3102 = vpop.f32.mrb[0].mxu0
  %v3103 = vadd.f32 %v3038, %v3102
  %v3104 = vpop.f32.mrb[0].mxu0
  %3105 = vmatprep.mubr.bf16.mxu0 %v1141
  %3106 = vmatmul.mubr.bf16.gmra.mrb[0].mxu0 %v1140
  %v3107 = vpop.f32.mrb[0].mxu0
  %v3108 = vadd.f32 %v3043, %v3107
  %v3109 = vpop.f32.mrb[0].mxu0
  %v3110 = vpop.f32.mrb[0].mxu0
  %v3111 = vadd.f32 %v3046, %v3110
  %v3112 = vpop.f32.mrb[0].mxu0
  %3113 = vmatprep.mubr.bf16.mxu0 %v1173
  %3114 = vmatmul.mubr.bf16.gmra.mrb[0].mxu0 %v1172
  %v3115 = vpop.f32.mrb[0].mxu0
  %v3116 = vadd.f32 %v3051, %v3115
  %v3117 = vpop.f32.mrb[0].mxu0
  %v3118 = vpop.f32.mrb[0].mxu0
  %v3119 = vadd.f32 %v3054, %v3118
  %v3120 = vpop.f32.mrb[0].mxu0
  %3121 = vdwg.mxu0
  %3122 = vmatprep.subr.bf16.mxu0 0
  %3123 = vmatpush1.bf16.msra.mxu0 %v2414
  %3124 = vmatprep.subr.bf16.mxu0 0
  %3125 = vmatpush1.bf16.msra.mxu0 %v2415
  %3126 = vmatprep.subr.bf16.mxu0 0
  %3127 = vmatpush1.bf16.msra.mxu0 %v2416
  %3128 = vmatprep.subr.bf16.mxu0 0
  %3129 = vmatpush1.bf16.msra.mxu0 %v2417
  %3130 = vmatprep.subr.bf16.mxu0 0
  %3131 = vmatpush1.bf16.msra.mxu0 %v2418
  %3132 = vmatprep.subr.bf16.mxu0 0
  %3133 = vmatpush1.bf16.msra.mxu0 %v2419
  %3134 = vmatprep.subr.bf16.mxu0 0
  %3135 = vmatpush1.bf16.msra.mxu0 %v2420
  %3136 = vmatprep.subr.bf16.mxu0 0
  %3137 = vmatpush1.bf16.msra.mxu0 %v2421
  %3138 = vmatprep.subr.bf16.mxu0 0
  %3139 = vmatpush1.bf16.msra.mxu0 %v2422
  %3140 = vmatprep.subr.bf16.mxu0 0
  %3141 = vmatpush1.bf16.msra.mxu0 %v2423
  %3142 = vmatprep.subr.bf16.mxu0 0
  %3143 = vmatpush1.bf16.msra.mxu0 %v2424
  %3144 = vmatprep.subr.bf16.mxu0 0
  %3145 = vmatpush1.bf16.msra.mxu0 %v2425
  %3146 = vmatprep.subr.bf16.mxu0 0
  %3147 = vmatpush1.bf16.msra.mxu0 %v2426
  %3148 = vmatprep.subr.bf16.mxu0 0
  %3149 = vmatpush1.bf16.msra.mxu0 %v2427
  %3150 = vmatprep.subr.bf16.mxu0 0
  %3151 = vmatpush1.bf16.msra.mxu0 %v2428
  %3152 = vmatprep.subr.bf16.mxu0 0
  %3153 = vmatpush1.bf16.msra.mxu0 %v2429
  %3154 = vmatprep.mubr.bf16.mxu0 %v1079
  %3155 = vmatmul.mubr.bf16.gmra.mrb[0].mxu0 %v1078
  %v3156 = vpop.f32.mrb[0].mxu0
  %v3157 = vadd.f32 %v3092, %v3156
  %v3158 = vpop.f32.mrb[0].mxu0
  %v3159 = vpop.f32.mrb[0].mxu0
  %v3160 = vadd.f32 %v3095, %v3159
  %v3161 = vpop.f32.mrb[0].mxu0
  %3162 = vmatprep.mubr.bf16.mxu0 %v1111
  %3163 = vmatmul.mubr.bf16.gmra.mrb[0].mxu0 %v1110
  %v3164 = vpop.f32.mrb[0].mxu0
  %v3165 = vadd.f32 %v3100, %v3164
  %v3166 = vpop.f32.mrb[0].mxu0
  %v3167 = vpop.f32.mrb[0].mxu0
  %v3168 = vadd.f32 %v3103, %v3167
  %v3169 = vpop.f32.mrb[0].mxu0
  %3170 = vmatprep.mubr.bf16.mxu0 %v1143
  %3171 = vmatmul.mubr.bf16.gmra.mrb[0].mxu0 %v1142
  %v3172 = vpop.f32.mrb[0].mxu0
  %v3173 = vadd.f32 %v3108, %v3172
  %v3174 = vpop.f32.mrb[0].mxu0
  %v3175 = vpop.f32.mrb[0].mxu0
  %v3176 = vadd.f32 %v3111, %v3175
  %v3177 = vpop.f32.mrb[0].mxu0
  %3178 = vmatprep.mubr.bf16.mxu0 %v1175
  %3179 = vmatmul.mubr.bf16.gmra.mrb[0].mxu0 %v1174
  %v3180 = vpop.f32.mrb[0].mxu0
  %v3181 = vadd.f32 %v3116, %v3180
  %v3182 = vpop.f32.mrb[0].mxu0
  %v3183 = vpop.f32.mrb[0].mxu0
  %v3184 = vadd.f32 %v3119, %v3183
  %v3185 = vpop.f32.mrb[0].mxu0
  %3186 = vdwg.mxu0
  %3187 = vmatprep.subr.bf16.mxu0 0
  %3188 = vmatpush1.bf16.msra.mxu0 %v2430
  %3189 = vmatprep.subr.bf16.mxu0 0
  %3190 = vmatpush1.bf16.msra.mxu0 %v2431
  %3191 = vmatprep.subr.bf16.mxu0 0
  %3192 = vmatpush1.bf16.msra.mxu0 %v2432
  %3193 = vmatprep.subr.bf16.mxu0 0
  %3194 = vmatpush1.bf16.msra.mxu0 %v2433
  %3195 = vmatprep.subr.bf16.mxu0 0
  %3196 = vmatpush1.bf16.msra.mxu0 %v2434
  %3197 = vmatprep.subr.bf16.mxu0 0
  %3198 = vmatpush1.bf16.msra.mxu0 %v2435
  %3199 = vmatprep.subr.bf16.mxu0 0
  %3200 = vmatpush1.bf16.msra.mxu0 %v2436
  %3201 = vmatprep.subr.bf16.mxu0 0
  %3202 = vmatpush1.bf16.msra.mxu0 %v2437
  %3203 = vmatprep.subr.bf16.mxu0 0
  %3204 = vmatpush1.bf16.msra.mxu0 %v2438
  %3205 = vmatprep.subr.bf16.mxu0 0
  %3206 = vmatpush1.bf16.msra.mxu0 %v2439
  %3207 = vmatprep.subr.bf16.mxu0 0
  %3208 = vmatpush1.bf16.msra.mxu0 %v2440
  %3209 = vmatprep.subr.bf16.mxu0 0
  %3210 = vmatpush1.bf16.msra.mxu0 %v2441
  %3211 = vmatprep.subr.bf16.mxu0 0
  %3212 = vmatpush1.bf16.msra.mxu0 %v2442
  %3213 = vmatprep.subr.bf16.mxu0 0
  %3214 = vmatpush1.bf16.msra.mxu0 %v2443
  %3215 = vmatprep.subr.bf16.mxu0 0
  %3216 = vmatpush1.bf16.msra.mxu0 %v2444
  %3217 = vmatprep.subr.bf16.mxu0 0
  %3218 = vmatpush1.bf16.msra.mxu0 %v2445
  %3219 = vmatprep.mubr.bf16.mxu0 %v1081
  %3220 = vmatmul.mubr.bf16.gmra.mrb[0].mxu0 %v1080
  %v3221 = vpop.f32.mrb[0].mxu0
  %v3222 = vadd.f32 %v3157, %v3221
  %v3223 = vpop.f32.mrb[0].mxu0
  %v3224 = vpop.f32.mrb[0].mxu0
  %v3225 = vadd.f32 %v3160, %v3224
  %v3226 = vpop.f32.mrb[0].mxu0
  %3227 = vmatprep.mubr.bf16.mxu0 %v1113
  %3228 = vmatmul.mubr.bf16.gmra.mrb[0].mxu0 %v1112
  %v3229 = vpop.f32.mrb[0].mxu0
  %v3230 = vadd.f32 %v3165, %v3229
  %v3231 = vpop.f32.mrb[0].mxu0
  %v3232 = vpop.f32.mrb[0].mxu0
  %v3233 = vadd.f32 %v3168, %v3232
  %v3234 = vpop.f32.mrb[0].mxu0
  %3235 = vmatprep.mubr.bf16.mxu0 %v1145
  %3236 = vmatmul.mubr.bf16.gmra.mrb[0].mxu0 %v1144
  %v3237 = vpop.f32.mrb[0].mxu0
  %v3238 = vadd.f32 %v3173, %v3237
  %v3239 = vpop.f32.mrb[0].mxu0
  %v3240 = vpop.f32.mrb[0].mxu0
  %v3241 = vadd.f32 %v3176, %v3240
  %v3242 = vpop.f32.mrb[0].mxu0
  %3243 = vmatprep.mubr.bf16.mxu0 %v1177
  %3244 = vmatmul.mubr.bf16.gmra.mrb[0].mxu0 %v1176
  %v3245 = vpop.f32.mrb[0].mxu0
  %v3246 = vadd.f32 %v3181, %v3245
  %v3247 = vpop.f32.mrb[0].mxu0
  %v3248 = vpop.f32.mrb[0].mxu0
  %v3249 = vadd.f32 %v3184, %v3248
  %v3250 = vpop.f32.mrb[0].mxu0
  %3251 = vdwg.mxu0
  %3252 = vmatprep.subr.bf16.mxu0 0
  %3253 = vmatpush1.bf16.msra.mxu0 %v2446
  %3254 = vmatprep.subr.bf16.mxu0 0
  %3255 = vmatpush1.bf16.msra.mxu0 %v2447
  %3256 = vmatprep.subr.bf16.mxu0 0
  %3257 = vmatpush1.bf16.msra.mxu0 %v2448
  %3258 = vmatprep.subr.bf16.mxu0 0
  %3259 = vmatpush1.bf16.msra.mxu0 %v2449
  %3260 = vmatprep.subr.bf16.mxu0 0
  %3261 = vmatpush1.bf16.msra.mxu0 %v2450
  %3262 = vmatprep.subr.bf16.mxu0 0
  %3263 = vmatpush1.bf16.msra.mxu0 %v2451
  %3264 = vmatprep.subr.bf16.mxu0 0
  %3265 = vmatpush1.bf16.msra.mxu0 %v2452
  %3266 = vmatprep.subr.bf16.mxu0 0
  %3267 = vmatpush1.bf16.msra.mxu0 %v2453
  %3268 = vmatprep.subr.bf16.mxu0 0
  %3269 = vmatpush1.bf16.msra.mxu0 %v2454
  %3270 = vmatprep.subr.bf16.mxu0 0
  %3271 = vmatpush1.bf16.msra.mxu0 %v2455
  %3272 = vmatprep.subr.bf16.mxu0 0
  %3273 = vmatpush1.bf16.msra.mxu0 %v2456
  %3274 = vmatprep.subr.bf16.mxu0 0
  %3275 = vmatpush1.bf16.msra.mxu0 %v2457
  %3276 = vmatprep.subr.bf16.mxu0 0
  %3277 = vmatpush1.bf16.msra.mxu0 %v2458
  %3278 = vmatprep.subr.bf16.mxu0 0
  %3279 = vmatpush1.bf16.msra.mxu0 %v2459
  %3280 = vmatprep.subr.bf16.mxu0 0
  %3281 = vmatpush1.bf16.msra.mxu0 %v2460
  %3282 = vmatprep.subr.bf16.mxu0 0
  %3283 = vmatpush1.bf16.msra.mxu0 %v2461
  %3284 = vmatprep.mubr.bf16.mxu0 %v1083
  %3285 = vmatmul.mubr.bf16.gmra.mrb[0].mxu0 %v1082
  %v3286 = vpop.f32.mrb[0].mxu0
  %v3287 = vadd.f32 %v3222, %v3286
  %v3288 = vpop.f32.mrb[0].mxu0
  %v3289 = vpop.f32.mrb[0].mxu0
  %v3290 = vadd.f32 %v3225, %v3289
  %v3291 = vpop.f32.mrb[0].mxu0
  %3292 = vmatprep.mubr.bf16.mxu0 %v1115
  %3293 = vmatmul.mubr.bf16.gmra.mrb[0].mxu0 %v1114
  %v3294 = vpop.f32.mrb[0].mxu0
  %v3295 = vadd.f32 %v3230, %v3294
  %v3296 = vpop.f32.mrb[0].mxu0
  %v3297 = vpop.f32.mrb[0].mxu0
  %v3298 = vadd.f32 %v3233, %v3297
  %v3299 = vpop.f32.mrb[0].mxu0
  %3300 = vmatprep.mubr.bf16.mxu0 %v1147
  %3301 = vmatmul.mubr.bf16.gmra.mrb[0].mxu0 %v1146
  %v3302 = vpop.f32.mrb[0].mxu0
  %v3303 = vadd.f32 %v3238, %v3302
  %v3304 = vpop.f32.mrb[0].mxu0
  %v3305 = vpop.f32.mrb[0].mxu0
  %v3306 = vadd.f32 %v3241, %v3305
  %v3307 = vpop.f32.mrb[0].mxu0
  %3308 = vmatprep.mubr.bf16.mxu0 %v1179
  %3309 = vmatmul.mubr.bf16.gmra.mrb[0].mxu0 %v1178
  %v3310 = vpop.f32.mrb[0].mxu0
  %v3311 = vadd.f32 %v3246, %v3310
  %v3312 = vpop.f32.mrb[0].mxu0
  %v3313 = vpop.f32.mrb[0].mxu0
  %v3314 = vadd.f32 %v3249, %v3313
  %v3315 = vpop.f32.mrb[0].mxu0
  %3316 = vdwg.mxu0
  %3317 = vmatprep.subr.bf16.mxu0 0
  %3318 = vmatpush1.bf16.msra.mxu0 %v2462
  %3319 = vmatprep.subr.bf16.mxu0 0
  %3320 = vmatpush1.bf16.msra.mxu0 %v2463
  %3321 = vmatprep.subr.bf16.mxu0 0
  %3322 = vmatpush1.bf16.msra.mxu0 %v2464
  %3323 = vmatprep.subr.bf16.mxu0 0
  %3324 = vmatpush1.bf16.msra.mxu0 %v2465
  %3325 = vmatprep.subr.bf16.mxu0 0
  %3326 = vmatpush1.bf16.msra.mxu0 %v2466
  %3327 = vmatprep.subr.bf16.mxu0 0
  %3328 = vmatpush1.bf16.msra.mxu0 %v2467
  %3329 = vmatprep.subr.bf16.mxu0 0
  %3330 = vmatpush1.bf16.msra.mxu0 %v2468
  %3331 = vmatprep.subr.bf16.mxu0 0
  %3332 = vmatpush1.bf16.msra.mxu0 %v2469
  %3333 = vmatprep.subr.bf16.mxu0 0
  %3334 = vmatpush1.bf16.msra.mxu0 %v2470
  %3335 = vmatprep.subr.bf16.mxu0 0
  %3336 = vmatpush1.bf16.msra.mxu0 %v2471
  %3337 = vmatprep.subr.bf16.mxu0 0
  %3338 = vmatpush1.bf16.msra.mxu0 %v2472
  %3339 = vmatprep.subr.bf16.mxu0 0
  %3340 = vmatpush1.bf16.msra.mxu0 %v2473
  %3341 = vmatprep.subr.bf16.mxu0 0
  %3342 = vmatpush1.bf16.msra.mxu0 %v2474
  %3343 = vmatprep.subr.bf16.mxu0 0
  %3344 = vmatpush1.bf16.msra.mxu0 %v2475
  %3345 = vmatprep.subr.bf16.mxu0 0
  %3346 = vmatpush1.bf16.msra.mxu0 %v2476
  %3347 = vmatprep.subr.bf16.mxu0 0
  %3348 = vmatpush1.bf16.msra.mxu0 %v2477
  %3349 = vmatprep.mubr.bf16.mxu0 %v1085
  %3350 = vmatmul.mubr.bf16.gmra.mrb[0].mxu0 %v1084
  %v3351 = vpop.f32.mrb[0].mxu0
  %v3352 = vadd.f32 %v3287, %v3351
  %v3353 = vpop.f32.mrb[0].mxu0
  %v3354 = vpop.f32.mrb[0].mxu0
  %v3355 = vadd.f32 %v3290, %v3354
  %v3356 = vpop.f32.mrb[0].mxu0
  %3357 = vmatprep.mubr.bf16.mxu0 %v1117
  %3358 = vmatmul.mubr.bf16.gmra.mrb[0].mxu0 %v1116
  %v3359 = vpop.f32.mrb[0].mxu0
  %v3360 = vadd.f32 %v3295, %v3359
  %v3361 = vpop.f32.mrb[0].mxu0
  %v3362 = vpop.f32.mrb[0].mxu0
  %v3363 = vadd.f32 %v3298, %v3362
  %v3364 = vpop.f32.mrb[0].mxu0
  %3365 = vmatprep.mubr.bf16.mxu0 %v1149
  %3366 = vmatmul.mubr.bf16.gmra.mrb[0].mxu0 %v1148
  %v3367 = vpop.f32.mrb[0].mxu0
  %v3368 = vadd.f32 %v3303, %v3367
  %v3369 = vpop.f32.mrb[0].mxu0
  %v3370 = vpop.f32.mrb[0].mxu0
  %v3371 = vadd.f32 %v3306, %v3370
  %v3372 = vpop.f32.mrb[0].mxu0
  %3373 = vmatprep.mubr.bf16.mxu0 %v1181
  %3374 = vmatmul.mubr.bf16.gmra.mrb[0].mxu0 %v1180
  %v3375 = vpop.f32.mrb[0].mxu0
  %v3376 = vadd.f32 %v3311, %v3375
  %v3377 = vpop.f32.mrb[0].mxu0
  %v3378 = vpop.f32.mrb[0].mxu0
  %v3379 = vadd.f32 %v3314, %v3378
  %v3380 = vpop.f32.mrb[0].mxu0
  %3381 = vdwg.mxu0
  %3382 = vmatprep.subr.bf16.mxu0 0
  %3383 = vmatpush1.bf16.msra.mxu0 %v2478
  %3384 = vmatprep.subr.bf16.mxu0 0
  %3385 = vmatpush1.bf16.msra.mxu0 %v2479
  %3386 = vmatprep.subr.bf16.mxu0 0
  %3387 = vmatpush1.bf16.msra.mxu0 %v2480
  %3388 = vmatprep.subr.bf16.mxu0 0
  %3389 = vmatpush1.bf16.msra.mxu0 %v2481
  %3390 = vmatprep.subr.bf16.mxu0 0
  %3391 = vmatpush1.bf16.msra.mxu0 %v2482
  %3392 = vmatprep.subr.bf16.mxu0 0
  %3393 = vmatpush1.bf16.msra.mxu0 %v2483
  %3394 = vmatprep.subr.bf16.mxu0 0
  %3395 = vmatpush1.bf16.msra.mxu0 %v2484
  %3396 = vmatprep.subr.bf16.mxu0 0
  %3397 = vmatpush1.bf16.msra.mxu0 %v2485
  %3398 = vmatprep.subr.bf16.mxu0 0
  %3399 = vmatpush1.bf16.msra.mxu0 %v2486
  %3400 = vmatprep.subr.bf16.mxu0 0
  %3401 = vmatpush1.bf16.msra.mxu0 %v2487
  %3402 = vmatprep.subr.bf16.mxu0 0
  %3403 = vmatpush1.bf16.msra.mxu0 %v2488
  %3404 = vmatprep.subr.bf16.mxu0 0
  %3405 = vmatpush1.bf16.msra.mxu0 %v2489
  %3406 = vmatprep.subr.bf16.mxu0 0
  %3407 = vmatpush1.bf16.msra.mxu0 %v2490
  %3408 = vmatprep.subr.bf16.mxu0 0
  %3409 = vmatpush1.bf16.msra.mxu0 %v2491
  %3410 = vmatprep.subr.bf16.mxu0 0
  %3411 = vmatpush1.bf16.msra.mxu0 %v2492
  %3412 = vmatprep.subr.bf16.mxu0 0
  %3413 = vmatpush1.bf16.msra.mxu0 %v2493
  %3414 = vmatprep.mubr.bf16.mxu0 %v1087
  %3415 = vmatmul.mubr.bf16.gmra.mrb[0].mxu0 %v1086
  %v3416 = vpop.f32.mrb[0].mxu0
  %v3417 = vadd.f32 %v3352, %v3416
  %v3418 = vpop.f32.mrb[0].mxu0
  %v3419 = vpop.f32.mrb[0].mxu0
  %v3420 = vadd.f32 %v3355, %v3419
  %v3421 = vpop.f32.mrb[0].mxu0
  %3422 = vmatprep.mubr.bf16.mxu0 %v1119
  %3423 = vmatmul.mubr.bf16.gmra.mrb[0].mxu0 %v1118
  %v3424 = vpop.f32.mrb[0].mxu0
  %v3425 = vadd.f32 %v3360, %v3424
  %v3426 = vpop.f32.mrb[0].mxu0
  %v3427 = vpop.f32.mrb[0].mxu0
  %v3428 = vadd.f32 %v3363, %v3427
  %v3429 = vpop.f32.mrb[0].mxu0
  %3430 = vmatprep.mubr.bf16.mxu0 %v1151
  %3431 = vmatmul.mubr.bf16.gmra.mrb[0].mxu0 %v1150
  %v3432 = vpop.f32.mrb[0].mxu0
  %v3433 = vadd.f32 %v3368, %v3432
  %v3434 = vpop.f32.mrb[0].mxu0
  %v3435 = vpop.f32.mrb[0].mxu0
  %v3436 = vadd.f32 %v3371, %v3435
  %v3437 = vpop.f32.mrb[0].mxu0
  %3438 = vmatprep.mubr.bf16.mxu0 %v1183
  %3439 = vmatmul.mubr.bf16.gmra.mrb[0].mxu0 %v1182
  %v3440 = vpop.f32.mrb[0].mxu0
  %v3441 = vadd.f32 %v3376, %v3440
  %v3442 = vpop.f32.mrb[0].mxu0
  %v3443 = vpop.f32.mrb[0].mxu0
  %v3444 = vadd.f32 %v3379, %v3443
  %v3445 = vpop.f32.mrb[0].mxu0
  %3446 = vdwg.mxu0
  %3447 = vmatprep.subr.bf16.mxu0 0
  %3448 = vmatpush1.bf16.msra.mxu0 %v2494
  %3449 = vmatprep.subr.bf16.mxu0 0
  %3450 = vmatpush1.bf16.msra.mxu0 %v2495
  %3451 = vmatprep.subr.bf16.mxu0 0
  %3452 = vmatpush1.bf16.msra.mxu0 %v2496
  %3453 = vmatprep.subr.bf16.mxu0 0
  %3454 = vmatpush1.bf16.msra.mxu0 %v2497
  %3455 = vmatprep.subr.bf16.mxu0 0
  %3456 = vmatpush1.bf16.msra.mxu0 %v2498
  %3457 = vmatprep.subr.bf16.mxu0 0
  %3458 = vmatpush1.bf16.msra.mxu0 %v2499
  %3459 = vmatprep.subr.bf16.mxu0 0
  %3460 = vmatpush1.bf16.msra.mxu0 %v2500
  %3461 = vmatprep.subr.bf16.mxu0 0
  %3462 = vmatpush1.bf16.msra.mxu0 %v2501
  %3463 = vmatprep.subr.bf16.mxu0 0
  %3464 = vmatpush1.bf16.msra.mxu0 %v2502
  %3465 = vmatprep.subr.bf16.mxu0 0
  %3466 = vmatpush1.bf16.msra.mxu0 %v2503
  %3467 = vmatprep.subr.bf16.mxu0 0
  %3468 = vmatpush1.bf16.msra.mxu0 %v2504
  %3469 = vmatprep.subr.bf16.mxu0 0
  %3470 = vmatpush1.bf16.msra.mxu0 %v2505
  %3471 = vmatprep.subr.bf16.mxu0 0
  %3472 = vmatpush1.bf16.msra.mxu0 %v2506
  %3473 = vmatprep.subr.bf16.mxu0 0
  %3474 = vmatpush1.bf16.msra.mxu0 %v2507
  %3475 = vmatprep.subr.bf16.mxu0 0
  %3476 = vmatpush1.bf16.msra.mxu0 %v2508
  %3477 = vmatprep.subr.bf16.mxu0 0
  %3478 = vmatpush1.bf16.msra.mxu0 %v2509
  %3479 = vmatprep.mubr.bf16.mxu0 %v1089
  %3480 = vmatmul.mubr.bf16.gmra.mrb[0].mxu0 %v1088
  %v3481 = vpop.f32.mrb[0].mxu0
  %v3482 = vadd.f32 %v3417, %v3481
  %v3483 = vpop.f32.mrb[0].mxu0
  %v3484 = vpop.f32.mrb[0].mxu0
  %v3485 = vadd.f32 %v3420, %v3484
  %v3486 = vpop.f32.mrb[0].mxu0
  %3487 = vmatprep.mubr.bf16.mxu0 %v1121
  %3488 = vmatmul.mubr.bf16.gmra.mrb[0].mxu0 %v1120
  %v3489 = vpop.f32.mrb[0].mxu0
  %v3490 = vadd.f32 %v3425, %v3489
  %v3491 = vpop.f32.mrb[0].mxu0
  %v3492 = vpop.f32.mrb[0].mxu0
  %v3493 = vadd.f32 %v3428, %v3492
  %v3494 = vpop.f32.mrb[0].mxu0
  %3495 = vmatprep.mubr.bf16.mxu0 %v1153
  %3496 = vmatmul.mubr.bf16.gmra.mrb[0].mxu0 %v1152
  %v3497 = vpop.f32.mrb[0].mxu0
  %v3498 = vadd.f32 %v3433, %v3497
  %v3499 = vpop.f32.mrb[0].mxu0
  %v3500 = vpop.f32.mrb[0].mxu0
  %v3501 = vadd.f32 %v3436, %v3500
  %v3502 = vpop.f32.mrb[0].mxu0
  %3503 = vmatprep.mubr.bf16.mxu0 %v1185
  %3504 = vmatmul.mubr.bf16.gmra.mrb[0].mxu0 %v1184
  %v3505 = vpop.f32.mrb[0].mxu0
  %v3506 = vadd.f32 %v3441, %v3505
  %v3507 = vpop.f32.mrb[0].mxu0
  %v3508 = vpop.f32.mrb[0].mxu0
  %v3509 = vadd.f32 %v3444, %v3508
  %v3510 = vpop.f32.mrb[0].mxu0
  %3511 = vdwg.mxu0
  %3512 = vmatprep.subr.bf16.mxu0 0
  %3513 = vmatpush1.bf16.msra.mxu0 %v2510
  %3514 = vmatprep.subr.bf16.mxu0 0
  %3515 = vmatpush1.bf16.msra.mxu0 %v2511
  %3516 = vmatprep.subr.bf16.mxu0 0
  %3517 = vmatpush1.bf16.msra.mxu0 %v2512
  %3518 = vmatprep.subr.bf16.mxu0 0
  %3519 = vmatpush1.bf16.msra.mxu0 %v2513
  %3520 = vmatprep.subr.bf16.mxu0 0
  %3521 = vmatpush1.bf16.msra.mxu0 %v2514
  %3522 = vmatprep.subr.bf16.mxu0 0
  %3523 = vmatpush1.bf16.msra.mxu0 %v2515
  %3524 = vmatprep.subr.bf16.mxu0 0
  %3525 = vmatpush1.bf16.msra.mxu0 %v2516
  %3526 = vmatprep.subr.bf16.mxu0 0
  %3527 = vmatpush1.bf16.msra.mxu0 %v2517
  %3528 = vmatprep.subr.bf16.mxu0 0
  %3529 = vmatpush1.bf16.msra.mxu0 %v2518
  %3530 = vmatprep.subr.bf16.mxu0 0
  %3531 = vmatpush1.bf16.msra.mxu0 %v2519
  %3532 = vmatprep.subr.bf16.mxu0 0
  %3533 = vmatpush1.bf16.msra.mxu0 %v2520
  %3534 = vmatprep.subr.bf16.mxu0 0
  %3535 = vmatpush1.bf16.msra.mxu0 %v2521
  %3536 = vmatprep.subr.bf16.mxu0 0
  %3537 = vmatpush1.bf16.msra.mxu0 %v2522
  %3538 = vmatprep.subr.bf16.mxu0 0
  %3539 = vmatpush1.bf16.msra.mxu0 %v2523
  %3540 = vmatprep.subr.bf16.mxu0 0
  %3541 = vmatpush1.bf16.msra.mxu0 %v2524
  %3542 = vmatprep.subr.bf16.mxu0 0
  %3543 = vmatpush1.bf16.msra.mxu0 %v2525
  %3544 = vmatprep.mubr.bf16.mxu0 %v1091
  %3545 = vmatmul.mubr.bf16.gmra.mrb[0].mxu0 %v1090
  %v3546 = vpop.f32.mrb[0].mxu0
  %v3547 = vadd.f32 %v3482, %v3546
  %v3548 = vpop.f32.mrb[0].mxu0
  %v3549 = vpop.f32.mrb[0].mxu0
  %v3550 = vadd.f32 %v3485, %v3549
  %v3551 = vpop.f32.mrb[0].mxu0
  %3552 = vmatprep.mubr.bf16.mxu0 %v1123
  %3553 = vmatmul.mubr.bf16.gmra.mrb[0].mxu0 %v1122
  %v3554 = vpop.f32.mrb[0].mxu0
  %v3555 = vadd.f32 %v3490, %v3554
  %v3556 = vpop.f32.mrb[0].mxu0
  %v3557 = vpop.f32.mrb[0].mxu0
  %v3558 = vadd.f32 %v3493, %v3557
  %v3559 = vpop.f32.mrb[0].mxu0
  %3560 = vmatprep.mubr.bf16.mxu0 %v1155
  %3561 = vmatmul.mubr.bf16.gmra.mrb[0].mxu0 %v1154
  %v3562 = vpop.f32.mrb[0].mxu0
  %v3563 = vadd.f32 %v3498, %v3562
  %v3564 = vpop.f32.mrb[0].mxu0
  %v3565 = vpop.f32.mrb[0].mxu0
  %v3566 = vadd.f32 %v3501, %v3565
  %v3567 = vpop.f32.mrb[0].mxu0
  %3568 = vmatprep.mubr.bf16.mxu0 %v1187
  %3569 = vmatmul.mubr.bf16.gmra.mrb[0].mxu0 %v1186
  %v3570 = vpop.f32.mrb[0].mxu0
  %v3571 = vadd.f32 %v3506, %v3570
  %v3572 = vpop.f32.mrb[0].mxu0
  %v3573 = vpop.f32.mrb[0].mxu0
  %v3574 = vadd.f32 %v3509, %v3573
  %v3575 = vpop.f32.mrb[0].mxu0
  %3576 = vdwg.mxu0
  %3577 = vmatprep.subr.bf16.mxu0 0
  %3578 = vmatpush1.bf16.msra.mxu0 %v2526
  %3579 = vmatprep.subr.bf16.mxu0 0
  %3580 = vmatpush1.bf16.msra.mxu0 %v2527
  %3581 = vmatprep.subr.bf16.mxu0 0
  %3582 = vmatpush1.bf16.msra.mxu0 %v2528
  %3583 = vmatprep.subr.bf16.mxu0 0
  %3584 = vmatpush1.bf16.msra.mxu0 %v2529
  %3585 = vmatprep.subr.bf16.mxu0 0
  %3586 = vmatpush1.bf16.msra.mxu0 %v2530
  %3587 = vmatprep.subr.bf16.mxu0 0
  %3588 = vmatpush1.bf16.msra.mxu0 %v2531
  %3589 = vmatprep.subr.bf16.mxu0 0
  %3590 = vmatpush1.bf16.msra.mxu0 %v2532
  %3591 = vmatprep.subr.bf16.mxu0 0
  %3592 = vmatpush1.bf16.msra.mxu0 %v2533
  %3593 = vmatprep.subr.bf16.mxu0 0
  %3594 = vmatpush1.bf16.msra.mxu0 %v2534
  %3595 = vmatprep.subr.bf16.mxu0 0
  %3596 = vmatpush1.bf16.msra.mxu0 %v2535
  %3597 = vmatprep.subr.bf16.mxu0 0
  %3598 = vmatpush1.bf16.msra.mxu0 %v2536
  %3599 = vmatprep.subr.bf16.mxu0 0
  %3600 = vmatpush1.bf16.msra.mxu0 %v2537
  %3601 = vmatprep.subr.bf16.mxu0 0
  %3602 = vmatpush1.bf16.msra.mxu0 %v2538
  %3603 = vmatprep.subr.bf16.mxu0 0
  %3604 = vmatpush1.bf16.msra.mxu0 %v2539
  %3605 = vmatprep.subr.bf16.mxu0 0
  %3606 = vmatpush1.bf16.msra.mxu0 %v2540
  %3607 = vmatprep.subr.bf16.mxu0 0
  %3608 = vmatpush1.bf16.msra.mxu0 %v2541
  %3609 = vmatprep.mubr.bf16.mxu0 %v1093
  %3610 = vmatmul.mubr.bf16.gmra.mrb[0].mxu0 %v1092
  %v3611 = vpop.f32.mrb[0].mxu0
  %v3612 = vadd.f32 %v3547, %v3611
  %v3613 = vpop.f32.mrb[0].mxu0
  %v3614 = vpop.f32.mrb[0].mxu0
  %v3615 = vadd.f32 %v3550, %v3614
  %v3616 = vpop.f32.mrb[0].mxu0
  %3617 = vmatprep.mubr.bf16.mxu0 %v1125
  %3618 = vmatmul.mubr.bf16.gmra.mrb[0].mxu0 %v1124
  %v3619 = vpop.f32.mrb[0].mxu0
  %v3620 = vadd.f32 %v3555, %v3619
  %v3621 = vpop.f32.mrb[0].mxu0
  %v3622 = vpop.f32.mrb[0].mxu0
  %v3623 = vadd.f32 %v3558, %v3622
  %v3624 = vpop.f32.mrb[0].mxu0
  %3625 = vmatprep.mubr.bf16.mxu0 %v1157
  %3626 = vmatmul.mubr.bf16.gmra.mrb[0].mxu0 %v1156
  %v3627 = vpop.f32.mrb[0].mxu0
  %v3628 = vadd.f32 %v3563, %v3627
  %v3629 = vpop.f32.mrb[0].mxu0
  %v3630 = vpop.f32.mrb[0].mxu0
  %v3631 = vadd.f32 %v3566, %v3630
  %v3632 = vpop.f32.mrb[0].mxu0
  %3633 = vmatprep.mubr.bf16.mxu0 %v1189
  %3634 = vmatmul.mubr.bf16.gmra.mrb[0].mxu0 %v1188
  %v3635 = vpop.f32.mrb[0].mxu0
  %v3636 = vadd.f32 %v3571, %v3635
  %v3637 = vpop.f32.mrb[0].mxu0
  %v3638 = vpop.f32.mrb[0].mxu0
  %v3639 = vadd.f32 %v3574, %v3638
  %v3640 = vpop.f32.mrb[0].mxu0
  %3641 = vdwg.mxu0
  %3642 = vmatprep.subr.bf16.mxu0 0
  %3643 = vmatpush1.bf16.msra.mxu0 %v2542
  %3644 = vmatprep.subr.bf16.mxu0 0
  %3645 = vmatpush1.bf16.msra.mxu0 %v2543
  %3646 = vmatprep.subr.bf16.mxu0 0
  %3647 = vmatpush1.bf16.msra.mxu0 %v2544
  %3648 = vmatprep.subr.bf16.mxu0 0
  %3649 = vmatpush1.bf16.msra.mxu0 %v2545
  %3650 = vmatprep.subr.bf16.mxu0 0
  %3651 = vmatpush1.bf16.msra.mxu0 %v2546
  %3652 = vmatprep.subr.bf16.mxu0 0
  %3653 = vmatpush1.bf16.msra.mxu0 %v2547
  %3654 = vmatprep.subr.bf16.mxu0 0
  %3655 = vmatpush1.bf16.msra.mxu0 %v2548
  %3656 = vmatprep.subr.bf16.mxu0 0
  %3657 = vmatpush1.bf16.msra.mxu0 %v2549
  %3658 = vmatprep.subr.bf16.mxu0 0
  %3659 = vmatpush1.bf16.msra.mxu0 %v2550
  %3660 = vmatprep.subr.bf16.mxu0 0
  %3661 = vmatpush1.bf16.msra.mxu0 %v2551
  %3662 = vmatprep.subr.bf16.mxu0 0
  %3663 = vmatpush1.bf16.msra.mxu0 %v2552
  %3664 = vmatprep.subr.bf16.mxu0 0
  %3665 = vmatpush1.bf16.msra.mxu0 %v2553
  %3666 = vmatprep.subr.bf16.mxu0 0
  %3667 = vmatpush1.bf16.msra.mxu0 %v2554
  %3668 = vmatprep.subr.bf16.mxu0 0
  %3669 = vmatpush1.bf16.msra.mxu0 %v2555
  %3670 = vmatprep.subr.bf16.mxu0 0
  %3671 = vmatpush1.bf16.msra.mxu0 %v2556
  %3672 = vmatprep.subr.bf16.mxu0 0
  %3673 = vmatpush1.bf16.msra.mxu0 %v2557
  %3674 = vmatprep.mubr.bf16.mxu0 %v1095
  %3675 = vmatmul.mubr.bf16.gmra.mrb[0].mxu0 %v1094
  %v3676 = vpop.f32.mrb[0].mxu0
  %v3677 = vadd.f32 %v3612, %v3676
  %v3678 = vpop.f32.mrb[0].mxu0
  %v3679 = vpop.f32.mrb[0].mxu0
  %v3680 = vadd.f32 %v3615, %v3679
  %v3681 = vpop.f32.mrb[0].mxu0
  %3682 = vmatprep.mubr.bf16.mxu0 %v1127
  %3683 = vmatmul.mubr.bf16.gmra.mrb[0].mxu0 %v1126
  %v3684 = vpop.f32.mrb[0].mxu0
  %v3685 = vadd.f32 %v3620, %v3684
  %v3686 = vpop.f32.mrb[0].mxu0
  %v3687 = vpop.f32.mrb[0].mxu0
  %v3688 = vadd.f32 %v3623, %v3687
  %v3689 = vpop.f32.mrb[0].mxu0
  %3690 = vmatprep.mubr.bf16.mxu0 %v1159
  %3691 = vmatmul.mubr.bf16.gmra.mrb[0].mxu0 %v1158
  %v3692 = vpop.f32.mrb[0].mxu0
  %v3693 = vadd.f32 %v3628, %v3692
  %v3694 = vpop.f32.mrb[0].mxu0
  %v3695 = vpop.f32.mrb[0].mxu0
  %v3696 = vadd.f32 %v3631, %v3695
  %v3697 = vpop.f32.mrb[0].mxu0
  %3698 = vmatprep.mubr.bf16.mxu0 %v1191
  %3699 = vmatmul.mubr.bf16.gmra.mrb[0].mxu0 %v1190
  %v3700 = vpop.f32.mrb[0].mxu0
  %v3701 = vadd.f32 %v3636, %v3700
  %v3702 = vpop.f32.mrb[0].mxu0
  %v3703 = vpop.f32.mrb[0].mxu0
  %v3704 = vadd.f32 %v3639, %v3703
  %v3705 = vpop.f32.mrb[0].mxu0
  %3706 = vdwg.mxu0
  %3707 = vmatprep.subr.bf16.mxu0 0
  %3708 = vmatpush1.bf16.msra.mxu0 %v2558
  %3709 = vmatprep.subr.bf16.mxu0 0
  %3710 = vmatpush1.bf16.msra.mxu0 %v2559
  %3711 = vmatprep.subr.bf16.mxu0 0
  %3712 = vmatpush1.bf16.msra.mxu0 %v2560
  %3713 = vmatprep.subr.bf16.mxu0 0
  %3714 = vmatpush1.bf16.msra.mxu0 %v2561
  %3715 = vmatprep.subr.bf16.mxu0 0
  %3716 = vmatpush1.bf16.msra.mxu0 %v2562
  %3717 = vmatprep.subr.bf16.mxu0 0
  %3718 = vmatpush1.bf16.msra.mxu0 %v2563
  %3719 = vmatprep.subr.bf16.mxu0 0
  %3720 = vmatpush1.bf16.msra.mxu0 %v2564
  %3721 = vmatprep.subr.bf16.mxu0 0
  %3722 = vmatpush1.bf16.msra.mxu0 %v2565
  %3723 = vmatprep.subr.bf16.mxu0 0
  %3724 = vmatpush1.bf16.msra.mxu0 %v2566
  %3725 = vmatprep.subr.bf16.mxu0 0
  %3726 = vmatpush1.bf16.msra.mxu0 %v2567
  %3727 = vmatprep.subr.bf16.mxu0 0
  %3728 = vmatpush1.bf16.msra.mxu0 %v2568
  %3729 = vmatprep.subr.bf16.mxu0 0
  %3730 = vmatpush1.bf16.msra.mxu0 %v2569
  %3731 = vmatprep.subr.bf16.mxu0 0
  %3732 = vmatpush1.bf16.msra.mxu0 %v2570
  %3733 = vmatprep.subr.bf16.mxu0 0
  %3734 = vmatpush1.bf16.msra.mxu0 %v2571
  %3735 = vmatprep.subr.bf16.mxu0 0
  %3736 = vmatpush1.bf16.msra.mxu0 %v2572
  %3737 = vmatprep.subr.bf16.mxu0 0
  %3738 = vmatpush1.bf16.msra.mxu0 %v2573
  %3739 = vmatprep.mubr.bf16.mxu0 %v1097
  %3740 = vmatmul.mubr.bf16.gmra.mrb[0].mxu0 %v1096
  %v3741 = vpop.f32.mrb[0].mxu0
  %v3742 = vadd.f32 %v3677, %v3741
  %v3743 = vpop.f32.mrb[0].mxu0
  %v3744 = vpop.f32.mrb[0].mxu0
  %v3745 = vadd.f32 %v3680, %v3744
  %v3746 = vpop.f32.mrb[0].mxu0
  %3747 = vmatprep.mubr.bf16.mxu0 %v1129
  %3748 = vmatmul.mubr.bf16.gmra.mrb[0].mxu0 %v1128
  %v3749 = vpop.f32.mrb[0].mxu0
  %v3750 = vadd.f32 %v3685, %v3749
  %v3751 = vpop.f32.mrb[0].mxu0
  %v3752 = vpop.f32.mrb[0].mxu0
  %v3753 = vadd.f32 %v3688, %v3752
  %v3754 = vpop.f32.mrb[0].mxu0
  %3755 = vmatprep.mubr.bf16.mxu0 %v1161
  %3756 = vmatmul.mubr.bf16.gmra.mrb[0].mxu0 %v1160
  %v3757 = vpop.f32.mrb[0].mxu0
  %v3758 = vadd.f32 %v3693, %v3757
  %v3759 = vpop.f32.mrb[0].mxu0
  %v3760 = vpop.f32.mrb[0].mxu0
  %v3761 = vadd.f32 %v3696, %v3760
  %v3762 = vpop.f32.mrb[0].mxu0
  %3763 = vmatprep.mubr.bf16.mxu0 %v1193
  %3764 = vmatmul.mubr.bf16.gmra.mrb[0].mxu0 %v1192
  %v3765 = vpop.f32.mrb[0].mxu0
  %v3766 = vadd.f32 %v3701, %v3765
  %v3767 = vpop.f32.mrb[0].mxu0
  %v3768 = vpop.f32.mrb[0].mxu0
  %v3769 = vadd.f32 %v3704, %v3768
  %v3770 = vpop.f32.mrb[0].mxu0
  %3771 = vdwg.mxu0
  %3772 = vmatprep.subr.bf16.mxu0 0
  %3773 = vmatpush1.bf16.msra.mxu0 %v2574
  %3774 = vmatprep.subr.bf16.mxu0 0
  %3775 = vmatpush1.bf16.msra.mxu0 %v2575
  %3776 = vmatprep.subr.bf16.mxu0 0
  %3777 = vmatpush1.bf16.msra.mxu0 %v2576
  %3778 = vmatprep.subr.bf16.mxu0 0
  %3779 = vmatpush1.bf16.msra.mxu0 %v2577
  %3780 = vmatprep.subr.bf16.mxu0 0
  %3781 = vmatpush1.bf16.msra.mxu0 %v2578
  %3782 = vmatprep.subr.bf16.mxu0 0
  %3783 = vmatpush1.bf16.msra.mxu0 %v2579
  %3784 = vmatprep.subr.bf16.mxu0 0
  %3785 = vmatpush1.bf16.msra.mxu0 %v2580
  %3786 = vmatprep.subr.bf16.mxu0 0
  %3787 = vmatpush1.bf16.msra.mxu0 %v2581
  %3788 = vmatprep.subr.bf16.mxu0 0
  %3789 = vmatpush1.bf16.msra.mxu0 %v2582
  %3790 = vmatprep.subr.bf16.mxu0 0
  %3791 = vmatpush1.bf16.msra.mxu0 %v2583
  %3792 = vmatprep.subr.bf16.mxu0 0
  %3793 = vmatpush1.bf16.msra.mxu0 %v2584
  %3794 = vmatprep.subr.bf16.mxu0 0
  %3795 = vmatpush1.bf16.msra.mxu0 %v2585
  %3796 = vmatprep.subr.bf16.mxu0 0
  %3797 = vmatpush1.bf16.msra.mxu0 %v2586
  %3798 = vmatprep.subr.bf16.mxu0 0
  %3799 = vmatpush1.bf16.msra.mxu0 %v2587
  %3800 = vmatprep.subr.bf16.mxu0 0
  %3801 = vmatpush1.bf16.msra.mxu0 %v2588
  %3802 = vmatprep.subr.bf16.mxu0 0
  %3803 = vmatpush1.bf16.msra.mxu0 %v2589
  %3804 = vmatprep.mubr.bf16.mxu0 %v1099
  %3805 = vmatmul.mubr.bf16.gmra.mrb[0].mxu0 %v1098
  %v3806 = vpop.f32.mrb[0].mxu0
  %v3807 = vadd.f32 %v3742, %v3806
  %v3808 = vpop.f32.mrb[0].mxu0
  %v3809 = vpop.f32.mrb[0].mxu0
  %v3810 = vadd.f32 %v3745, %v3809
  %v3811 = vpop.f32.mrb[0].mxu0
  %3812 = vmatprep.mubr.bf16.mxu0 %v1131
  %3813 = vmatmul.mubr.bf16.gmra.mrb[0].mxu0 %v1130
  %v3814 = vpop.f32.mrb[0].mxu0
  %v3815 = vadd.f32 %v3750, %v3814
  %v3816 = vpop.f32.mrb[0].mxu0
  %v3817 = vpop.f32.mrb[0].mxu0
  %v3818 = vadd.f32 %v3753, %v3817
  %v3819 = vpop.f32.mrb[0].mxu0
  %3820 = vmatprep.mubr.bf16.mxu0 %v1163
  %3821 = vmatmul.mubr.bf16.gmra.mrb[0].mxu0 %v1162
  %v3822 = vpop.f32.mrb[0].mxu0
  %v3823 = vadd.f32 %v3758, %v3822
  %v3824 = vpop.f32.mrb[0].mxu0
  %v3825 = vpop.f32.mrb[0].mxu0
  %v3826 = vadd.f32 %v3761, %v3825
  %v3827 = vpop.f32.mrb[0].mxu0
  %3828 = vmatprep.mubr.bf16.mxu0 %v1195
  %3829 = vmatmul.mubr.bf16.gmra.mrb[0].mxu0 %v1194
  %v3830 = vpop.f32.mrb[0].mxu0
  %v3831 = vadd.f32 %v3766, %v3830
  %v3832 = vpop.f32.mrb[0].mxu0
  %v3833 = vpop.f32.mrb[0].mxu0
  %v3834 = vadd.f32 %v3769, %v3833
  %v3835 = vpop.f32.mrb[0].mxu0
  %3836 = vdwg.mxu0
  %3837 = vmatprep.subr.bf16.mxu0 0
  %3838 = vmatpush1.bf16.msra.mxu0 %v2590
  %3839 = vmatprep.subr.bf16.mxu0 0
  %3840 = vmatpush1.bf16.msra.mxu0 %v2591
  %3841 = vmatprep.subr.bf16.mxu0 0
  %3842 = vmatpush1.bf16.msra.mxu0 %v2592
  %3843 = vmatprep.subr.bf16.mxu0 0
  %3844 = vmatpush1.bf16.msra.mxu0 %v2593
  %3845 = vmatprep.subr.bf16.mxu0 0
  %3846 = vmatpush1.bf16.msra.mxu0 %v2594
  %3847 = vmatprep.subr.bf16.mxu0 0
  %3848 = vmatpush1.bf16.msra.mxu0 %v2595
  %3849 = vmatprep.subr.bf16.mxu0 0
  %3850 = vmatpush1.bf16.msra.mxu0 %v2596
  %3851 = vmatprep.subr.bf16.mxu0 0
  %3852 = vmatpush1.bf16.msra.mxu0 %v2597
  %3853 = vmatprep.subr.bf16.mxu0 0
  %3854 = vmatpush1.bf16.msra.mxu0 %v2598
  %3855 = vmatprep.subr.bf16.mxu0 0
  %3856 = vmatpush1.bf16.msra.mxu0 %v2599
  %3857 = vmatprep.subr.bf16.mxu0 0
  %3858 = vmatpush1.bf16.msra.mxu0 %v2600
  %3859 = vmatprep.subr.bf16.mxu0 0
  %3860 = vmatpush1.bf16.msra.mxu0 %v2601
  %3861 = vmatprep.subr.bf16.mxu0 0
  %3862 = vmatpush1.bf16.msra.mxu0 %v2602
  %3863 = vmatprep.subr.bf16.mxu0 0
  %3864 = vmatpush1.bf16.msra.mxu0 %v2603
  %3865 = vmatprep.subr.bf16.mxu0 0
  %3866 = vmatpush1.bf16.msra.mxu0 %v2604
  %3867 = vmatprep.subr.bf16.mxu0 0
  %3868 = vmatpush1.bf16.msra.mxu0 %v2605
  %3869 = vmatprep.mubr.bf16.mxu0 %v1101
  %3870 = vmatmul.mubr.bf16.gmra.mrb[0].mxu0 %v1100
  %v3871 = vpop.f32.mrb[0].mxu0
  %v3872 = vadd.f32 %v3807, %v3871
  %v3873 = vpop.f32.mrb[0].mxu0
  %v3874 = vpop.f32.mrb[0].mxu0
  %v3875 = vadd.f32 %v3810, %v3874
  %v3876 = vpop.f32.mrb[0].mxu0
  %3877 = vmatprep.mubr.bf16.mxu0 %v1133
  %3878 = vmatmul.mubr.bf16.gmra.mrb[0].mxu0 %v1132
  %v3879 = vpop.f32.mrb[0].mxu0
  %v3880 = vadd.f32 %v3815, %v3879
  %v3881 = vpop.f32.mrb[0].mxu0
  %v3882 = vpop.f32.mrb[0].mxu0
  %v3883 = vadd.f32 %v3818, %v3882
  %v3884 = vpop.f32.mrb[0].mxu0
  %3885 = vmatprep.mubr.bf16.mxu0 %v1165
  %3886 = vmatmul.mubr.bf16.gmra.mrb[0].mxu0 %v1164
  %v3887 = vpop.f32.mrb[0].mxu0
  %v3888 = vadd.f32 %v3823, %v3887
  %v3889 = vpop.f32.mrb[0].mxu0
  %v3890 = vpop.f32.mrb[0].mxu0
  %v3891 = vadd.f32 %v3826, %v3890
  %v3892 = vpop.f32.mrb[0].mxu0
  %3893 = vmatprep.mubr.bf16.mxu0 %v1197
  %3894 = vmatmul.mubr.bf16.gmra.mrb[0].mxu0 %v1196
  %v3895 = vpop.f32.mrb[0].mxu0
  %v3896 = vadd.f32 %v3831, %v3895
  %v3897 = vpop.f32.mrb[0].mxu0
  %v3898 = vpop.f32.mrb[0].mxu0
  %v3899 = vadd.f32 %v3834, %v3898
  %v3900 = vpop.f32.mrb[0].mxu0
  %3901 = vdwg.mxu0
  %v3902 = vadd.f32 %v3872, %v3875
  %v3903 = vadd.f32 %v3902, %v3880
  %v3904 = vadd.f32 %v3903, %v3883
  %v3905 = vadd.f32 %v3904, %v3888
  %v3906 = vadd.f32 %v3905, %v3891
  %v3907 = vadd.f32 %v3906, %v3896
  %v3908 = vadd.f32 %v3907, %v3899
  %v3909 = vrot.slane %v3908, 4
  %v3910 = vadd.f32 %v3908, %v3909
  %v3911 = vrot.slane %v3910, 2
  %v3912 = vadd.f32 %v3910, %v3911
  %v3913 = vrot.slane %v3912, 1
  %v3914 = vadd.f32 %v3912, %v3913
  %v3915 = vrcp.pop 64.0
  %v3916 = vmul.f32 %v3914, %v3915
  %v3917 = vsub.f32 %v3872, %v3916
  %v3918 = vsub.f32 %v3875, %v3916
  %v3919 = vsub.f32 %v3880, %v3916
  %v3920 = vsub.f32 %v3883, %v3916
  %v3921 = vsub.f32 %v3888, %v3916
  %v3922 = vsub.f32 %v3891, %v3916
  %v3923 = vsub.f32 %v3896, %v3916
  %v3924 = vsub.f32 %v3899, %v3916
  %v3925 = vmul.f32 %v3917, %v3917
  %v3926 = vmul.f32 %v3918, %v3918
  %v3927 = vmul.f32 %v3919, %v3919
  %v3928 = vmul.f32 %v3920, %v3920
  %v3929 = vmul.f32 %v3921, %v3921
  %v3930 = vmul.f32 %v3922, %v3922
  %v3931 = vmul.f32 %v3923, %v3923
  %v3932 = vmul.f32 %v3924, %v3924
  %v3933 = vadd.f32 %v3925, %v3926
  %v3934 = vadd.f32 %v3933, %v3927
  %v3935 = vadd.f32 %v3934, %v3928
  %v3936 = vadd.f32 %v3935, %v3929
  %v3937 = vadd.f32 %v3936, %v3930
  %v3938 = vadd.f32 %v3937, %v3931
  %v3939 = vadd.f32 %v3938, %v3932
  %v3940 = vrot.slane %v3939, 4
  %v3941 = vadd.f32 %v3939, %v3940
  %v3942 = vrot.slane %v3941, 2
  %v3943 = vadd.f32 %v3941, %v3942
  %v3944 = vrot.slane %v3943, 1
  %v3945 = vadd.f32 %v3943, %v3944
  %v3946 = vmul.f32 %v3945, %v3915
  %v3947 = vld [vmem:[%s3] sm:$0x1]
  %v3948 = vadd.f32 %v3946, 1e-05
  %v3949 = vrsqrt.pop %v3948
  %v3950 = vmul.f32 %v3947, %v3949
  %v3951 = vld [vmem:[%s4] sm:$0x1]
  %v3952 = vmul.f32 %v3916, %v3950
  %v3953 = vsub.f32 %v3951, %v3952
  %v3955 = vlaneseq
  %v3956 = vshrl.u32 %v3955, 7
  %v3957 = vsub.s32 0, %v3956
  %v3958 = vrot.slane %v3950, %v3957
  %v3960 = vmul.f32 %v3872, %v3958
  %v3961 = vmul.f32 %v3875, %v3958
  %v3962 = vmul.f32 %v3880, %v3958
  %v3963 = vmul.f32 %v3883, %v3958
  %v3964 = vmul.f32 %v3888, %v3958
  %v3965 = vmul.f32 %v3891, %v3958
  %v3966 = vmul.f32 %v3896, %v3958
  %v3967 = vmul.f32 %v3899, %v3958
  %v3969 = vlaneseq
  %v3970 = vshrl.u32 %v3969, 7
  %v3971 = vsub.s32 0, %v3970
  %v3972 = vrot.slane %v3953, %v3971
  %v3974 = vadd.f32 %v3960, %v3972
  %v3975 = vadd.f32 %v3961, %v3972
  %v3976 = vadd.f32 %v3962, %v3972
  %v3977 = vadd.f32 %v3963, %v3972
  %v3978 = vadd.f32 %v3964, %v3972
  %v3979 = vadd.f32 %v3965, %v3972
  %v3980 = vadd.f32 %v3966, %v3972
  %v3981 = vadd.f32 %v3967, %v3972
  %vm3982 = vcmp.gt.f32.partialorder %v3974, 0.0
  %vm3983 = vcmp.gt.f32.partialorder %v3975, 0.0
  %vm3984 = vcmp.gt.f32.partialorder %v3976, 0.0
  %vm3985 = vcmp.gt.f32.partialorder %v3977, 0.0
  %vm3986 = vcmp.gt.f32.partialorder %v3978, 0.0
  %vm3987 = vcmp.gt.f32.partialorder %v3979, 0.0
  %vm3988 = vcmp.gt.f32.partialorder %v3980, 0.0
  %vm3989 = vcmp.gt.f32.partialorder %v3981, 0.0
  %v3990 = vmul.f32 %v3974, 0.2
  %v3991 = vmul.f32 %v3975, 0.2
  %v3992 = vmul.f32 %v3976, 0.2
  %v3993 = vmul.f32 %v3977, 0.2
  %v3994 = vmul.f32 %v3978, 0.2
  %v3995 = vmul.f32 %v3979, 0.2
  %v3996 = vmul.f32 %v3980, 0.2
  %v3997 = vmul.f32 %v3981, 0.2
  %v3998 = vsel %vm3982, %v3974, %v3990
  %v3999 = vsel %vm3983, %v3975, %v3991
  %v4000 = vsel %vm3984, %v3976, %v3992
  %v4001 = vsel %vm3985, %v3977, %v3993
  %v4002 = vsel %vm3986, %v3978, %v3994
  %v4003 = vsel %vm3987, %v3979, %v3995
  %v4004 = vsel %vm3988, %v3980, %v3996
  %v4005 = vsel %vm3989, %v3981, %v3997
  %v4006 = vpack.c.bf16 %v3998, %v3998
  %v4007 = vld [vmem:[%s5] sm:$0xf]
  %v4008 = vld [vmem:[%s5 + $0x4] sm:$0xf]
  %v4009 = vld [vmem:[%s5 + $0x8] sm:$0xf]
  %v4010 = vld [vmem:[%s5 + $0xc] sm:$0xf]
  %v4011 = vld [vmem:[%s5 + $0x10] sm:$0xf]
  %v4012 = vld [vmem:[%s5 + $0x14] sm:$0xf]
  %v4013 = vld [vmem:[%s5 + $0x18] sm:$0xf]
  %v4014 = vld [vmem:[%s5 + $0x1c] sm:$0xf]
  %v4015 = vld [vmem:[%s5 + $0x20] sm:$0xf]
  %v4016 = vld [vmem:[%s5 + $0x24] sm:$0xf]
  %v4017 = vld [vmem:[%s5 + $0x28] sm:$0xf]
  %v4018 = vld [vmem:[%s5 + $0x2c] sm:$0xf]
  %v4019 = vld [vmem:[%s5 + $0x30] sm:$0xf]
  %v4020 = vld [vmem:[%s5 + $0x34] sm:$0xf]
  %v4021 = vld [vmem:[%s5 + $0x38] sm:$0xf]
  %v4022 = vld [vmem:[%s5 + $0x3c] sm:$0xf]
  %v4023 = vld [vmem:[%s5 + $0x40] sm:$0xf]
  %v4024 = vld [vmem:[%s5 + $0x44] sm:$0xf]
  %v4025 = vld [vmem:[%s5 + $0x48] sm:$0xf]
  %v4026 = vld [vmem:[%s5 + $0x4c] sm:$0xf]
  %v4027 = vld [vmem:[%s5 + $0x50] sm:$0xf]
  %v4028 = vld [vmem:[%s5 + $0x54] sm:$0xf]
  %v4029 = vld [vmem:[%s5 + $0x58] sm:$0xf]
  %v4030 = vld [vmem:[%s5 + $0x5c] sm:$0xf]
  %v4031 = vld [vmem:[%s5 + $0x60] sm:$0xf]
  %v4032 = vld [vmem:[%s5 + $0x64] sm:$0xf]
  %v4033 = vld [vmem:[%s5 + $0x68] sm:$0xf]
  %v4034 = vld [vmem:[%s5 + $0x6c] sm:$0xf]
  %v4035 = vld [vmem:[%s5 + $0x70] sm:$0xf]
  %v4036 = vld [vmem:[%s5 + $0x74] sm:$0xf]
  %v4037 = vld [vmem:[%s5 + $0x78] sm:$0xf]
  %v4038 = vld [vmem:[%s5 + $0x7c] sm:$0xf]
  %v4040 = vrot.slane %v4006, 2
  %v4058 = vunpack.c.l.b16 %v4023
  %v4059 = vunpack.c.l.b16 %v4024
  %v4060 = vunpack.c.l.b16 %v4025
  %v4061 = vunpack.c.l.b16 %v4026
  %v4062 = vunpack.c.l.b16 %v4027
  %v4063 = vunpack.c.l.b16 %v4028
  %v4064 = vunpack.c.l.b16 %v4029
  %v4065 = vunpack.c.l.b16 %v4030
  %v4066 = vunpack.c.l.b16 %v4031
  %v4067 = vunpack.c.l.b16 %v4032
  %v4068 = vunpack.c.l.b16 %v4033
  %v4069 = vunpack.c.l.b16 %v4034
  %v4070 = vunpack.c.l.b16 %v4035
  %v4071 = vunpack.c.l.b16 %v4036
  %v4072 = vunpack.c.l.b16 %v4037
  %v4073 = vunpack.c.l.b16 %v4038
  %v4074 = vpack.c.b16 %v4059, %v4058
  %v4075 = vpack.c.b16 %v4061, %v4060
  %v4076 = vpack.c.b16 %v4063, %v4062
  %v4077 = vpack.c.b16 %v4065, %v4064
  %v4078 = vpack.c.b16 %v4067, %v4066
  %v4079 = vpack.c.b16 %v4069, %v4068
  %v4080 = vpack.c.b16 %v4071, %v4070
  %v4081 = vpack.c.b16 %v4073, %v4072
  %4090 = vmatprep.subr.bf16.mxu0 0
  %4091 = vmatpush1.bf16.msra.mxu0 %v4074
  %4092 = vmatprep.subr.bf16.mxu0 0
  %4093 = vmatpush1.bf16.msra.mxu0 %v4075
  %4094 = vmatprep.subr.bf16.mxu0 0
  %4095 = vmatpush1.bf16.msra.mxu0 %v4076
  %4096 = vmatprep.subr.bf16.mxu0 0
  %4097 = vmatpush1.bf16.msra.mxu0 %v4077
  %4098 = vmatprep.subr.bf16.mxu0 0
  %4099 = vmatpush1.bf16.msra.mxu0 %v4078
  %4100 = vmatprep.subr.bf16.mxu0 0
  %4101 = vmatpush1.bf16.msra.mxu0 %v4079
  %4102 = vmatprep.subr.bf16.mxu0 0
  %4103 = vmatpush1.bf16.msra.mxu0 %v4080
  %4104 = vmatprep.subr.bf16.mxu0 0
  %4105 = vmatpush1.bf16.msra.mxu0 %v4081
  %4106 = vmatprep.subr.bf16.mxu0 0
  %4107 = vmatpush1.bf16.msra.mxu0 0
  %4108 = vmatprep.subr.bf16.mxu0 0
  %4109 = vmatpush1.bf16.msra.mxu0 0
  %4110 = vmatprep.subr.bf16.mxu0 0
  %4111 = vmatpush1.bf16.msra.mxu0 0
  %4112 = vmatprep.subr.bf16.mxu0 0
  %4113 = vmatpush1.bf16.msra.mxu0 0
  %4114 = vmatprep.subr.bf16.mxu0 0
  %4115 = vmatpush1.bf16.msra.mxu0 0
  %4116 = vmatprep.subr.bf16.mxu0 0
  %4117 = vmatpush1.bf16.msra.mxu0 0
  %4118 = vmatprep.subr.bf16.mxu0 0
  %4119 = vmatpush1.bf16.msra.mxu0 0
  %4120 = vmatprep.subr.bf16.mxu0 0
  %4121 = vmatpush1.bf16.msra.mxu0 0
  %4122 = vmatprep.mubr.bf16.mxu0 0
  %4123 = vmatmul.mubr.bf16.gmra.mrb[0].mxu0 %v4040
  %v4124 = vpop.f32.mrb[0].mxu0
  %v4125 = vadd.f32 0.0, %v4124
  %v4126 = vpop.f32.mrb[0].mxu0
  %v4127 = vpop.f32.mrb[0].mxu0
  %v4128 = vpop.f32.mrb[0].mxu0
  %4129 = vdwg.mxu0
  %v4146 = vunpack.c.l.b16 %v4007
  %v4147 = vunpack.c.l.b16 %v4008
  %v4148 = vunpack.c.l.b16 %v4009
  %v4149 = vunpack.c.l.b16 %v4010
  %v4150 = vunpack.c.l.b16 %v4011
  %v4151 = vunpack.c.l.b16 %v4012
  %v4152 = vunpack.c.l.b16 %v4013
  %v4153 = vunpack.c.l.b16 %v4014
  %v4154 = vunpack.c.l.b16 %v4015
  %v4155 = vunpack.c.l.b16 %v4016
  %v4156 = vunpack.c.l.b16 %v4017
  %v4157 = vunpack.c.l.b16 %v4018
  %v4158 = vunpack.c.l.b16 %v4019
  %v4159 = vunpack.c.l.b16 %v4020
  %v4160 = vunpack.c.l.b16 %v4021
  %v4161 = vunpack.c.l.b16 %v4022
  %v4162 = vpack.c.b16 %v4147, %v4146
  %v4163 = vpack.c.b16 %v4149, %v4148
  %v4164 = vpack.c.b16 %v4151, %v4150
  %v4165 = vpack.c.b16 %v4153, %v4152
  %v4166 = vpack.c.b16 %v4155, %v4154
  %v4167 = vpack.c.b16 %v4157, %v4156
  %v4168 = vpack.c.b16 %v4159, %v4158
  %v4169 = vpack.c.b16 %v4161, %v4160
  %4178 = vmatprep.subr.bf16.mxu0 0
  %4179 = vmatpush1.bf16.msra.mxu0 %v4162
  %4180 = vmatprep.subr.bf16.mxu0 0
  %4181 = vmatpush1.bf16.msra.mxu0 %v4163
  %4182 = vmatprep.subr.bf16.mxu0 0
  %4183 = vmatpush1.bf16.msra.mxu0 %v4164
  %4184 = vmatprep.subr.bf16.mxu0 0
  %4185 = vmatpush1.bf16.msra.mxu0 %v4165
  %4186 = vmatprep.subr.bf16.mxu0 0
  %4187 = vmatpush1.bf16.msra.mxu0 %v4166
  %4188 = vmatprep.subr.bf16.mxu0 0
  %4189 = vmatpush1.bf16.msra.mxu0 %v4167
  %4190 = vmatprep.subr.bf16.mxu0 0
  %4191 = vmatpush1.bf16.msra.mxu0 %v4168
  %4192 = vmatprep.subr.bf16.mxu0 0
  %4193 = vmatpush1.bf16.msra.mxu0 %v4169
  %4194 = vmatprep.subr.bf16.mxu0 0
  %4195 = vmatpush1.bf16.msra.mxu0 0
  %4196 = vmatprep.subr.bf16.mxu0 0
  %4197 = vmatpush1.bf16.msra.mxu0 0
  %4198 = vmatprep.subr.bf16.mxu0 0
  %4199 = vmatpush1.bf16.msra.mxu0 0
  %4200 = vmatprep.subr.bf16.mxu0 0
  %4201 = vmatpush1.bf16.msra.mxu0 0
  %4202 = vmatprep.subr.bf16.mxu0 0
  %4203 = vmatpush1.bf16.msra.mxu0 0
  %4204 = vmatprep.subr.bf16.mxu0 0
  %4205 = vmatpush1.bf16.msra.mxu0 0
  %4206 = vmatprep.subr.bf16.mxu0 0
  %4207 = vmatpush1.bf16.msra.mxu0 0
  %4208 = vmatprep.subr.bf16.mxu0 0
  %4209 = vmatpush1.bf16.msra.mxu0 0
  %4210 = vmatprep.mubr.bf16.mxu0 0
  %4211 = vmatmul.mubr.bf16.gmra.mrb[0].mxu0 %v4006
  %v4212 = vpop.f32.mrb[0].mxu0
  %v4213 = vadd.f32 %v4125, %v4212
  %v4214 = vpop.f32.mrb[0].mxu0
  %v4215 = vpop.f32.mrb[0].mxu0
  %v4216 = vpop.f32.mrb[0].mxu0
  %4217 = vdwg.mxu0
  %v4218 = vpack.c.bf16 %v3999, %v3999
  %v4219 = vld [vmem:[%s5 + $0x80] sm:$0xf]
  %v4220 = vld [vmem:[%s5 + $0x84] sm:$0xf]
  %v4221 = vld [vmem:[%s5 + $0x88] sm:$0xf]
  %v4222 = vld [vmem:[%s5 + $0x8c] sm:$0xf]
  %v4223 = vld [vmem:[%s5 + $0x90] sm:$0xf]
  %v4224 = vld [vmem:[%s5 + $0x94] sm:$0xf]
  %v4225 = vld [vmem:[%s5 + $0x98] sm:$0xf]
  %v4226 = vld [vmem:[%s5 + $0x9c] sm:$0xf]
  %v4227 = vld [vmem:[%s5 + $0xa0] sm:$0xf]
  %v4228 = vld [vmem:[%s5 + $0xa4] sm:$0xf]
  %v4229 = vld [vmem:[%s5 + $0xa8] sm:$0xf]
  %v4230 = vld [vmem:[%s5 + $0xac] sm:$0xf]
  %v4231 = vld [vmem:[%s5 + $0xb0] sm:$0xf]
  %v4232 = vld [vmem:[%s5 + $0xb4] sm:$0xf]
  %v4233 = vld [vmem:[%s5 + $0xb8] sm:$0xf]
  %v4234 = vld [vmem:[%s5 + $0xbc] sm:$0xf]
  %v4251 = vunpack.c.l.b16 %v4219
  %v4252 = vunpack.c.l.b16 %v4220
  %v4253 = vunpack.c.l.b16 %v4221
  %v4254 = vunpack.c.l.b16 %v4222
  %v4255 = vunpack.c.l.b16 %v4223
  %v4256 = vunpack.c.l.b16 %v4224
  %v4257 = vunpack.c.l.b16 %v4225
  %v4258 = vunpack.c.l.b16 %v4226
  %v4259 = vunpack.c.l.b16 %v4227
  %v4260 = vunpack.c.l.b16 %v4228
  %v4261 = vunpack.c.l.b16 %v4229
  %v4262 = vunpack.c.l.b16 %v4230
  %v4263 = vunpack.c.l.b16 %v4231
  %v4264 = vunpack.c.l.b16 %v4232
  %v4265 = vunpack.c.l.b16 %v4233
  %v4266 = vunpack.c.l.b16 %v4234
  %v4267 = vpack.c.b16 %v4252, %v4251
  %v4268 = vpack.c.b16 %v4254, %v4253
  %v4269 = vpack.c.b16 %v4256, %v4255
  %v4270 = vpack.c.b16 %v4258, %v4257
  %v4271 = vpack.c.b16 %v4260, %v4259
  %v4272 = vpack.c.b16 %v4262, %v4261
  %v4273 = vpack.c.b16 %v4264, %v4263
  %v4274 = vpack.c.b16 %v4266, %v4265
  %4283 = vmatprep.subr.bf16.mxu0 0
  %4284 = vmatpush1.bf16.msra.mxu0 %v4267
  %4285 = vmatprep.subr.bf16.mxu0 0
  %4286 = vmatpush1.bf16.msra.mxu0 %v4268
  %4287 = vmatprep.subr.bf16.mxu0 0
  %4288 = vmatpush1.bf16.msra.mxu0 %v4269
  %4289 = vmatprep.subr.bf16.mxu0 0
  %4290 = vmatpush1.bf16.msra.mxu0 %v4270
  %4291 = vmatprep.subr.bf16.mxu0 0
  %4292 = vmatpush1.bf16.msra.mxu0 %v4271
  %4293 = vmatprep.subr.bf16.mxu0 0
  %4294 = vmatpush1.bf16.msra.mxu0 %v4272
  %4295 = vmatprep.subr.bf16.mxu0 0
  %4296 = vmatpush1.bf16.msra.mxu0 %v4273
  %4297 = vmatprep.subr.bf16.mxu0 0
  %4298 = vmatpush1.bf16.msra.mxu0 %v4274
  %4299 = vmatprep.subr.bf16.mxu0 0
  %4300 = vmatpush1.bf16.msra.mxu0 0
  %4301 = vmatprep.subr.bf16.mxu0 0
  %4302 = vmatpush1.bf16.msra.mxu0 0
  %4303 = vmatprep.subr.bf16.mxu0 0
  %4304 = vmatpush1.bf16.msra.mxu0 0
  %4305 = vmatprep.subr.bf16.mxu0 0
  %4306 = vmatpush1.bf16.msra.mxu0 0
  %4307 = vmatprep.subr.bf16.mxu0 0
  %4308 = vmatpush1.bf16.msra.mxu0 0
  %4309 = vmatprep.subr.bf16.mxu0 0
  %4310 = vmatpush1.bf16.msra.mxu0 0
  %4311 = vmatprep.subr.bf16.mxu0 0
  %4312 = vmatpush1.bf16.msra.mxu0 0
  %4313 = vmatprep.subr.bf16.mxu0 0
  %4314 = vmatpush1.bf16.msra.mxu0 0
  %4315 = vmatprep.mubr.bf16.mxu0 0
  %4316 = vmatmul.mubr.bf16.gmra.mrb[0].mxu0 %v4218
  %v4317 = vpop.f32.mrb[0].mxu0
  %v4318 = vadd.f32 0.0, %v4317
  %v4319 = vpop.f32.mrb[0].mxu0
  %v4320 = vpop.f32.mrb[0].mxu0
  %v4321 = vpop.f32.mrb[0].mxu0
  %4322 = vdwg.mxu0
  %v4323 = vadd.f32 %v4213, %v4318
  %v4324 = vld [vmem:[%s5 + $0xc0] sm:$0xf]
  %v4325 = vld [vmem:[%s5 + $0xc4] sm:$0xf]
  %v4326 = vld [vmem:[%s5 + $0xc8] sm:$0xf]
  %v4327 = vld [vmem:[%s5 + $0xcc] sm:$0xf]
  %v4328 = vld [vmem:[%s5 + $0xd0] sm:$0xf]
  %v4329 = vld [vmem:[%s5 + $0xd4] sm:$0xf]
  %v4330 = vld [vmem:[%s5 + $0xd8] sm:$0xf]
  %v4331 = vld [vmem:[%s5 + $0xdc] sm:$0xf]
  %v4332 = vld [vmem:[%s5 + $0xe0] sm:$0xf]
  %v4333 = vld [vmem:[%s5 + $0xe4] sm:$0xf]
  %v4334 = vld [vmem:[%s5 + $0xe8] sm:$0xf]
  %v4335 = vld [vmem:[%s5 + $0xec] sm:$0xf]
  %v4336 = vld [vmem:[%s5 + $0xf0] sm:$0xf]
  %v4337 = vld [vmem:[%s5 + $0xf4] sm:$0xf]
  %v4338 = vld [vmem:[%s5 + $0xf8] sm:$0xf]
  %v4339 = vld [vmem:[%s5 + $0xfc] sm:$0xf]
  %v4341 = vrot.slane %v4218, 2
  %v4359 = vunpack.c.l.b16 %v4324
  %v4360 = vunpack.c.l.b16 %v4325
  %v4361 = vunpack.c.l.b16 %v4326
  %v4362 = vunpack.c.l.b16 %v4327
  %v4363 = vunpack.c.l.b16 %v4328
  %v4364 = vunpack.c.l.b16 %v4329
  %v4365 = vunpack.c.l.b16 %v4330
  %v4366 = vunpack.c.l.b16 %v4331
  %v4367 = vunpack.c.l.b16 %v4332
  %v4368 = vunpack.c.l.b16 %v4333
  %v4369 = vunpack.c.l.b16 %v4334
  %v4370 = vunpack.c.l.b16 %v4335
  %v4371 = vunpack.c.l.b16 %v4336
  %v4372 = vunpack.c.l.b16 %v4337
  %v4373 = vunpack.c.l.b16 %v4338
  %v4374 = vunpack.c.l.b16 %v4339
  %v4375 = vpack.c.b16 %v4360, %v4359
  %v4376 = vpack.c.b16 %v4362, %v4361
  %v4377 = vpack.c.b16 %v4364, %v4363
  %v4378 = vpack.c.b16 %v4366, %v4365
  %v4379 = vpack.c.b16 %v4368, %v4367
  %v4380 = vpack.c.b16 %v4370, %v4369
  %v4381 = vpack.c.b16 %v4372, %v4371
  %v4382 = vpack.c.b16 %v4374, %v4373
  %4391 = vmatprep.subr.bf16.mxu0 0
  %4392 = vmatpush1.bf16.msra.mxu0 %v4375
  %4393 = vmatprep.subr.bf16.mxu0 0
  %4394 = vmatpush1.bf16.msra.mxu0 %v4376
  %4395 = vmatprep.subr.bf16.mxu0 0
  %4396 = vmatpush1.bf16.msra.mxu0 %v4377
  %4397 = vmatprep.subr.bf16.mxu0 0
  %4398 = vmatpush1.bf16.msra.mxu0 %v4378
  %4399 = vmatprep.subr.bf16.mxu0 0
  %4400 = vmatpush1.bf16.msra.mxu0 %v4379
  %4401 = vmatprep.subr.bf16.mxu0 0
  %4402 = vmatpush1.bf16.msra.mxu0 %v4380
  %4403 = vmatprep.subr.bf16.mxu0 0
  %4404 = vmatpush1.bf16.msra.mxu0 %v4381
  %4405 = vmatprep.subr.bf16.mxu0 0
  %4406 = vmatpush1.bf16.msra.mxu0 %v4382
  %4407 = vmatprep.subr.bf16.mxu0 0
  %4408 = vmatpush1.bf16.msra.mxu0 0
  %4409 = vmatprep.subr.bf16.mxu0 0
  %4410 = vmatpush1.bf16.msra.mxu0 0
  %4411 = vmatprep.subr.bf16.mxu0 0
  %4412 = vmatpush1.bf16.msra.mxu0 0
  %4413 = vmatprep.subr.bf16.mxu0 0
  %4414 = vmatpush1.bf16.msra.mxu0 0
  %4415 = vmatprep.subr.bf16.mxu0 0
  %4416 = vmatpush1.bf16.msra.mxu0 0
  %4417 = vmatprep.subr.bf16.mxu0 0
  %4418 = vmatpush1.bf16.msra.mxu0 0
  %4419 = vmatprep.subr.bf16.mxu0 0
  %4420 = vmatpush1.bf16.msra.mxu0 0
  %4421 = vmatprep.subr.bf16.mxu0 0
  %4422 = vmatpush1.bf16.msra.mxu0 0
  %4423 = vmatprep.mubr.bf16.mxu0 0
  %4424 = vmatmul.mubr.bf16.gmra.mrb[0].mxu0 %v4341
  %v4425 = vpop.f32.mrb[0].mxu0
  %v4426 = vadd.f32 0.0, %v4425
  %v4427 = vpop.f32.mrb[0].mxu0
  %v4428 = vpop.f32.mrb[0].mxu0
  %v4429 = vpop.f32.mrb[0].mxu0
  %4430 = vdwg.mxu0
  %v4431 = vadd.f32 %v4323, %v4426
  %v4432 = vpack.c.bf16 %v4000, %v4000
  %v4433 = vld [vmem:[%s5 + $0x100] sm:$0xf]
  %v4434 = vld [vmem:[%s5 + $0x104] sm:$0xf]
  %v4435 = vld [vmem:[%s5 + $0x108] sm:$0xf]
  %v4436 = vld [vmem:[%s5 + $0x10c] sm:$0xf]
  %v4437 = vld [vmem:[%s5 + $0x110] sm:$0xf]
  %v4438 = vld [vmem:[%s5 + $0x114] sm:$0xf]
  %v4439 = vld [vmem:[%s5 + $0x118] sm:$0xf]
  %v4440 = vld [vmem:[%s5 + $0x11c] sm:$0xf]
  %v4441 = vld [vmem:[%s5 + $0x120] sm:$0xf]
  %v4442 = vld [vmem:[%s5 + $0x124] sm:$0xf]
  %v4443 = vld [vmem:[%s5 + $0x128] sm:$0xf]
  %v4444 = vld [vmem:[%s5 + $0x12c] sm:$0xf]
  %v4445 = vld [vmem:[%s5 + $0x130] sm:$0xf]
  %v4446 = vld [vmem:[%s5 + $0x134] sm:$0xf]
  %v4447 = vld [vmem:[%s5 + $0x138] sm:$0xf]
  %v4448 = vld [vmem:[%s5 + $0x13c] sm:$0xf]
  %v4465 = vunpack.c.l.b16 %v4433
  %v4466 = vunpack.c.l.b16 %v4434
  %v4467 = vunpack.c.l.b16 %v4435
  %v4468 = vunpack.c.l.b16 %v4436
  %v4469 = vunpack.c.l.b16 %v4437
  %v4470 = vunpack.c.l.b16 %v4438
  %v4471 = vunpack.c.l.b16 %v4439
  %v4472 = vunpack.c.l.b16 %v4440
  %v4473 = vunpack.c.l.b16 %v4441
  %v4474 = vunpack.c.l.b16 %v4442
  %v4475 = vunpack.c.l.b16 %v4443
  %v4476 = vunpack.c.l.b16 %v4444
  %v4477 = vunpack.c.l.b16 %v4445
  %v4478 = vunpack.c.l.b16 %v4446
  %v4479 = vunpack.c.l.b16 %v4447
  %v4480 = vunpack.c.l.b16 %v4448
  %v4481 = vpack.c.b16 %v4466, %v4465
  %v4482 = vpack.c.b16 %v4468, %v4467
  %v4483 = vpack.c.b16 %v4470, %v4469
  %v4484 = vpack.c.b16 %v4472, %v4471
  %v4485 = vpack.c.b16 %v4474, %v4473
  %v4486 = vpack.c.b16 %v4476, %v4475
  %v4487 = vpack.c.b16 %v4478, %v4477
  %v4488 = vpack.c.b16 %v4480, %v4479
  %4497 = vmatprep.subr.bf16.mxu0 0
  %4498 = vmatpush1.bf16.msra.mxu0 %v4481
  %4499 = vmatprep.subr.bf16.mxu0 0
  %4500 = vmatpush1.bf16.msra.mxu0 %v4482
  %4501 = vmatprep.subr.bf16.mxu0 0
  %4502 = vmatpush1.bf16.msra.mxu0 %v4483
  %4503 = vmatprep.subr.bf16.mxu0 0
  %4504 = vmatpush1.bf16.msra.mxu0 %v4484
  %4505 = vmatprep.subr.bf16.mxu0 0
  %4506 = vmatpush1.bf16.msra.mxu0 %v4485
  %4507 = vmatprep.subr.bf16.mxu0 0
  %4508 = vmatpush1.bf16.msra.mxu0 %v4486
  %4509 = vmatprep.subr.bf16.mxu0 0
  %4510 = vmatpush1.bf16.msra.mxu0 %v4487
  %4511 = vmatprep.subr.bf16.mxu0 0
  %4512 = vmatpush1.bf16.msra.mxu0 %v4488
  %4513 = vmatprep.subr.bf16.mxu0 0
  %4514 = vmatpush1.bf16.msra.mxu0 0
  %4515 = vmatprep.subr.bf16.mxu0 0
  %4516 = vmatpush1.bf16.msra.mxu0 0
  %4517 = vmatprep.subr.bf16.mxu0 0
  %4518 = vmatpush1.bf16.msra.mxu0 0
  %4519 = vmatprep.subr.bf16.mxu0 0
  %4520 = vmatpush1.bf16.msra.mxu0 0
  %4521 = vmatprep.subr.bf16.mxu0 0
  %4522 = vmatpush1.bf16.msra.mxu0 0
  %4523 = vmatprep.subr.bf16.mxu0 0
  %4524 = vmatpush1.bf16.msra.mxu0 0
  %4525 = vmatprep.subr.bf16.mxu0 0
  %4526 = vmatpush1.bf16.msra.mxu0 0
  %4527 = vmatprep.subr.bf16.mxu0 0
  %4528 = vmatpush1.bf16.msra.mxu0 0
  %4529 = vmatprep.mubr.bf16.mxu0 0
  %4530 = vmatmul.mubr.bf16.gmra.mrb[0].mxu0 %v4432
  %v4531 = vpop.f32.mrb[0].mxu0
  %v4532 = vadd.f32 0.0, %v4531
  %v4533 = vpop.f32.mrb[0].mxu0
  %v4534 = vpop.f32.mrb[0].mxu0
  %v4535 = vpop.f32.mrb[0].mxu0
  %4536 = vdwg.mxu0
  %v4537 = vadd.f32 %v4431, %v4532
  %v4538 = vld [vmem:[%s5 + $0x140] sm:$0xf]
  %v4539 = vld [vmem:[%s5 + $0x144] sm:$0xf]
  %v4540 = vld [vmem:[%s5 + $0x148] sm:$0xf]
  %v4541 = vld [vmem:[%s5 + $0x14c] sm:$0xf]
  %v4542 = vld [vmem:[%s5 + $0x150] sm:$0xf]
  %v4543 = vld [vmem:[%s5 + $0x154] sm:$0xf]
  %v4544 = vld [vmem:[%s5 + $0x158] sm:$0xf]
  %v4545 = vld [vmem:[%s5 + $0x15c] sm:$0xf]
  %v4546 = vld [vmem:[%s5 + $0x160] sm:$0xf]
  %v4547 = vld [vmem:[%s5 + $0x164] sm:$0xf]
  %v4548 = vld [vmem:[%s5 + $0x168] sm:$0xf]
  %v4549 = vld [vmem:[%s5 + $0x16c] sm:$0xf]
  %v4550 = vld [vmem:[%s5 + $0x170] sm:$0xf]
  %v4551 = vld [vmem:[%s5 + $0x174] sm:$0xf]
  %v4552 = vld [vmem:[%s5 + $0x178] sm:$0xf]
  %v4553 = vld [vmem:[%s5 + $0x17c] sm:$0xf]
  %v4555 = vrot.slane %v4432, 2
  %v4573 = vunpack.c.l.b16 %v4538
  %v4574 = vunpack.c.l.b16 %v4539
  %v4575 = vunpack.c.l.b16 %v4540
  %v4576 = vunpack.c.l.b16 %v4541
  %v4577 = vunpack.c.l.b16 %v4542
  %v4578 = vunpack.c.l.b16 %v4543
  %v4579 = vunpack.c.l.b16 %v4544
  %v4580 = vunpack.c.l.b16 %v4545
  %v4581 = vunpack.c.l.b16 %v4546
  %v4582 = vunpack.c.l.b16 %v4547
  %v4583 = vunpack.c.l.b16 %v4548
  %v4584 = vunpack.c.l.b16 %v4549
  %v4585 = vunpack.c.l.b16 %v4550
  %v4586 = vunpack.c.l.b16 %v4551
  %v4587 = vunpack.c.l.b16 %v4552
  %v4588 = vunpack.c.l.b16 %v4553
  %v4589 = vpack.c.b16 %v4574, %v4573
  %v4590 = vpack.c.b16 %v4576, %v4575
  %v4591 = vpack.c.b16 %v4578, %v4577
  %v4592 = vpack.c.b16 %v4580, %v4579
  %v4593 = vpack.c.b16 %v4582, %v4581
  %v4594 = vpack.c.b16 %v4584, %v4583
  %v4595 = vpack.c.b16 %v4586, %v4585
  %v4596 = vpack.c.b16 %v4588, %v4587
  %4605 = vmatprep.subr.bf16.mxu0 0
  %4606 = vmatpush1.bf16.msra.mxu0 %v4589
  %4607 = vmatprep.subr.bf16.mxu0 0
  %4608 = vmatpush1.bf16.msra.mxu0 %v4590
  %4609 = vmatprep.subr.bf16.mxu0 0
  %4610 = vmatpush1.bf16.msra.mxu0 %v4591
  %4611 = vmatprep.subr.bf16.mxu0 0
  %4612 = vmatpush1.bf16.msra.mxu0 %v4592
  %4613 = vmatprep.subr.bf16.mxu0 0
  %4614 = vmatpush1.bf16.msra.mxu0 %v4593
  %4615 = vmatprep.subr.bf16.mxu0 0
  %4616 = vmatpush1.bf16.msra.mxu0 %v4594
  %4617 = vmatprep.subr.bf16.mxu0 0
  %4618 = vmatpush1.bf16.msra.mxu0 %v4595
  %4619 = vmatprep.subr.bf16.mxu0 0
  %4620 = vmatpush1.bf16.msra.mxu0 %v4596
  %4621 = vmatprep.subr.bf16.mxu0 0
  %4622 = vmatpush1.bf16.msra.mxu0 0
  %4623 = vmatprep.subr.bf16.mxu0 0
  %4624 = vmatpush1.bf16.msra.mxu0 0
  %4625 = vmatprep.subr.bf16.mxu0 0
  %4626 = vmatpush1.bf16.msra.mxu0 0
  %4627 = vmatprep.subr.bf16.mxu0 0
  %4628 = vmatpush1.bf16.msra.mxu0 0
  %4629 = vmatprep.subr.bf16.mxu0 0
  %4630 = vmatpush1.bf16.msra.mxu0 0
  %4631 = vmatprep.subr.bf16.mxu0 0
  %4632 = vmatpush1.bf16.msra.mxu0 0
  %4633 = vmatprep.subr.bf16.mxu0 0
  %4634 = vmatpush1.bf16.msra.mxu0 0
  %4635 = vmatprep.subr.bf16.mxu0 0
  %4636 = vmatpush1.bf16.msra.mxu0 0
  %4637 = vmatprep.mubr.bf16.mxu0 0
  %4638 = vmatmul.mubr.bf16.gmra.mrb[0].mxu0 %v4555
  %v4639 = vpop.f32.mrb[0].mxu0
  %v4640 = vadd.f32 0.0, %v4639
  %v4641 = vpop.f32.mrb[0].mxu0
  %v4642 = vpop.f32.mrb[0].mxu0
  %v4643 = vpop.f32.mrb[0].mxu0
  %4644 = vdwg.mxu0
  %v4645 = vadd.f32 %v4537, %v4640
  %v4646 = vpack.c.bf16 %v4001, %v4001
  %v4647 = vld [vmem:[%s5 + $0x180] sm:$0xf]
  %v4648 = vld [vmem:[%s5 + $0x184] sm:$0xf]
  %v4649 = vld [vmem:[%s5 + $0x188] sm:$0xf]
  %v4650 = vld [vmem:[%s5 + $0x18c] sm:$0xf]
  %v4651 = vld [vmem:[%s5 + $0x190] sm:$0xf]
  %v4652 = vld [vmem:[%s5 + $0x194] sm:$0xf]
  %v4653 = vld [vmem:[%s5 + $0x198] sm:$0xf]
  %v4654 = vld [vmem:[%s5 + $0x19c] sm:$0xf]
  %v4655 = vld [vmem:[%s5 + $0x1a0] sm:$0xf]
  %v4656 = vld [vmem:[%s5 + $0x1a4] sm:$0xf]
  %v4657 = vld [vmem:[%s5 + $0x1a8] sm:$0xf]
  %v4658 = vld [vmem:[%s5 + $0x1ac] sm:$0xf]
  %v4659 = vld [vmem:[%s5 + $0x1b0] sm:$0xf]
  %v4660 = vld [vmem:[%s5 + $0x1b4] sm:$0xf]
  %v4661 = vld [vmem:[%s5 + $0x1b8] sm:$0xf]
  %v4662 = vld [vmem:[%s5 + $0x1bc] sm:$0xf]
  %v4679 = vunpack.c.l.b16 %v4647
  %v4680 = vunpack.c.l.b16 %v4648
  %v4681 = vunpack.c.l.b16 %v4649
  %v4682 = vunpack.c.l.b16 %v4650
  %v4683 = vunpack.c.l.b16 %v4651
  %v4684 = vunpack.c.l.b16 %v4652
  %v4685 = vunpack.c.l.b16 %v4653
  %v4686 = vunpack.c.l.b16 %v4654
  %v4687 = vunpack.c.l.b16 %v4655
  %v4688 = vunpack.c.l.b16 %v4656
  %v4689 = vunpack.c.l.b16 %v4657
  %v4690 = vunpack.c.l.b16 %v4658
  %v4691 = vunpack.c.l.b16 %v4659
  %v4692 = vunpack.c.l.b16 %v4660
  %v4693 = vunpack.c.l.b16 %v4661
  %v4694 = vunpack.c.l.b16 %v4662
  %v4695 = vpack.c.b16 %v4680, %v4679
  %v4696 = vpack.c.b16 %v4682, %v4681
  %v4697 = vpack.c.b16 %v4684, %v4683
  %v4698 = vpack.c.b16 %v4686, %v4685
  %v4699 = vpack.c.b16 %v4688, %v4687
  %v4700 = vpack.c.b16 %v4690, %v4689
  %v4701 = vpack.c.b16 %v4692, %v4691
  %v4702 = vpack.c.b16 %v4694, %v4693
  %4711 = vmatprep.subr.bf16.mxu0 0
  %4712 = vmatpush1.bf16.msra.mxu0 %v4695
  %4713 = vmatprep.subr.bf16.mxu0 0
  %4714 = vmatpush1.bf16.msra.mxu0 %v4696
  %4715 = vmatprep.subr.bf16.mxu0 0
  %4716 = vmatpush1.bf16.msra.mxu0 %v4697
  %4717 = vmatprep.subr.bf16.mxu0 0
  %4718 = vmatpush1.bf16.msra.mxu0 %v4698
  %4719 = vmatprep.subr.bf16.mxu0 0
  %4720 = vmatpush1.bf16.msra.mxu0 %v4699
  %4721 = vmatprep.subr.bf16.mxu0 0
  %4722 = vmatpush1.bf16.msra.mxu0 %v4700
  %4723 = vmatprep.subr.bf16.mxu0 0
  %4724 = vmatpush1.bf16.msra.mxu0 %v4701
  %4725 = vmatprep.subr.bf16.mxu0 0
  %4726 = vmatpush1.bf16.msra.mxu0 %v4702
  %4727 = vmatprep.subr.bf16.mxu0 0
  %4728 = vmatpush1.bf16.msra.mxu0 0
  %4729 = vmatprep.subr.bf16.mxu0 0
  %4730 = vmatpush1.bf16.msra.mxu0 0
  %4731 = vmatprep.subr.bf16.mxu0 0
  %4732 = vmatpush1.bf16.msra.mxu0 0
  %4733 = vmatprep.subr.bf16.mxu0 0
  %4734 = vmatpush1.bf16.msra.mxu0 0
  %4735 = vmatprep.subr.bf16.mxu0 0
  %4736 = vmatpush1.bf16.msra.mxu0 0
  %4737 = vmatprep.subr.bf16.mxu0 0
  %4738 = vmatpush1.bf16.msra.mxu0 0
  %4739 = vmatprep.subr.bf16.mxu0 0
  %4740 = vmatpush1.bf16.msra.mxu0 0
  %4741 = vmatprep.subr.bf16.mxu0 0
  %4742 = vmatpush1.bf16.msra.mxu0 0
  %4743 = vmatprep.mubr.bf16.mxu0 0
  %4744 = vmatmul.mubr.bf16.gmra.mrb[0].mxu0 %v4646
  %v4745 = vpop.f32.mrb[0].mxu0
  %v4746 = vadd.f32 0.0, %v4745
  %v4747 = vpop.f32.mrb[0].mxu0
  %v4748 = vpop.f32.mrb[0].mxu0
  %v4749 = vpop.f32.mrb[0].mxu0
  %4750 = vdwg.mxu0
  %v4751 = vadd.f32 %v4645, %v4746
  %v4752 = vld [vmem:[%s5 + $0x1c0] sm:$0xf]
  %v4753 = vld [vmem:[%s5 + $0x1c4] sm:$0xf]
  %v4754 = vld [vmem:[%s5 + $0x1c8] sm:$0xf]
  %v4755 = vld [vmem:[%s5 + $0x1cc] sm:$0xf]
  %v4756 = vld [vmem:[%s5 + $0x1d0] sm:$0xf]
  %v4757 = vld [vmem:[%s5 + $0x1d4] sm:$0xf]
  %v4758 = vld [vmem:[%s5 + $0x1d8] sm:$0xf]
  %v4759 = vld [vmem:[%s5 + $0x1dc] sm:$0xf]
  %v4760 = vld [vmem:[%s5 + $0x1e0] sm:$0xf]
  %v4761 = vld [vmem:[%s5 + $0x1e4] sm:$0xf]
  %v4762 = vld [vmem:[%s5 + $0x1e8] sm:$0xf]
  %v4763 = vld [vmem:[%s5 + $0x1ec] sm:$0xf]
  %v4764 = vld [vmem:[%s5 + $0x1f0] sm:$0xf]
  %v4765 = vld [vmem:[%s5 + $0x1f4] sm:$0xf]
  %v4766 = vld [vmem:[%s5 + $0x1f8] sm:$0xf]
  %v4767 = vld [vmem:[%s5 + $0x1fc] sm:$0xf]
  %v4769 = vrot.slane %v4646, 2
  %v4787 = vunpack.c.l.b16 %v4752
  %v4788 = vunpack.c.l.b16 %v4753
  %v4789 = vunpack.c.l.b16 %v4754
  %v4790 = vunpack.c.l.b16 %v4755
  %v4791 = vunpack.c.l.b16 %v4756
  %v4792 = vunpack.c.l.b16 %v4757
  %v4793 = vunpack.c.l.b16 %v4758
  %v4794 = vunpack.c.l.b16 %v4759
  %v4795 = vunpack.c.l.b16 %v4760
  %v4796 = vunpack.c.l.b16 %v4761
  %v4797 = vunpack.c.l.b16 %v4762
  %v4798 = vunpack.c.l.b16 %v4763
  %v4799 = vunpack.c.l.b16 %v4764
  %v4800 = vunpack.c.l.b16 %v4765
  %v4801 = vunpack.c.l.b16 %v4766
  %v4802 = vunpack.c.l.b16 %v4767
  %v4803 = vpack.c.b16 %v4788, %v4787
  %v4804 = vpack.c.b16 %v4790, %v4789
  %v4805 = vpack.c.b16 %v4792, %v4791
  %v4806 = vpack.c.b16 %v4794, %v4793
  %v4807 = vpack.c.b16 %v4796, %v4795
  %v4808 = vpack.c.b16 %v4798, %v4797
  %v4809 = vpack.c.b16 %v4800, %v4799
  %v4810 = vpack.c.b16 %v4802, %v4801
  %4819 = vmatprep.subr.bf16.mxu0 0
  %4820 = vmatpush1.bf16.msra.mxu0 %v4803
  %4821 = vmatprep.subr.bf16.mxu0 0
  %4822 = vmatpush1.bf16.msra.mxu0 %v4804
  %4823 = vmatprep.subr.bf16.mxu0 0
  %4824 = vmatpush1.bf16.msra.mxu0 %v4805
  %4825 = vmatprep.subr.bf16.mxu0 0
  %4826 = vmatpush1.bf16.msra.mxu0 %v4806
  %4827 = vmatprep.subr.bf16.mxu0 0
  %4828 = vmatpush1.bf16.msra.mxu0 %v4807
  %4829 = vmatprep.subr.bf16.mxu0 0
  %4830 = vmatpush1.bf16.msra.mxu0 %v4808
  %4831 = vmatprep.subr.bf16.mxu0 0
  %4832 = vmatpush1.bf16.msra.mxu0 %v4809
  %4833 = vmatprep.subr.bf16.mxu0 0
  %4834 = vmatpush1.bf16.msra.mxu0 %v4810
  %4835 = vmatprep.subr.bf16.mxu0 0
  %4836 = vmatpush1.bf16.msra.mxu0 0
  %4837 = vmatprep.subr.bf16.mxu0 0
  %4838 = vmatpush1.bf16.msra.mxu0 0
  %4839 = vmatprep.subr.bf16.mxu0 0
  %4840 = vmatpush1.bf16.msra.mxu0 0
  %4841 = vmatprep.subr.bf16.mxu0 0
  %4842 = vmatpush1.bf16.msra.mxu0 0
  %4843 = vmatprep.subr.bf16.mxu0 0
  %4844 = vmatpush1.bf16.msra.mxu0 0
  %4845 = vmatprep.subr.bf16.mxu0 0
  %4846 = vmatpush1.bf16.msra.mxu0 0
  %4847 = vmatprep.subr.bf16.mxu0 0
  %4848 = vmatpush1.bf16.msra.mxu0 0
  %4849 = vmatprep.subr.bf16.mxu0 0
  %4850 = vmatpush1.bf16.msra.mxu0 0
  %4851 = vmatprep.mubr.bf16.mxu0 0
  %4852 = vmatmul.mubr.bf16.gmra.mrb[0].mxu0 %v4769
  %v4853 = vpop.f32.mrb[0].mxu0
  %v4854 = vadd.f32 0.0, %v4853
  %v4855 = vpop.f32.mrb[0].mxu0
  %v4856 = vpop.f32.mrb[0].mxu0
  %v4857 = vpop.f32.mrb[0].mxu0
  %4858 = vdwg.mxu0
  %v4859 = vadd.f32 %v4751, %v4854
  %v4860 = vpack.c.bf16 %v4002, %v4002
  %v4861 = vld [vmem:[%s5 + $0x200] sm:$0xf]
  %v4862 = vld [vmem:[%s5 + $0x204] sm:$0xf]
  %v4863 = vld [vmem:[%s5 + $0x208] sm:$0xf]
  %v4864 = vld [vmem:[%s5 + $0x20c] sm:$0xf]
  %v4865 = vld [vmem:[%s5 + $0x210] sm:$0xf]
  %v4866 = vld [vmem:[%s5 + $0x214] sm:$0xf]
  %v4867 = vld [vmem:[%s5 + $0x218] sm:$0xf]
  %v4868 = vld [vmem:[%s5 + $0x21c] sm:$0xf]
  %v4869 = vld [vmem:[%s5 + $0x220] sm:$0xf]
  %v4870 = vld [vmem:[%s5 + $0x224] sm:$0xf]
  %v4871 = vld [vmem:[%s5 + $0x228] sm:$0xf]
  %v4872 = vld [vmem:[%s5 + $0x22c] sm:$0xf]
  %v4873 = vld [vmem:[%s5 + $0x230] sm:$0xf]
  %v4874 = vld [vmem:[%s5 + $0x234] sm:$0xf]
  %v4875 = vld [vmem:[%s5 + $0x238] sm:$0xf]
  %v4876 = vld [vmem:[%s5 + $0x23c] sm:$0xf]
  %v4893 = vunpack.c.l.b16 %v4861
  %v4894 = vunpack.c.l.b16 %v4862
  %v4895 = vunpack.c.l.b16 %v4863
  %v4896 = vunpack.c.l.b16 %v4864
  %v4897 = vunpack.c.l.b16 %v4865
  %v4898 = vunpack.c.l.b16 %v4866
  %v4899 = vunpack.c.l.b16 %v4867
  %v4900 = vunpack.c.l.b16 %v4868
  %v4901 = vunpack.c.l.b16 %v4869
  %v4902 = vunpack.c.l.b16 %v4870
  %v4903 = vunpack.c.l.b16 %v4871
  %v4904 = vunpack.c.l.b16 %v4872
  %v4905 = vunpack.c.l.b16 %v4873
  %v4906 = vunpack.c.l.b16 %v4874
  %v4907 = vunpack.c.l.b16 %v4875
  %v4908 = vunpack.c.l.b16 %v4876
  %v4909 = vpack.c.b16 %v4894, %v4893
  %v4910 = vpack.c.b16 %v4896, %v4895
  %v4911 = vpack.c.b16 %v4898, %v4897
  %v4912 = vpack.c.b16 %v4900, %v4899
  %v4913 = vpack.c.b16 %v4902, %v4901
  %v4914 = vpack.c.b16 %v4904, %v4903
  %v4915 = vpack.c.b16 %v4906, %v4905
  %v4916 = vpack.c.b16 %v4908, %v4907
  %4925 = vmatprep.subr.bf16.mxu0 0
  %4926 = vmatpush1.bf16.msra.mxu0 %v4909
  %4927 = vmatprep.subr.bf16.mxu0 0
  %4928 = vmatpush1.bf16.msra.mxu0 %v4910
  %4929 = vmatprep.subr.bf16.mxu0 0
  %4930 = vmatpush1.bf16.msra.mxu0 %v4911
  %4931 = vmatprep.subr.bf16.mxu0 0
  %4932 = vmatpush1.bf16.msra.mxu0 %v4912
  %4933 = vmatprep.subr.bf16.mxu0 0
  %4934 = vmatpush1.bf16.msra.mxu0 %v4913
  %4935 = vmatprep.subr.bf16.mxu0 0
  %4936 = vmatpush1.bf16.msra.mxu0 %v4914
  %4937 = vmatprep.subr.bf16.mxu0 0
  %4938 = vmatpush1.bf16.msra.mxu0 %v4915
  %4939 = vmatprep.subr.bf16.mxu0 0
  %4940 = vmatpush1.bf16.msra.mxu0 %v4916
  %4941 = vmatprep.subr.bf16.mxu0 0
  %4942 = vmatpush1.bf16.msra.mxu0 0
  %4943 = vmatprep.subr.bf16.mxu0 0
  %4944 = vmatpush1.bf16.msra.mxu0 0
  %4945 = vmatprep.subr.bf16.mxu0 0
  %4946 = vmatpush1.bf16.msra.mxu0 0
  %4947 = vmatprep.subr.bf16.mxu0 0
  %4948 = vmatpush1.bf16.msra.mxu0 0
  %4949 = vmatprep.subr.bf16.mxu0 0
  %4950 = vmatpush1.bf16.msra.mxu0 0
  %4951 = vmatprep.subr.bf16.mxu0 0
  %4952 = vmatpush1.bf16.msra.mxu0 0
  %4953 = vmatprep.subr.bf16.mxu0 0
  %4954 = vmatpush1.bf16.msra.mxu0 0
  %4955 = vmatprep.subr.bf16.mxu0 0
  %4956 = vmatpush1.bf16.msra.mxu0 0
  %4957 = vmatprep.mubr.bf16.mxu0 0
  %4958 = vmatmul.mubr.bf16.gmra.mrb[0].mxu0 %v4860
  %v4959 = vpop.f32.mrb[0].mxu0
  %v4960 = vadd.f32 0.0, %v4959
  %v4961 = vpop.f32.mrb[0].mxu0
  %v4962 = vpop.f32.mrb[0].mxu0
  %v4963 = vpop.f32.mrb[0].mxu0
  %4964 = vdwg.mxu0
  %v4965 = vadd.f32 %v4859, %v4960
  %v4966 = vld [vmem:[%s5 + $0x240] sm:$0xf]
  %v4967 = vld [vmem:[%s5 + $0x244] sm:$0xf]
  %v4968 = vld [vmem:[%s5 + $0x248] sm:$0xf]
  %v4969 = vld [vmem:[%s5 + $0x24c] sm:$0xf]
  %v4970 = vld [vmem:[%s5 + $0x250] sm:$0xf]
  %v4971 = vld [vmem:[%s5 + $0x254] sm:$0xf]
  %v4972 = vld [vmem:[%s5 + $0x258] sm:$0xf]
  %v4973 = vld [vmem:[%s5 + $0x25c] sm:$0xf]
  %v4974 = vld [vmem:[%s5 + $0x260] sm:$0xf]
  %v4975 = vld [vmem:[%s5 + $0x264] sm:$0xf]
  %v4976 = vld [vmem:[%s5 + $0x268] sm:$0xf]
  %v4977 = vld [vmem:[%s5 + $0x26c] sm:$0xf]
  %v4978 = vld [vmem:[%s5 + $0x270] sm:$0xf]
  %v4979 = vld [vmem:[%s5 + $0x274] sm:$0xf]
  %v4980 = vld [vmem:[%s5 + $0x278] sm:$0xf]
  %v4981 = vld [vmem:[%s5 + $0x27c] sm:$0xf]
  %v4983 = vrot.slane %v4860, 2
  %v5001 = vunpack.c.l.b16 %v4966
  %v5002 = vunpack.c.l.b16 %v4967
  %v5003 = vunpack.c.l.b16 %v4968
  %v5004 = vunpack.c.l.b16 %v4969
  %v5005 = vunpack.c.l.b16 %v4970
  %v5006 = vunpack.c.l.b16 %v4971
  %v5007 = vunpack.c.l.b16 %v4972
  %v5008 = vunpack.c.l.b16 %v4973
  %v5009 = vunpack.c.l.b16 %v4974
  %v5010 = vunpack.c.l.b16 %v4975
  %v5011 = vunpack.c.l.b16 %v4976
  %v5012 = vunpack.c.l.b16 %v4977
  %v5013 = vunpack.c.l.b16 %v4978
  %v5014 = vunpack.c.l.b16 %v4979
  %v5015 = vunpack.c.l.b16 %v4980
  %v5016 = vunpack.c.l.b16 %v4981
  %v5017 = vpack.c.b16 %v5002, %v5001
  %v5018 = vpack.c.b16 %v5004, %v5003
  %v5019 = vpack.c.b16 %v5006, %v5005
  %v5020 = vpack.c.b16 %v5008, %v5007
  %v5021 = vpack.c.b16 %v5010, %v5009
  %v5022 = vpack.c.b16 %v5012, %v5011
  %v5023 = vpack.c.b16 %v5014, %v5013
  %v5024 = vpack.c.b16 %v5016, %v5015
  %5033 = vmatprep.subr.bf16.mxu0 0
  %5034 = vmatpush1.bf16.msra.mxu0 %v5017
  %5035 = vmatprep.subr.bf16.mxu0 0
  %5036 = vmatpush1.bf16.msra.mxu0 %v5018
  %5037 = vmatprep.subr.bf16.mxu0 0
  %5038 = vmatpush1.bf16.msra.mxu0 %v5019
  %5039 = vmatprep.subr.bf16.mxu0 0
  %5040 = vmatpush1.bf16.msra.mxu0 %v5020
  %5041 = vmatprep.subr.bf16.mxu0 0
  %5042 = vmatpush1.bf16.msra.mxu0 %v5021
  %5043 = vmatprep.subr.bf16.mxu0 0
  %5044 = vmatpush1.bf16.msra.mxu0 %v5022
  %5045 = vmatprep.subr.bf16.mxu0 0
  %5046 = vmatpush1.bf16.msra.mxu0 %v5023
  %5047 = vmatprep.subr.bf16.mxu0 0
  %5048 = vmatpush1.bf16.msra.mxu0 %v5024
  %5049 = vmatprep.subr.bf16.mxu0 0
  %5050 = vmatpush1.bf16.msra.mxu0 0
  %5051 = vmatprep.subr.bf16.mxu0 0
  %5052 = vmatpush1.bf16.msra.mxu0 0
  %5053 = vmatprep.subr.bf16.mxu0 0
  %5054 = vmatpush1.bf16.msra.mxu0 0
  %5055 = vmatprep.subr.bf16.mxu0 0
  %5056 = vmatpush1.bf16.msra.mxu0 0
  %5057 = vmatprep.subr.bf16.mxu0 0
  %5058 = vmatpush1.bf16.msra.mxu0 0
  %5059 = vmatprep.subr.bf16.mxu0 0
  %5060 = vmatpush1.bf16.msra.mxu0 0
  %5061 = vmatprep.subr.bf16.mxu0 0
  %5062 = vmatpush1.bf16.msra.mxu0 0
  %5063 = vmatprep.subr.bf16.mxu0 0
  %5064 = vmatpush1.bf16.msra.mxu0 0
  %5065 = vmatprep.mubr.bf16.mxu0 0
  %5066 = vmatmul.mubr.bf16.gmra.mrb[0].mxu0 %v4983
  %v5067 = vpop.f32.mrb[0].mxu0
  %v5068 = vadd.f32 0.0, %v5067
  %v5069 = vpop.f32.mrb[0].mxu0
  %v5070 = vpop.f32.mrb[0].mxu0
  %v5071 = vpop.f32.mrb[0].mxu0
  %5072 = vdwg.mxu0
  %v5073 = vadd.f32 %v4965, %v5068
  %v5074 = vpack.c.bf16 %v4003, %v4003
  %v5075 = vld [vmem:[%s5 + $0x280] sm:$0xf]
  %v5076 = vld [vmem:[%s5 + $0x284] sm:$0xf]
  %v5077 = vld [vmem:[%s5 + $0x288] sm:$0xf]
  %v5078 = vld [vmem:[%s5 + $0x28c] sm:$0xf]
  %v5079 = vld [vmem:[%s5 + $0x290] sm:$0xf]
  %v5080 = vld [vmem:[%s5 + $0x294] sm:$0xf]
  %v5081 = vld [vmem:[%s5 + $0x298] sm:$0xf]
  %v5082 = vld [vmem:[%s5 + $0x29c] sm:$0xf]
  %v5083 = vld [vmem:[%s5 + $0x2a0] sm:$0xf]
  %v5084 = vld [vmem:[%s5 + $0x2a4] sm:$0xf]
  %v5085 = vld [vmem:[%s5 + $0x2a8] sm:$0xf]
  %v5086 = vld [vmem:[%s5 + $0x2ac] sm:$0xf]
  %v5087 = vld [vmem:[%s5 + $0x2b0] sm:$0xf]
  %v5088 = vld [vmem:[%s5 + $0x2b4] sm:$0xf]
  %v5089 = vld [vmem:[%s5 + $0x2b8] sm:$0xf]
  %v5090 = vld [vmem:[%s5 + $0x2bc] sm:$0xf]
  %v5107 = vunpack.c.l.b16 %v5075
  %v5108 = vunpack.c.l.b16 %v5076
  %v5109 = vunpack.c.l.b16 %v5077
  %v5110 = vunpack.c.l.b16 %v5078
  %v5111 = vunpack.c.l.b16 %v5079
  %v5112 = vunpack.c.l.b16 %v5080
  %v5113 = vunpack.c.l.b16 %v5081
  %v5114 = vunpack.c.l.b16 %v5082
  %v5115 = vunpack.c.l.b16 %v5083
  %v5116 = vunpack.c.l.b16 %v5084
  %v5117 = vunpack.c.l.b16 %v5085
  %v5118 = vunpack.c.l.b16 %v5086
  %v5119 = vunpack.c.l.b16 %v5087
  %v5120 = vunpack.c.l.b16 %v5088
  %v5121 = vunpack.c.l.b16 %v5089
  %v5122 = vunpack.c.l.b16 %v5090
  %v5123 = vpack.c.b16 %v5108, %v5107
  %v5124 = vpack.c.b16 %v5110, %v5109
  %v5125 = vpack.c.b16 %v5112, %v5111
  %v5126 = vpack.c.b16 %v5114, %v5113
  %v5127 = vpack.c.b16 %v5116, %v5115
  %v5128 = vpack.c.b16 %v5118, %v5117
  %v5129 = vpack.c.b16 %v5120, %v5119
  %v5130 = vpack.c.b16 %v5122, %v5121
  %5139 = vmatprep.subr.bf16.mxu0 0
  %5140 = vmatpush1.bf16.msra.mxu0 %v5123
  %5141 = vmatprep.subr.bf16.mxu0 0
  %5142 = vmatpush1.bf16.msra.mxu0 %v5124
  %5143 = vmatprep.subr.bf16.mxu0 0
  %5144 = vmatpush1.bf16.msra.mxu0 %v5125
  %5145 = vmatprep.subr.bf16.mxu0 0
  %5146 = vmatpush1.bf16.msra.mxu0 %v5126
  %5147 = vmatprep.subr.bf16.mxu0 0
  %5148 = vmatpush1.bf16.msra.mxu0 %v5127
  %5149 = vmatprep.subr.bf16.mxu0 0
  %5150 = vmatpush1.bf16.msra.mxu0 %v5128
  %5151 = vmatprep.subr.bf16.mxu0 0
  %5152 = vmatpush1.bf16.msra.mxu0 %v5129
  %5153 = vmatprep.subr.bf16.mxu0 0
  %5154 = vmatpush1.bf16.msra.mxu0 %v5130
  %5155 = vmatprep.subr.bf16.mxu0 0
  %5156 = vmatpush1.bf16.msra.mxu0 0
  %5157 = vmatprep.subr.bf16.mxu0 0
  %5158 = vmatpush1.bf16.msra.mxu0 0
  %5159 = vmatprep.subr.bf16.mxu0 0
  %5160 = vmatpush1.bf16.msra.mxu0 0
  %5161 = vmatprep.subr.bf16.mxu0 0
  %5162 = vmatpush1.bf16.msra.mxu0 0
  %5163 = vmatprep.subr.bf16.mxu0 0
  %5164 = vmatpush1.bf16.msra.mxu0 0
  %5165 = vmatprep.subr.bf16.mxu0 0
  %5166 = vmatpush1.bf16.msra.mxu0 0
  %5167 = vmatprep.subr.bf16.mxu0 0
  %5168 = vmatpush1.bf16.msra.mxu0 0
  %5169 = vmatprep.subr.bf16.mxu0 0
  %5170 = vmatpush1.bf16.msra.mxu0 0
  %5171 = vmatprep.mubr.bf16.mxu0 0
  %5172 = vmatmul.mubr.bf16.gmra.mrb[0].mxu0 %v5074
  %v5173 = vpop.f32.mrb[0].mxu0
  %v5174 = vadd.f32 0.0, %v5173
  %v5175 = vpop.f32.mrb[0].mxu0
  %v5176 = vpop.f32.mrb[0].mxu0
  %v5177 = vpop.f32.mrb[0].mxu0
  %5178 = vdwg.mxu0
  %v5179 = vadd.f32 %v5073, %v5174
  %v5180 = vld [vmem:[%s5 + $0x2c0] sm:$0xf]
  %v5181 = vld [vmem:[%s5 + $0x2c4] sm:$0xf]
  %v5182 = vld [vmem:[%s5 + $0x2c8] sm:$0xf]
  %v5183 = vld [vmem:[%s5 + $0x2cc] sm:$0xf]
  %v5184 = vld [vmem:[%s5 + $0x2d0] sm:$0xf]
  %v5185 = vld [vmem:[%s5 + $0x2d4] sm:$0xf]
  %v5186 = vld [vmem:[%s5 + $0x2d8] sm:$0xf]
  %v5187 = vld [vmem:[%s5 + $0x2dc] sm:$0xf]
  %v5188 = vld [vmem:[%s5 + $0x2e0] sm:$0xf]
  %v5189 = vld [vmem:[%s5 + $0x2e4] sm:$0xf]
  %v5190 = vld [vmem:[%s5 + $0x2e8] sm:$0xf]
  %v5191 = vld [vmem:[%s5 + $0x2ec] sm:$0xf]
  %v5192 = vld [vmem:[%s5 + $0x2f0] sm:$0xf]
  %v5193 = vld [vmem:[%s5 + $0x2f4] sm:$0xf]
  %v5194 = vld [vmem:[%s5 + $0x2f8] sm:$0xf]
  %v5195 = vld [vmem:[%s5 + $0x2fc] sm:$0xf]
  %v5197 = vrot.slane %v5074, 2
  %v5215 = vunpack.c.l.b16 %v5180
  %v5216 = vunpack.c.l.b16 %v5181
  %v5217 = vunpack.c.l.b16 %v5182
  %v5218 = vunpack.c.l.b16 %v5183
  %v5219 = vunpack.c.l.b16 %v5184
  %v5220 = vunpack.c.l.b16 %v5185
  %v5221 = vunpack.c.l.b16 %v5186
  %v5222 = vunpack.c.l.b16 %v5187
  %v5223 = vunpack.c.l.b16 %v5188
  %v5224 = vunpack.c.l.b16 %v5189
  %v5225 = vunpack.c.l.b16 %v5190
  %v5226 = vunpack.c.l.b16 %v5191
  %v5227 = vunpack.c.l.b16 %v5192
  %v5228 = vunpack.c.l.b16 %v5193
  %v5229 = vunpack.c.l.b16 %v5194
  %v5230 = vunpack.c.l.b16 %v5195
  %v5231 = vpack.c.b16 %v5216, %v5215
  %v5232 = vpack.c.b16 %v5218, %v5217
  %v5233 = vpack.c.b16 %v5220, %v5219
  %v5234 = vpack.c.b16 %v5222, %v5221
  %v5235 = vpack.c.b16 %v5224, %v5223
  %v5236 = vpack.c.b16 %v5226, %v5225
  %v5237 = vpack.c.b16 %v5228, %v5227
  %v5238 = vpack.c.b16 %v5230, %v5229
  %5247 = vmatprep.subr.bf16.mxu0 0
  %5248 = vmatpush1.bf16.msra.mxu0 %v5231
  %5249 = vmatprep.subr.bf16.mxu0 0
  %5250 = vmatpush1.bf16.msra.mxu0 %v5232
  %5251 = vmatprep.subr.bf16.mxu0 0
  %5252 = vmatpush1.bf16.msra.mxu0 %v5233
  %5253 = vmatprep.subr.bf16.mxu0 0
  %5254 = vmatpush1.bf16.msra.mxu0 %v5234
  %5255 = vmatprep.subr.bf16.mxu0 0
  %5256 = vmatpush1.bf16.msra.mxu0 %v5235
  %5257 = vmatprep.subr.bf16.mxu0 0
  %5258 = vmatpush1.bf16.msra.mxu0 %v5236
  %5259 = vmatprep.subr.bf16.mxu0 0
  %5260 = vmatpush1.bf16.msra.mxu0 %v5237
  %5261 = vmatprep.subr.bf16.mxu0 0
  %5262 = vmatpush1.bf16.msra.mxu0 %v5238
  %5263 = vmatprep.subr.bf16.mxu0 0
  %5264 = vmatpush1.bf16.msra.mxu0 0
  %5265 = vmatprep.subr.bf16.mxu0 0
  %5266 = vmatpush1.bf16.msra.mxu0 0
  %5267 = vmatprep.subr.bf16.mxu0 0
  %5268 = vmatpush1.bf16.msra.mxu0 0
  %5269 = vmatprep.subr.bf16.mxu0 0
  %5270 = vmatpush1.bf16.msra.mxu0 0
  %5271 = vmatprep.subr.bf16.mxu0 0
  %5272 = vmatpush1.bf16.msra.mxu0 0
  %5273 = vmatprep.subr.bf16.mxu0 0
  %5274 = vmatpush1.bf16.msra.mxu0 0
  %5275 = vmatprep.subr.bf16.mxu0 0
  %5276 = vmatpush1.bf16.msra.mxu0 0
  %5277 = vmatprep.subr.bf16.mxu0 0
  %5278 = vmatpush1.bf16.msra.mxu0 0
  %5279 = vmatprep.mubr.bf16.mxu0 0
  %5280 = vmatmul.mubr.bf16.gmra.mrb[0].mxu0 %v5197
  %v5281 = vpop.f32.mrb[0].mxu0
  %v5282 = vadd.f32 0.0, %v5281
  %v5283 = vpop.f32.mrb[0].mxu0
  %v5284 = vpop.f32.mrb[0].mxu0
  %v5285 = vpop.f32.mrb[0].mxu0
  %5286 = vdwg.mxu0
  %v5287 = vadd.f32 %v5179, %v5282
  %v5288 = vpack.c.bf16 %v4004, %v4004
  %v5289 = vld [vmem:[%s5 + $0x300] sm:$0xf]
  %v5290 = vld [vmem:[%s5 + $0x304] sm:$0xf]
  %v5291 = vld [vmem:[%s5 + $0x308] sm:$0xf]
  %v5292 = vld [vmem:[%s5 + $0x30c] sm:$0xf]
  %v5293 = vld [vmem:[%s5 + $0x310] sm:$0xf]
  %v5294 = vld [vmem:[%s5 + $0x314] sm:$0xf]
  %v5295 = vld [vmem:[%s5 + $0x318] sm:$0xf]
  %v5296 = vld [vmem:[%s5 + $0x31c] sm:$0xf]
  %v5297 = vld [vmem:[%s5 + $0x320] sm:$0xf]
  %v5298 = vld [vmem:[%s5 + $0x324] sm:$0xf]
  %v5299 = vld [vmem:[%s5 + $0x328] sm:$0xf]
  %v5300 = vld [vmem:[%s5 + $0x32c] sm:$0xf]
  %v5301 = vld [vmem:[%s5 + $0x330] sm:$0xf]
  %v5302 = vld [vmem:[%s5 + $0x334] sm:$0xf]
  %v5303 = vld [vmem:[%s5 + $0x338] sm:$0xf]
  %v5304 = vld [vmem:[%s5 + $0x33c] sm:$0xf]
  %v5321 = vunpack.c.l.b16 %v5289
  %v5322 = vunpack.c.l.b16 %v5290
  %v5323 = vunpack.c.l.b16 %v5291
  %v5324 = vunpack.c.l.b16 %v5292
  %v5325 = vunpack.c.l.b16 %v5293
  %v5326 = vunpack.c.l.b16 %v5294
  %v5327 = vunpack.c.l.b16 %v5295
  %v5328 = vunpack.c.l.b16 %v5296
  %v5329 = vunpack.c.l.b16 %v5297
  %v5330 = vunpack.c.l.b16 %v5298
  %v5331 = vunpack.c.l.b16 %v5299
  %v5332 = vunpack.c.l.b16 %v5300
  %v5333 = vunpack.c.l.b16 %v5301
  %v5334 = vunpack.c.l.b16 %v5302
  %v5335 = vunpack.c.l.b16 %v5303
  %v5336 = vunpack.c.l.b16 %v5304
  %v5337 = vpack.c.b16 %v5322, %v5321
  %v5338 = vpack.c.b16 %v5324, %v5323
  %v5339 = vpack.c.b16 %v5326, %v5325
  %v5340 = vpack.c.b16 %v5328, %v5327
  %v5341 = vpack.c.b16 %v5330, %v5329
  %v5342 = vpack.c.b16 %v5332, %v5331
  %v5343 = vpack.c.b16 %v5334, %v5333
  %v5344 = vpack.c.b16 %v5336, %v5335
  %5353 = vmatprep.subr.bf16.mxu0 0
  %5354 = vmatpush1.bf16.msra.mxu0 %v5337
  %5355 = vmatprep.subr.bf16.mxu0 0
  %5356 = vmatpush1.bf16.msra.mxu0 %v5338
  %5357 = vmatprep.subr.bf16.mxu0 0
  %5358 = vmatpush1.bf16.msra.mxu0 %v5339
  %5359 = vmatprep.subr.bf16.mxu0 0
  %5360 = vmatpush1.bf16.msra.mxu0 %v5340
  %5361 = vmatprep.subr.bf16.mxu0 0
  %5362 = vmatpush1.bf16.msra.mxu0 %v5341
  %5363 = vmatprep.subr.bf16.mxu0 0
  %5364 = vmatpush1.bf16.msra.mxu0 %v5342
  %5365 = vmatprep.subr.bf16.mxu0 0
  %5366 = vmatpush1.bf16.msra.mxu0 %v5343
  %5367 = vmatprep.subr.bf16.mxu0 0
  %5368 = vmatpush1.bf16.msra.mxu0 %v5344
  %5369 = vmatprep.subr.bf16.mxu0 0
  %5370 = vmatpush1.bf16.msra.mxu0 0
  %5371 = vmatprep.subr.bf16.mxu0 0
  %5372 = vmatpush1.bf16.msra.mxu0 0
  %5373 = vmatprep.subr.bf16.mxu0 0
  %5374 = vmatpush1.bf16.msra.mxu0 0
  %5375 = vmatprep.subr.bf16.mxu0 0
  %5376 = vmatpush1.bf16.msra.mxu0 0
  %5377 = vmatprep.subr.bf16.mxu0 0
  %5378 = vmatpush1.bf16.msra.mxu0 0
  %5379 = vmatprep.subr.bf16.mxu0 0
  %5380 = vmatpush1.bf16.msra.mxu0 0
  %5381 = vmatprep.subr.bf16.mxu0 0
  %5382 = vmatpush1.bf16.msra.mxu0 0
  %5383 = vmatprep.subr.bf16.mxu0 0
  %5384 = vmatpush1.bf16.msra.mxu0 0
  %5385 = vmatprep.mubr.bf16.mxu0 0
  %5386 = vmatmul.mubr.bf16.gmra.mrb[0].mxu0 %v5288
  %v5387 = vpop.f32.mrb[0].mxu0
  %v5388 = vadd.f32 0.0, %v5387
  %v5389 = vpop.f32.mrb[0].mxu0
  %v5390 = vpop.f32.mrb[0].mxu0
  %v5391 = vpop.f32.mrb[0].mxu0
  %5392 = vdwg.mxu0
  %v5393 = vadd.f32 %v5287, %v5388
  %v5394 = vld [vmem:[%s5 + $0x340] sm:$0xf]
  %v5395 = vld [vmem:[%s5 + $0x344] sm:$0xf]
  %v5396 = vld [vmem:[%s5 + $0x348] sm:$0xf]
  %v5397 = vld [vmem:[%s5 + $0x34c] sm:$0xf]
  %v5398 = vld [vmem:[%s5 + $0x350] sm:$0xf]
  %v5399 = vld [vmem:[%s5 + $0x354] sm:$0xf]
  %v5400 = vld [vmem:[%s5 + $0x358] sm:$0xf]
  %v5401 = vld [vmem:[%s5 + $0x35c] sm:$0xf]
  %v5402 = vld [vmem:[%s5 + $0x360] sm:$0xf]
  %v5403 = vld [vmem:[%s5 + $0x364] sm:$0xf]
  %v5404 = vld [vmem:[%s5 + $0x368] sm:$0xf]
  %v5405 = vld [vmem:[%s5 + $0x36c] sm:$0xf]
  %v5406 = vld [vmem:[%s5 + $0x370] sm:$0xf]
  %v5407 = vld [vmem:[%s5 + $0x374] sm:$0xf]
  %v5408 = vld [vmem:[%s5 + $0x378] sm:$0xf]
  %v5409 = vld [vmem:[%s5 + $0x37c] sm:$0xf]
  %v5411 = vrot.slane %v5288, 2
  %v5429 = vunpack.c.l.b16 %v5394
  %v5430 = vunpack.c.l.b16 %v5395
  %v5431 = vunpack.c.l.b16 %v5396
  %v5432 = vunpack.c.l.b16 %v5397
  %v5433 = vunpack.c.l.b16 %v5398
  %v5434 = vunpack.c.l.b16 %v5399
  %v5435 = vunpack.c.l.b16 %v5400
  %v5436 = vunpack.c.l.b16 %v5401
  %v5437 = vunpack.c.l.b16 %v5402
  %v5438 = vunpack.c.l.b16 %v5403
  %v5439 = vunpack.c.l.b16 %v5404
  %v5440 = vunpack.c.l.b16 %v5405
  %v5441 = vunpack.c.l.b16 %v5406
  %v5442 = vunpack.c.l.b16 %v5407
  %v5443 = vunpack.c.l.b16 %v5408
  %v5444 = vunpack.c.l.b16 %v5409
  %v5445 = vpack.c.b16 %v5430, %v5429
  %v5446 = vpack.c.b16 %v5432, %v5431
  %v5447 = vpack.c.b16 %v5434, %v5433
  %v5448 = vpack.c.b16 %v5436, %v5435
  %v5449 = vpack.c.b16 %v5438, %v5437
  %v5450 = vpack.c.b16 %v5440, %v5439
  %v5451 = vpack.c.b16 %v5442, %v5441
  %v5452 = vpack.c.b16 %v5444, %v5443
  %5461 = vmatprep.subr.bf16.mxu0 0
  %5462 = vmatpush1.bf16.msra.mxu0 %v5445
  %5463 = vmatprep.subr.bf16.mxu0 0
  %5464 = vmatpush1.bf16.msra.mxu0 %v5446
  %5465 = vmatprep.subr.bf16.mxu0 0
  %5466 = vmatpush1.bf16.msra.mxu0 %v5447
  %5467 = vmatprep.subr.bf16.mxu0 0
  %5468 = vmatpush1.bf16.msra.mxu0 %v5448
  %5469 = vmatprep.subr.bf16.mxu0 0
  %5470 = vmatpush1.bf16.msra.mxu0 %v5449
  %5471 = vmatprep.subr.bf16.mxu0 0
  %5472 = vmatpush1.bf16.msra.mxu0 %v5450
  %5473 = vmatprep.subr.bf16.mxu0 0
  %5474 = vmatpush1.bf16.msra.mxu0 %v5451
  %5475 = vmatprep.subr.bf16.mxu0 0
  %5476 = vmatpush1.bf16.msra.mxu0 %v5452
  %5477 = vmatprep.subr.bf16.mxu0 0
  %5478 = vmatpush1.bf16.msra.mxu0 0
  %5479 = vmatprep.subr.bf16.mxu0 0
  %5480 = vmatpush1.bf16.msra.mxu0 0
  %5481 = vmatprep.subr.bf16.mxu0 0
  %5482 = vmatpush1.bf16.msra.mxu0 0
  %5483 = vmatprep.subr.bf16.mxu0 0
  %5484 = vmatpush1.bf16.msra.mxu0 0
  %5485 = vmatprep.subr.bf16.mxu0 0
  %5486 = vmatpush1.bf16.msra.mxu0 0
  %5487 = vmatprep.subr.bf16.mxu0 0
  %5488 = vmatpush1.bf16.msra.mxu0 0
  %5489 = vmatprep.subr.bf16.mxu0 0
  %5490 = vmatpush1.bf16.msra.mxu0 0
  %5491 = vmatprep.subr.bf16.mxu0 0
  %5492 = vmatpush1.bf16.msra.mxu0 0
  %5493 = vmatprep.mubr.bf16.mxu0 0
  %5494 = vmatmul.mubr.bf16.gmra.mrb[0].mxu0 %v5411
  %v5495 = vpop.f32.mrb[0].mxu0
  %v5496 = vadd.f32 0.0, %v5495
  %v5497 = vpop.f32.mrb[0].mxu0
  %v5498 = vpop.f32.mrb[0].mxu0
  %v5499 = vpop.f32.mrb[0].mxu0
  %5500 = vdwg.mxu0
  %v5501 = vadd.f32 %v5393, %v5496
  %v5502 = vpack.c.bf16 %v4005, %v4005
  %v5503 = vld [vmem:[%s5 + $0x380] sm:$0xf]
  %v5504 = vld [vmem:[%s5 + $0x384] sm:$0xf]
  %v5505 = vld [vmem:[%s5 + $0x388] sm:$0xf]
  %v5506 = vld [vmem:[%s5 + $0x38c] sm:$0xf]
  %v5507 = vld [vmem:[%s5 + $0x390] sm:$0xf]
  %v5508 = vld [vmem:[%s5 + $0x394] sm:$0xf]
  %v5509 = vld [vmem:[%s5 + $0x398] sm:$0xf]
  %v5510 = vld [vmem:[%s5 + $0x39c] sm:$0xf]
  %v5511 = vld [vmem:[%s5 + $0x3a0] sm:$0xf]
  %v5512 = vld [vmem:[%s5 + $0x3a4] sm:$0xf]
  %v5513 = vld [vmem:[%s5 + $0x3a8] sm:$0xf]
  %v5514 = vld [vmem:[%s5 + $0x3ac] sm:$0xf]
  %v5515 = vld [vmem:[%s5 + $0x3b0] sm:$0xf]
  %v5516 = vld [vmem:[%s5 + $0x3b4] sm:$0xf]
  %v5517 = vld [vmem:[%s5 + $0x3b8] sm:$0xf]
  %v5518 = vld [vmem:[%s5 + $0x3bc] sm:$0xf]
  %v5535 = vunpack.c.l.b16 %v5503
  %v5536 = vunpack.c.l.b16 %v5504
  %v5537 = vunpack.c.l.b16 %v5505
  %v5538 = vunpack.c.l.b16 %v5506
  %v5539 = vunpack.c.l.b16 %v5507
  %v5540 = vunpack.c.l.b16 %v5508
  %v5541 = vunpack.c.l.b16 %v5509
  %v5542 = vunpack.c.l.b16 %v5510
  %v5543 = vunpack.c.l.b16 %v5511
  %v5544 = vunpack.c.l.b16 %v5512
  %v5545 = vunpack.c.l.b16 %v5513
  %v5546 = vunpack.c.l.b16 %v5514
  %v5547 = vunpack.c.l.b16 %v5515
  %v5548 = vunpack.c.l.b16 %v5516
  %v5549 = vunpack.c.l.b16 %v5517
  %v5550 = vunpack.c.l.b16 %v5518
  %v5551 = vpack.c.b16 %v5536, %v5535
  %v5552 = vpack.c.b16 %v5538, %v5537
  %v5553 = vpack.c.b16 %v5540, %v5539
  %v5554 = vpack.c.b16 %v5542, %v5541
  %v5555 = vpack.c.b16 %v5544, %v5543
  %v5556 = vpack.c.b16 %v5546, %v5545
  %v5557 = vpack.c.b16 %v5548, %v5547
  %v5558 = vpack.c.b16 %v5550, %v5549
  %5567 = vmatprep.subr.bf16.mxu0 0
  %5568 = vmatpush1.bf16.msra.mxu0 %v5551
  %5569 = vmatprep.subr.bf16.mxu0 0
  %5570 = vmatpush1.bf16.msra.mxu0 %v5552
  %5571 = vmatprep.subr.bf16.mxu0 0
  %5572 = vmatpush1.bf16.msra.mxu0 %v5553
  %5573 = vmatprep.subr.bf16.mxu0 0
  %5574 = vmatpush1.bf16.msra.mxu0 %v5554
  %5575 = vmatprep.subr.bf16.mxu0 0
  %5576 = vmatpush1.bf16.msra.mxu0 %v5555
  %5577 = vmatprep.subr.bf16.mxu0 0
  %5578 = vmatpush1.bf16.msra.mxu0 %v5556
  %5579 = vmatprep.subr.bf16.mxu0 0
  %5580 = vmatpush1.bf16.msra.mxu0 %v5557
  %5581 = vmatprep.subr.bf16.mxu0 0
  %5582 = vmatpush1.bf16.msra.mxu0 %v5558
  %5583 = vmatprep.subr.bf16.mxu0 0
  %5584 = vmatpush1.bf16.msra.mxu0 0
  %5585 = vmatprep.subr.bf16.mxu0 0
  %5586 = vmatpush1.bf16.msra.mxu0 0
  %5587 = vmatprep.subr.bf16.mxu0 0
  %5588 = vmatpush1.bf16.msra.mxu0 0
  %5589 = vmatprep.subr.bf16.mxu0 0
  %5590 = vmatpush1.bf16.msra.mxu0 0
  %5591 = vmatprep.subr.bf16.mxu0 0
  %5592 = vmatpush1.bf16.msra.mxu0 0
  %5593 = vmatprep.subr.bf16.mxu0 0
  %5594 = vmatpush1.bf16.msra.mxu0 0
  %5595 = vmatprep.subr.bf16.mxu0 0
  %5596 = vmatpush1.bf16.msra.mxu0 0
  %5597 = vmatprep.subr.bf16.mxu0 0
  %5598 = vmatpush1.bf16.msra.mxu0 0
  %5599 = vmatprep.mubr.bf16.mxu0 0
  %5600 = vmatmul.mubr.bf16.gmra.mrb[0].mxu0 %v5502
  %v5601 = vpop.f32.mrb[0].mxu0
  %v5602 = vadd.f32 0.0, %v5601
  %v5603 = vpop.f32.mrb[0].mxu0
  %v5604 = vpop.f32.mrb[0].mxu0
  %v5605 = vpop.f32.mrb[0].mxu0
  %5606 = vdwg.mxu0
  %v5607 = vadd.f32 %v5501, %v5602
  %v5608 = vld [vmem:[%s5 + $0x3c0] sm:$0xf]
  %v5609 = vld [vmem:[%s5 + $0x3c4] sm:$0xf]
  %v5610 = vld [vmem:[%s5 + $0x3c8] sm:$0xf]
  %v5611 = vld [vmem:[%s5 + $0x3cc] sm:$0xf]
  %v5612 = vld [vmem:[%s5 + $0x3d0] sm:$0xf]
  %v5613 = vld [vmem:[%s5 + $0x3d4] sm:$0xf]
  %v5614 = vld [vmem:[%s5 + $0x3d8] sm:$0xf]
  %v5615 = vld [vmem:[%s5 + $0x3dc] sm:$0xf]
  %v5616 = vld [vmem:[%s5 + $0x3e0] sm:$0xf]
  %v5617 = vld [vmem:[%s5 + $0x3e4] sm:$0xf]
  %v5618 = vld [vmem:[%s5 + $0x3e8] sm:$0xf]
  %v5619 = vld [vmem:[%s5 + $0x3ec] sm:$0xf]
  %v5620 = vld [vmem:[%s5 + $0x3f0] sm:$0xf]
  %v5621 = vld [vmem:[%s5 + $0x3f4] sm:$0xf]
  %v5622 = vld [vmem:[%s5 + $0x3f8] sm:$0xf]
  %v5623 = vld [vmem:[%s5 + $0x3fc] sm:$0xf]
  %v5625 = vrot.slane %v5502, 2
  %v5643 = vunpack.c.l.b16 %v5608
  %v5644 = vunpack.c.l.b16 %v5609
  %v5645 = vunpack.c.l.b16 %v5610
  %v5646 = vunpack.c.l.b16 %v5611
  %v5647 = vunpack.c.l.b16 %v5612
  %v5648 = vunpack.c.l.b16 %v5613
  %v5649 = vunpack.c.l.b16 %v5614
  %v5650 = vunpack.c.l.b16 %v5615
  %v5651 = vunpack.c.l.b16 %v5616
  %v5652 = vunpack.c.l.b16 %v5617
  %v5653 = vunpack.c.l.b16 %v5618
  %v5654 = vunpack.c.l.b16 %v5619
  %v5655 = vunpack.c.l.b16 %v5620
  %v5656 = vunpack.c.l.b16 %v5621
  %v5657 = vunpack.c.l.b16 %v5622
  %v5658 = vunpack.c.l.b16 %v5623
  %v5659 = vpack.c.b16 %v5644, %v5643
  %v5660 = vpack.c.b16 %v5646, %v5645
  %v5661 = vpack.c.b16 %v5648, %v5647
  %v5662 = vpack.c.b16 %v5650, %v5649
  %v5663 = vpack.c.b16 %v5652, %v5651
  %v5664 = vpack.c.b16 %v5654, %v5653
  %v5665 = vpack.c.b16 %v5656, %v5655
  %v5666 = vpack.c.b16 %v5658, %v5657
  %5675 = vmatprep.subr.bf16.mxu0 0
  %5676 = vmatpush1.bf16.msra.mxu0 %v5659
  %5677 = vmatprep.subr.bf16.mxu0 0
  %5678 = vmatpush1.bf16.msra.mxu0 %v5660
  %5679 = vmatprep.subr.bf16.mxu0 0
  %5680 = vmatpush1.bf16.msra.mxu0 %v5661
  %5681 = vmatprep.subr.bf16.mxu0 0
  %5682 = vmatpush1.bf16.msra.mxu0 %v5662
  %5683 = vmatprep.subr.bf16.mxu0 0
  %5684 = vmatpush1.bf16.msra.mxu0 %v5663
  %5685 = vmatprep.subr.bf16.mxu0 0
  %5686 = vmatpush1.bf16.msra.mxu0 %v5664
  %5687 = vmatprep.subr.bf16.mxu0 0
  %5688 = vmatpush1.bf16.msra.mxu0 %v5665
  %5689 = vmatprep.subr.bf16.mxu0 0
  %5690 = vmatpush1.bf16.msra.mxu0 %v5666
  %5691 = vmatprep.subr.bf16.mxu0 0
  %5692 = vmatpush1.bf16.msra.mxu0 0
  %5693 = vmatprep.subr.bf16.mxu0 0
  %5694 = vmatpush1.bf16.msra.mxu0 0
  %5695 = vmatprep.subr.bf16.mxu0 0
  %5696 = vmatpush1.bf16.msra.mxu0 0
  %5697 = vmatprep.subr.bf16.mxu0 0
  %5698 = vmatpush1.bf16.msra.mxu0 0
  %5699 = vmatprep.subr.bf16.mxu0 0
  %5700 = vmatpush1.bf16.msra.mxu0 0
  %5701 = vmatprep.subr.bf16.mxu0 0
  %5702 = vmatpush1.bf16.msra.mxu0 0
  %5703 = vmatprep.subr.bf16.mxu0 0
  %5704 = vmatpush1.bf16.msra.mxu0 0
  %5705 = vmatprep.subr.bf16.mxu0 0
  %5706 = vmatpush1.bf16.msra.mxu0 0
  %5707 = vmatprep.mubr.bf16.mxu0 0
  %5708 = vmatmul.mubr.bf16.gmra.mrb[0].mxu0 %v5625
  %v5709 = vpop.f32.mrb[0].mxu0
  %v5710 = vadd.f32 0.0, %v5709
  %v5711 = vpop.f32.mrb[0].mxu0
  %v5712 = vpop.f32.mrb[0].mxu0
  %v5713 = vpop.f32.mrb[0].mxu0
  %5714 = vdwg.mxu0
  %v5715 = vadd.f32 %v5607, %v5710
  %v5716 = vld [vmem:[%s6] sm:$0x1]
  %v5718 = vlaneseq
  %v5719 = vshrl.u32 %v5718, 7
  %v5720 = vsub.s32 0, %v5719
  %v5721 = vrot.slane %v5716, %v5720
  %v5723 = vadd.f32 %v5715, %v5721
  %vm5724 = vcmask 519168
  %v5725 = vsel %vm5724, %v5723, 0.0
  %v5726 = vrot.slane %v5725, 4
  %v5727 = vadd.f32 %v5725, %v5726
  %v5728 = vrot.slane %v5727, 2
  %v5729 = vadd.f32 %v5727, %v5728
  %v5730 = vrot.slane %v5729, 1
  %v5731 = vadd.f32 %v5729, %v5730
  %v5732 = vrcp.pop 4.0
  %v5733 = vmul.f32 %v5731, %v5732
  %v5734 = vsub.f32 %v5723, %v5733
  %v5735 = vmul.f32 %v5734, %v5734
  %v5736 = vsel %vm5724, %v5735, 0.0
  %v5737 = vrot.slane %v5736, 4
  %v5738 = vadd.f32 %v5736, %v5737
  %v5739 = vrot.slane %v5738, 2
  %v5740 = vadd.f32 %v5738, %v5739
  %v5741 = vrot.slane %v5740, 1
  %v5742 = vadd.f32 %v5740, %v5741
  %v5743 = vmul.f32 %v5742, %v5732
  %v5744 = vld [vmem:[%s7] sm:$0x1]
  %v5745 = vadd.f32 %v5743, 1e-05
  %v5746 = vrsqrt.pop %v5745
  %v5747 = vmul.f32 %v5744, %v5746
  %v5748 = vld [vmem:[%s8] sm:$0x1]
  %v5749 = vmul.f32 %v5733, %v5747
  %v5750 = vsub.f32 %v5748, %v5749
  %v5752 = vlaneseq
  %v5753 = vshrl.u32 %v5752, 7
  %v5754 = vsub.s32 0, %v5753
  %v5755 = vrot.slane %v5747, %v5754
  %v5757 = vmul.f32 %v5723, %v5755
  %v5759 = vlaneseq
  %v5760 = vshrl.u32 %v5759, 7
  %v5761 = vsub.s32 0, %v5760
  %v5762 = vrot.slane %v5750, %v5761
  %v5764 = vadd.f32 %v5757, %v5762
  %vm5765 = vcmp.gt.f32.partialorder %v5764, 0.0
  %v5766 = vmul.f32 %v5764, 0.2
  %v5767 = vsel %vm5765, %v5764, %v5766
  %vm5768 = vcmask 1043456
  %v5769 = vsel %vm5768, %v5767, 0.0
  %v5770 = vpack.c.bf16 %v5769, %v5769
  %v5771 = vld [vmem:[%s9] sm:$0xf]
  %v5772 = vld [vmem:[%s9 + $0x4] sm:$0xf]
  %v5773 = vld [vmem:[%s9 + $0x8] sm:$0xf]
  %v5774 = vld [vmem:[%s9 + $0xc] sm:$0xf]
  %v5775 = vld [vmem:[%s9 + $0x10] sm:$0xf]
  %v5776 = vld [vmem:[%s9 + $0x14] sm:$0xf]
  %v5777 = vld [vmem:[%s9 + $0x18] sm:$0xf]
  %v5778 = vld [vmem:[%s9 + $0x1c] sm:$0xf]
  %v5779 = vld [vmem:[%s10] sm:$0x1]
  %v5781 = vlaneseq
  %v5782 = vshrl.u32 %v5781, 7
  %v5783 = vsub.s32 0, %v5782
  %v5784 = vrot.slane %v5779, %v5783
  %v5794 = vunpack.c.l.b16 %v5771
  %v5795 = vunpack.c.l.b16 %v5772
  %v5796 = vunpack.c.l.b16 %v5773
  %v5797 = vunpack.c.l.b16 %v5774
  %v5798 = vunpack.c.l.b16 %v5775
  %v5799 = vunpack.c.l.b16 %v5776
  %v5800 = vunpack.c.l.b16 %v5777
  %v5801 = vunpack.c.l.b16 %v5778
  %v5802 = vpack.c.b16 %v5795, %v5794
  %v5803 = vpack.c.b16 %v5797, %v5796
  %v5804 = vpack.c.b16 %v5799, %v5798
  %v5805 = vpack.c.b16 %v5801, %v5800
  %vm5810 = vcmask 523264
  %v5812 = vsel %vm5810, %v5770, 0
  %5814 = vmatprep.subr.bf16.mxu0 0
  %5815 = vmatpush1.bf16.msra.mxu0 %v5802
  %5816 = vmatprep.subr.bf16.mxu0 0
  %5817 = vmatpush1.bf16.msra.mxu0 %v5803
  %5818 = vmatprep.subr.bf16.mxu0 0
  %5819 = vmatpush1.bf16.msra.mxu0 %v5804
  %5820 = vmatprep.subr.bf16.mxu0 0
  %5821 = vmatpush1.bf16.msra.mxu0 %v5805
  %5822 = vmatprep.subr.bf16.mxu0 0
  %5823 = vmatpush1.bf16.msra.mxu0 0
  %5824 = vmatprep.subr.bf16.mxu0 0
  %5825 = vmatpush1.bf16.msra.mxu0 0
  %5826 = vmatprep.subr.bf16.mxu0 0
  %5827 = vmatpush1.bf16.msra.mxu0 0
  %5828 = vmatprep.subr.bf16.mxu0 0
  %5829 = vmatpush1.bf16.msra.mxu0 0
  %5830 = vmatprep.subr.bf16.mxu0 0
  %5831 = vmatpush1.bf16.msra.mxu0 0
  %5832 = vmatprep.subr.bf16.mxu0 0
  %5833 = vmatpush1.bf16.msra.mxu0 0
  %5834 = vmatprep.subr.bf16.mxu0 0
  %5835 = vmatpush1.bf16.msra.mxu0 0
  %5836 = vmatprep.subr.bf16.mxu0 0
  %5837 = vmatpush1.bf16.msra.mxu0 0
  %5838 = vmatprep.subr.bf16.mxu0 0
  %5839 = vmatpush1.bf16.msra.mxu0 0
  %5840 = vmatprep.subr.bf16.mxu0 0
  %5841 = vmatpush1.bf16.msra.mxu0 0
  %5842 = vmatprep.subr.bf16.mxu0 0
  %5843 = vmatpush1.bf16.msra.mxu0 0
  %5844 = vmatprep.subr.bf16.mxu0 0
  %5845 = vmatpush1.bf16.msra.mxu0 0
  %5846 = vmatprep.mubr.bf16.mxu0 0
  %5847 = vmatmul.mubr.bf16.gmra.mrb[0].mxu0 %v5812
  %v5848 = vpop.f32.mrb[0].mxu0
  %v5849 = vadd.f32 %v5784, %v5848
  %v5850 = vpop.f32.mrb[0].mxu0
  %v5851 = vpop.f32.mrb[0].mxu0
  %v5852 = vpop.f32.mrb[0].mxu0
  %5853 = vdwg.mxu0
  %5854 = vst [vmem:[%s11] sm:$0xff] %v5849
  // Predicated region
  $region46: #{auxiliary_network_forward.1} parent=0 // pred_check
    _
  $region47: #{auxiliary_network_forward.1} parent=0 // pred_check_branch
    %5856 = sbr.rel (0) target = $region49
  $region48: #{auxiliary_network_forward.1} parent=0 // pred_region
    _
  $region49: #{auxiliary_network_forward.1} parent=0 // pred_fallthru
    _
  // Predicated region
  $region50: #{auxiliary_network_forward.1} parent=0 // pred_check
    _
  $region51: #{auxiliary_network_forward.1} parent=0 // pred_check_branch
    %5858 = sbr.rel (0) target = $region53
  $region52: #{auxiliary_network_forward.1} parent=0 // pred_region
    _
  $region53: #{auxiliary_network_forward.1} parent=0 // pred_fallthru
    _

</llo_original>
